<compile_context>
chip_gen: v7x
topology: tpu7x:2x2x1
jax: 0.10.0
libtpu: 0.0.40
codegen_flags: <defaults>
</compile_context>

<pallas_src>
import jax
import jax.numpy as jnp
from jax.experimental import pallas as pl
from jax.experimental.pallas import tpu as pltpu

RETRIEVE_WEIGHT = 0.3
LABEL_WEIGHT = 0.3

# Below this node count the MXU contraction depth is so under-filled that the
# A @ (X@Wpre) contraction is cheaper as an unrolled VPU rank-1-update sum.
_VPU_CONTRACTION_MAX_N = 16


def ragraph_kernel(x_ref, adj_ref, wpre_ref, mem_ref, raglab_ref,
                   w1_ref, b1_ref, w2_ref, b2_ref, out_ref):
    x = x_ref[...]                   # (B, N, F)  compute dtype (bf16 default)
    adj = adj_ref[...]               # (B, N, N)  compute dtype
    wpre = wpre_ref[...]             # (F, E)     compute dtype
    bb, n, f = x.shape
    e = wpre.shape[1]

    # --- pretrain_model.inference: H = relu(A @ (X @ Wpre)) ------------------
    # X @ Wpre as one tall (B*N, F) @ (F, E) matmul: bf16 operands straight
    # into the MXU, f32 accumulation.
    xw = jnp.dot(x.reshape(bb * n, f), wpre,
                 preferred_element_type=jnp.float32).reshape(bb, n, e)  # f32

    adj_f = adj.astype(jnp.float32)
    if n <= _VPU_CONTRACTION_MAX_N:
        # Tiny graphs: MXU contraction depth (N) would be <10% filled, so do
        # the N-contraction on the VPU as an unrolled sum of rank-1 updates.
        h_raw = adj_f[:, :, 0:1] * xw[:, 0:1, :]
        for j in range(1, n):
            h_raw = h_raw + adj_f[:, :, j:j + 1] * xw[:, j:j + 1, :]
    else:
        # Production graphs: batched MXU matmul with bf16 operands / f32 acc.
        # NOTE: pad N to a multiple of 128 (256 on v6e/v7x) wrapper-side so the
        # systolic array's contraction depth is actually filled.
        h_raw = jnp.einsum('bij,bje->bie', adj, xw.astype(adj.dtype),
                           preferred_element_type=jnp.float32)
    h = jnp.maximum(h_raw, 0.0)                                  # (B, N, E) f32

    # --- node reductions ------------------------------------------------------
    # Both reductions over nodes of h are weighted sums:
    #   g = mean_i h[i]                          (graph embedding, weights 1/N)
    #   q = mean_i (A @ h)[i] = mean_rows(A) @ h (1-hop query, algebraic rewrite
    #                                             that removes the O(N^2 E) 2nd
    #                                             adjacency matmul)
    # Stack the two weight rows and do a single (B,2,N)@(B,N,E) batched matmul
    # so the N-reduction rides the MXU/XLU path (no (B,N,E) broadcast temp).
    r = jnp.mean(adj_f, axis=1)                                   # (B, N) f32
    row_id = jax.lax.broadcasted_iota(jnp.int32, (bb, 2, n), 1)
    node_w = jnp.where(row_id == 0, 1.0 / n, r[:, None, :])       # (B, 2, N)
    gq = jnp.einsum('bmn,bne->bme', node_w, h,
                    preferred_element_type=jnp.float32)           # (B, 2, E)
    g = gq[:, 0, :]                                               # (B, E)
    query_embedding = gq[:, 1, :]                                 # (B, E)

    # --- toy_graph_base.retrieve: softmax(g @ mem^T) @ mem -------------------
    # Contract E on both sides; no pre-transposed copy of the memory bank.
    mem = mem_ref[...]                                            # (K, E)
    sims = jax.lax.dot_general(
        g.astype(mem.dtype), mem, (((1,), (1,)), ((), ())),
        preferred_element_type=jnp.float32)                       # (B, K)
    sims = sims - jnp.max(sims, axis=1, keepdims=True)
    es = jnp.exp(sims)
    wsm = es * pl.reciprocal(jnp.sum(es, axis=1, keepdims=True),
                             approx=True)                         # (B, K)
    rag_embedding = jnp.dot(wsm.astype(mem.dtype), mem,
                            preferred_element_type=jnp.float32)   # (B, E)

    hidden = (query_embedding * (1.0 - RETRIEVE_WEIGHT)
              + rag_embedding * RETRIEVE_WEIGHT)                  # (B, E) f32

    # --- TaskDecoder: 2-layer MLP + softmax -----------------------------------
    w1 = w1_ref[...]                                              # (E, E) bf16
    w2 = w2_ref[...]                                              # (E, C) bf16
    b1 = b1_ref[...]                                              # (1, E) f32
    b2 = b2_ref[...]                                              # (1, C) f32
    hdec = jnp.maximum(
        jnp.dot(hidden.astype(w1.dtype), w1,
                preferred_element_type=jnp.float32) + b1, 0.0)
    logits = jnp.dot(hdec.astype(w2.dtype), w2,
                     preferred_element_type=jnp.float32) + b2
    logits = logits - jnp.max(logits, axis=1, keepdims=True)
    pe = jnp.exp(logits)
    decode_label = pe * pl.reciprocal(jnp.sum(pe, axis=1, keepdims=True),
                                      approx=True)                # (B, C)

    rag_label = raglab_ref[...]                                   # (1, C) f32
    # Lane-dense write: out block is (B, C), no size-1 middle dim / reshape.
    # TODO(synk): for production, pad C / E / K up to multiples of 128 on the
    #             lane axis wrapper-side so vregs and stores are not ~90% pad.
    out_ref[...] = (decode_label * (1.0 - LABEL_WEIGHT)
                    + rag_label * LABEL_WEIGHT)


def _pick_batch_block(B, N, F, E, C, K, itemsize, budget_bytes):
    """Largest per-step batch tile fitting the per-TensorCore VMEM budget."""
    # Constants resident once in VMEM (whole-array operands, not buffered).
    const_bytes = (F * E + K * E + E * E + E * C) * itemsize + (E + 2 * C) * 4
    # Per-graph cost: double-buffered input tiles + f32 intermediates + output.
    per_graph = 2 * (N * N + N * F) * itemsize       # x, adj pipeline buffers
    per_graph += 3 * N * E * 4                       # xw, h, h_raw in f32
    per_graph += 2 * C * 4                           # output buffers
    avail = max(budget_bytes - const_bytes, per_graph)
    return int(min(max(1, avail // per_graph), B))


def ragraph_forward(x, adj, wpre, mem, memlab, w1, b1, w2, b2, *,
                    batch_block=None, compute_dtype=jnp.bfloat16,
                    vmem_budget_bytes=32 * 1024 * 1024):
    """Batched RAGraph forward. x: (B, N, F), adj: (B, N, N) -> (B, C)."""
    B, N, F = x.shape
    E = wpre.shape[1]
    C = w2.shape[1]
    K = mem.shape[0]

    # bf16 operands for the MXU; f32 accumulation happens in-kernel. Biases and
    # the hoisted rag_label stay f32 (they are added to f32 accumulators).
    xc = x.astype(compute_dtype)
    adjc = adj.astype(compute_dtype)
    wprec = wpre.astype(compute_dtype)
    memc = mem.astype(compute_dtype)
    w1c = w1.astype(compute_dtype)
    w2c = w2.astype(compute_dtype)
    b1f = b1.astype(jnp.float32).reshape(1, E)
    b2f = b2.astype(jnp.float32).reshape(1, C)
    # rag_label = mean over memory labels, hoisted out of the kernel (constant).
    rag_label = jnp.mean(memlab.astype(jnp.float32), axis=0, keepdims=True)

    consts = (wprec, memc, rag_label, w1c, b1f, w2c, b2f)
    itemsize = jnp.dtype(compute_dtype).itemsize

    vmem = pl.BlockSpec(memory_space=pltpu.MemorySpace.VMEM)

    if batch_block is None:
        bb = _pick_batch_block(B, N, F, E, C, K, itemsize, vmem_budget_bytes)
    else:
        bb = int(batch_block)
    # Snap to a multiple of 8 so the (bb, C) output block keeps its
    # second-to-minor dim sublane-aligned.
    bb = max(8, (bb // 8) * 8)

    if bb >= B:
        # Single-shot path: whole working set pinned in VMEM, no grid /
        # pipelining machinery (best for small B where this is launch-bound).
        return pl.pallas_call(
            ragraph_kernel,
            out_shape=jax.ShapeDtypeStruct((B, C), jnp.float32),
            in_specs=[vmem] * (2 + len(consts)),
            out_specs=vmem,
            compiler_params=pltpu.CompilerParams(
                vmem_limit_bytes=vmem_budget_bytes),
        )(xc, adjc, *consts)

    # Tiled path: grid over batch tiles; "parallel" shards the grid across both
    # v7x TensorCores (no-op on v5e/v6e). bb < B here, so num_steps >= 2 and
    # both cores get work. B is padded up with zero graphs (harmless: zero
    # adjacency -> uniform softmax, rows are sliced off afterwards).
    num_steps = -(-B // bb)
    Bp = num_steps * bb
    if Bp != B:
        xc = jnp.pad(xc, ((0, Bp - B), (0, 0), (0, 0)))
        adjc = jnp.pad(adjc, ((0, Bp - B), (0, 0), (0, 0)))

    in_specs = [
        pl.BlockSpec((bb, N, F), lambda i: (i, 0, 0)),     # x   (streamed)
        pl.BlockSpec((bb, N, N), lambda i: (i, 0, 0)),     # adj (streamed)
    ] + [vmem] * len(consts)   # shared weights / memory bank: whole-array VMEM
                               # operands -> loaded once, not double-buffered.
    out = pl.pallas_call(
        ragraph_kernel,
        out_shape=jax.ShapeDtypeStruct((Bp, C), jnp.float32),
        grid=(num_steps,),
        in_specs=in_specs,
        out_specs=pl.BlockSpec((bb, C), lambda i: (i, 0)),
        compiler_params=pltpu.CompilerParams(
            dimension_semantics=("parallel",),
            vmem_limit_bytes=vmem_budget_bytes),
    )(xc, adjc, *consts)
    return out[:B]


def ragraph_reference(x, adj, wpre, mem, memlab, w1, b1, w2, b2):
    """Pure-JAX f32 reference (per-graph, un-rewritten math), vmapped over B."""
    def one(xb, ab):
        h = jnp.maximum((ab @ xb) @ wpre, 0.0)
        g = jnp.mean(h, axis=0, keepdims=True)
        w = jax.nn.softmax(g @ mem.T, axis=1)
        rag_embedding = w @ mem
        rag_label = jnp.mean(memlab, axis=0, keepdims=True)
        q = jnp.mean(ab @ h, axis=0, keepdims=True)
        hidden = q * (1 - RETRIEVE_WEIGHT) + rag_embedding * RETRIEVE_WEIGHT
        dec = jax.nn.softmax(
            jnp.maximum(hidden @ w1 + b1, 0.0) @ w2 + b2, axis=1)
        return (dec * (1 - LABEL_WEIGHT) + rag_label * LABEL_WEIGHT)[0]
    return jax.vmap(one)(x, adj)


if __name__ == "__main__":
    # Small shapes consistent with the module's forward:
    B, N, F, E, C, K = 16, 8, 16, 32, 8, 16   # graphs, nodes, feat, emb, classes, memory

    key = jax.random.PRNGKey(0)
    kx, ka, kp, km, kl, k1, k2 = jax.random.split(key, 7)

    x = jax.random.normal(kx, (B, N, F), jnp.float32)

    # Per-graph symmetric adjacency with self-loops, row-normalized.
    a_raw = (jax.random.uniform(ka, (B, N, N)) > 0.6).astype(jnp.float32)
    a_sym = jnp.clip(a_raw + jnp.swapaxes(a_raw, 1, 2)
                     + jnp.eye(N, dtype=jnp.float32)[None], 0.0, 1.0)
    adj = a_sym / jnp.sum(a_sym, axis=2, keepdims=True)

    # Deterministic "pretrained" / memory / decoder parameters (f32 masters;
    # the wrapper casts MXU operands to bf16).
    wpre = jax.random.normal(kp, (F, E), jnp.float32) * 0.1
    mem = jax.random.normal(km, (K, E), jnp.float32) * 0.1    # ToyGraphBase embeddings
    memlab = jax.nn.softmax(jax.random.normal(kl, (K, C), jnp.float32), axis=1)
    w1 = jax.random.normal(k1, (E, E), jnp.float32) * 0.1
    b1 = jnp.zeros((1, E), jnp.float32) + 0.01
    w2 = jax.random.normal(k2, (E, C), jnp.float32) * 0.1
    b2 = jnp.zeros((1, C), jnp.float32) + 0.01

    ref = ragraph_reference(x, adj, wpre, mem, memlab, w1, b1, w2, b2)

    # Path 1: auto -> single-shot, whole working set resident in VMEM.
    out1 = jax.block_until_ready(
        ragraph_forward(x, adj, wpre, mem, memlab, w1, b1, w2, b2))
    assert out1.shape == (B, C), out1.shape
    assert jnp.allclose(out1, ref, atol=2e-2, rtol=2e-2), (
        "single-shot max|diff| = %g" % float(jnp.max(jnp.abs(out1 - ref))))

    # Path 2: batch-tiled grid (2 steps; "parallel" -> both v7x TensorCores).
    out2 = jax.block_until_ready(
        ragraph_forward(x, adj, wpre, mem, memlab, w1, b1, w2, b2,
                        batch_block=8))
    assert out2.shape == (B, C), out2.shape
    assert jnp.allclose(out2, ref, atol=2e-2, rtol=2e-2), (
        "tiled max|diff| = %g" % float(jnp.max(jnp.abs(out2 - ref))))

    print("KERNEL_OK")
</pallas_src>

<mosaic_0001>
module attributes {stable_mosaic.version = 11 : i64} {
  func.func @ragraph_kernel(%arg0: memref<16x8x16xbf16, #tpu.memory_space<vmem>>, %arg1: memref<16x8x8xbf16, #tpu.memory_space<vmem>>, %arg2: memref<16x32xbf16, #tpu.memory_space<vmem>>, %arg3: memref<16x32xbf16, #tpu.memory_space<vmem>>, %arg4: memref<1x8xf32, #tpu.memory_space<vmem>>, %arg5: memref<32x32xbf16, #tpu.memory_space<vmem>>, %arg6: memref<1x32xf32, #tpu.memory_space<vmem>>, %arg7: memref<32x8xbf16, #tpu.memory_space<vmem>>, %arg8: memref<1x8xf32, #tpu.memory_space<vmem>>, %arg9: memref<16x8xf32, #tpu.memory_space<vmem>>) attributes {dimension_semantics = [], scalar_prefetch = 0 : i64, scratch_operands = 0 : i64, tpu.core_type = #tpu.core_type<tc>} {
    %c0 = arith.constant 0 : index
    %c0_0 = arith.constant 0 : index
    %c0_1 = arith.constant 0 : index
    %0 = vector.load %arg0[%c0, %c0_0, %c0_1] : memref<16x8x16xbf16, #tpu.memory_space<vmem>>, vector<16x8x16xbf16>
    %c0_2 = arith.constant 0 : index
    %c0_3 = arith.constant 0 : index
    %c0_4 = arith.constant 0 : index
    %1 = vector.load %arg1[%c0_2, %c0_3, %c0_4] : memref<16x8x8xbf16, #tpu.memory_space<vmem>>, vector<16x8x8xbf16>
    %c0_5 = arith.constant 0 : index
    %c0_6 = arith.constant 0 : index
    %2 = vector.load %arg2[%c0_5, %c0_6] : memref<16x32xbf16, #tpu.memory_space<vmem>>, vector<16x32xbf16>
    %3 = vector.shape_cast %0 : vector<16x8x16xbf16> to vector<128x16xbf16>
    %cst = arith.constant dense<0.000000e+00> : vector<128x32xf32>
    %4 = tpu.matmul %3, %2, %cst {dimension_numbers = #tpu.dot_dimension_numbers<[1], [0], [0], [1], [0, 0, 1, 1], [], []>} : vector<128x16xbf16>, vector<16x32xbf16>, vector<128x32xf32> -> vector<128x32xf32>
    %5 = vector.shape_cast %4 : vector<128x32xf32> to vector<16x8x32xf32>
    %6 = arith.extf %1 : vector<16x8x8xbf16> to vector<16x8x8xf32>
    %7 = vector.extract_strided_slice %6 {offsets = [0, 0, 0], sizes = [16, 8, 1], strides = [1, 1, 1]} : vector<16x8x8xf32> to vector<16x8x1xf32>
    %8 = vector.extract_strided_slice %5 {offsets = [0, 0, 0], sizes = [16, 1, 32], strides = [1, 1, 1]} : vector<16x8x32xf32> to vector<16x1x32xf32>
    %9 = vector.broadcast %7 : vector<16x8x1xf32> to vector<16x8x32xf32>
    %10 = vector.broadcast %8 : vector<16x1x32xf32> to vector<16x8x32xf32>
    %11 = arith.mulf %9, %10 : vector<16x8x32xf32>
    %12 = vector.extract_strided_slice %6 {offsets = [0, 0, 1], sizes = [16, 8, 1], strides = [1, 1, 1]} : vector<16x8x8xf32> to vector<16x8x1xf32>
    %13 = vector.extract_strided_slice %5 {offsets = [0, 1, 0], sizes = [16, 1, 32], strides = [1, 1, 1]} : vector<16x8x32xf32> to vector<16x1x32xf32>
    %14 = vector.broadcast %12 : vector<16x8x1xf32> to vector<16x8x32xf32>
    %15 = vector.broadcast %13 : vector<16x1x32xf32> to vector<16x8x32xf32>
    %16 = arith.mulf %14, %15 : vector<16x8x32xf32>
    %17 = arith.addf %11, %16 : vector<16x8x32xf32>
    %18 = vector.extract_strided_slice %6 {offsets = [0, 0, 2], sizes = [16, 8, 1], strides = [1, 1, 1]} : vector<16x8x8xf32> to vector<16x8x1xf32>
    %19 = vector.extract_strided_slice %5 {offsets = [0, 2, 0], sizes = [16, 1, 32], strides = [1, 1, 1]} : vector<16x8x32xf32> to vector<16x1x32xf32>
    %20 = vector.broadcast %18 : vector<16x8x1xf32> to vector<16x8x32xf32>
    %21 = vector.broadcast %19 : vector<16x1x32xf32> to vector<16x8x32xf32>
    %22 = arith.mulf %20, %21 : vector<16x8x32xf32>
    %23 = arith.addf %17, %22 : vector<16x8x32xf32>
    %24 = vector.extract_strided_slice %6 {offsets = [0, 0, 3], sizes = [16, 8, 1], strides = [1, 1, 1]} : vector<16x8x8xf32> to vector<16x8x1xf32>
    %25 = vector.extract_strided_slice %5 {offsets = [0, 3, 0], sizes = [16, 1, 32], strides = [1, 1, 1]} : vector<16x8x32xf32> to vector<16x1x32xf32>
    %26 = vector.broadcast %24 : vector<16x8x1xf32> to vector<16x8x32xf32>
    %27 = vector.broadcast %25 : vector<16x1x32xf32> to vector<16x8x32xf32>
    %28 = arith.mulf %26, %27 : vector<16x8x32xf32>
    %29 = arith.addf %23, %28 : vector<16x8x32xf32>
    %30 = vector.extract_strided_slice %6 {offsets = [0, 0, 4], sizes = [16, 8, 1], strides = [1, 1, 1]} : vector<16x8x8xf32> to vector<16x8x1xf32>
    %31 = vector.extract_strided_slice %5 {offsets = [0, 4, 0], sizes = [16, 1, 32], strides = [1, 1, 1]} : vector<16x8x32xf32> to vector<16x1x32xf32>
    %32 = vector.broadcast %30 : vector<16x8x1xf32> to vector<16x8x32xf32>
    %33 = vector.broadcast %31 : vector<16x1x32xf32> to vector<16x8x32xf32>
    %34 = arith.mulf %32, %33 : vector<16x8x32xf32>
    %35 = arith.addf %29, %34 : vector<16x8x32xf32>
    %36 = vector.extract_strided_slice %6 {offsets = [0, 0, 5], sizes = [16, 8, 1], strides = [1, 1, 1]} : vector<16x8x8xf32> to vector<16x8x1xf32>
    %37 = vector.extract_strided_slice %5 {offsets = [0, 5, 0], sizes = [16, 1, 32], strides = [1, 1, 1]} : vector<16x8x32xf32> to vector<16x1x32xf32>
    %38 = vector.broadcast %36 : vector<16x8x1xf32> to vector<16x8x32xf32>
    %39 = vector.broadcast %37 : vector<16x1x32xf32> to vector<16x8x32xf32>
    %40 = arith.mulf %38, %39 : vector<16x8x32xf32>
    %41 = arith.addf %35, %40 : vector<16x8x32xf32>
    %42 = vector.extract_strided_slice %6 {offsets = [0, 0, 6], sizes = [16, 8, 1], strides = [1, 1, 1]} : vector<16x8x8xf32> to vector<16x8x1xf32>
    %43 = vector.extract_strided_slice %5 {offsets = [0, 6, 0], sizes = [16, 1, 32], strides = [1, 1, 1]} : vector<16x8x32xf32> to vector<16x1x32xf32>
    %44 = vector.broadcast %42 : vector<16x8x1xf32> to vector<16x8x32xf32>
    %45 = vector.broadcast %43 : vector<16x1x32xf32> to vector<16x8x32xf32>
    %46 = arith.mulf %44, %45 : vector<16x8x32xf32>
    %47 = arith.addf %41, %46 : vector<16x8x32xf32>
    %48 = vector.extract_strided_slice %6 {offsets = [0, 0, 7], sizes = [16, 8, 1], strides = [1, 1, 1]} : vector<16x8x8xf32> to vector<16x8x1xf32>
    %49 = vector.extract_strided_slice %5 {offsets = [0, 7, 0], sizes = [16, 1, 32], strides = [1, 1, 1]} : vector<16x8x32xf32> to vector<16x1x32xf32>
    %50 = vector.broadcast %48 : vector<16x8x1xf32> to vector<16x8x32xf32>
    %51 = vector.broadcast %49 : vector<16x1x32xf32> to vector<16x8x32xf32>
    %52 = arith.mulf %50, %51 : vector<16x8x32xf32>
    %53 = arith.addf %47, %52 : vector<16x8x32xf32>
    %cst_7 = arith.constant 0.000000e+00 : f32
    %54 = vector.broadcast %cst_7 : f32 to vector<16x8x32xf32>
    %55 = arith.maximumf %53, %54 : vector<16x8x32xf32>
    %cst_8 = arith.constant dense<0.000000e+00> : vector<16x8xf32>
    %56 = vector.multi_reduction <add>, %6, %cst_8 [1] : vector<16x8x8xf32> to vector<16x8xf32>
    %cst_9 = arith.constant 8.000000e+00 : f32
    %57 = vector.broadcast %cst_9 : f32 to vector<16x8xf32>
    %58 = arith.divf %56, %57 : vector<16x8xf32>
    %59 = tpu.iota {dimensions = array<i32: 1>} : vector<16x2x8xi32>
    %c0_i32 = arith.constant 0 : i32
    %60 = vector.broadcast %c0_i32 : i32 to vector<16x2x8xi32>
    %61 = arith.cmpi eq, %59, %60 : vector<16x2x8xi32>
    %62 = vector.shape_cast %58 : vector<16x8xf32> to vector<16x1x8xf32>
    %cst_10 = arith.constant 1.250000e-01 : f32
    %63 = vector.broadcast %cst_10 : f32 to vector<16x2x8xf32>
    %64 = vector.shape_cast %62 : vector<16x1x8xf32> to vector<16x1x8xf32>
    %65 = vector.broadcast %64 : vector<16x1x8xf32> to vector<16x2x8xf32>
    %66 = arith.select %61, %63, %65 : vector<16x2x8xi1>, vector<16x2x8xf32>
    "tpu.trace_start"() <{level = 10 : i32, message = "bmn,bne->bme"}> : () -> ()
    %cst_11 = arith.constant dense<0.000000e+00> : vector<16x2x32xf32>
    %67 = tpu.matmul %66, %55, %cst_11 {dimension_numbers = #tpu.dot_dimension_numbers<[2], [1], [1], [2], [0, 0, 0, 1, 1, 2], [0], [0]>} : vector<16x2x8xf32>, vector<16x8x32xf32>, vector<16x2x32xf32> -> vector<16x2x32xf32>
    "tpu.trace_stop"() : () -> ()
    %68 = vector.extract_strided_slice %67 {offsets = [0, 0, 0], sizes = [16, 1, 32], strides = [1, 1, 1]} : vector<16x2x32xf32> to vector<16x1x32xf32>
    %69 = vector.shape_cast %68 : vector<16x1x32xf32> to vector<16x32xf32>
    %70 = vector.extract_strided_slice %67 {offsets = [0, 1, 0], sizes = [16, 1, 32], strides = [1, 1, 1]} : vector<16x2x32xf32> to vector<16x1x32xf32>
    %71 = vector.shape_cast %70 : vector<16x1x32xf32> to vector<16x32xf32>
    %c0_12 = arith.constant 0 : index
    %c0_13 = arith.constant 0 : index
    %72 = vector.load %arg3[%c0_12, %c0_13] : memref<16x32xbf16, #tpu.memory_space<vmem>>, vector<16x32xbf16>
    %73 = arith.truncf %69 : vector<16x32xf32> to vector<16x32xbf16>
    %cst_14 = arith.constant dense<0.000000e+00> : vector<16x16xf32>
    %74 = tpu.matmul %73, %72, %cst_14 {dimension_numbers = #tpu.dot_dimension_numbers<[1], [1], [0], [0], [0, 0, 1, 0], [], []>} : vector<16x32xbf16>, vector<16x32xbf16>, vector<16x16xf32> -> vector<16x16xf32>
    %cst_15 = arith.constant dense<0xFF800000> : vector<16xf32>
    %75 = vector.multi_reduction <maximumf>, %74, %cst_15 [1] : vector<16x16xf32> to vector<16xf32>
    %76 = vector.shape_cast %75 : vector<16xf32> to vector<16x1xf32>
    %77 = vector.broadcast %76 : vector<16x1xf32> to vector<16x16xf32>
    %78 = arith.subf %74, %77 : vector<16x16xf32>
    %79 = math.exp %78 : vector<16x16xf32>
    %cst_16 = arith.constant dense<0.000000e+00> : vector<16xf32>
    %80 = vector.multi_reduction <add>, %79, %cst_16 [1] : vector<16x16xf32> to vector<16xf32>
    %81 = vector.shape_cast %80 : vector<16xf32> to vector<16x1xf32>
    %82 = tpu.reciprocal %81 {approx = true} : vector<16x1xf32> -> vector<16x1xf32>
    %83 = vector.broadcast %82 : vector<16x1xf32> to vector<16x16xf32>
    %84 = arith.mulf %79, %83 : vector<16x16xf32>
    %85 = arith.truncf %84 : vector<16x16xf32> to vector<16x16xbf16>
    %cst_17 = arith.constant dense<0.000000e+00> : vector<16x32xf32>
    %86 = tpu.matmul %85, %72, %cst_17 {dimension_numbers = #tpu.dot_dimension_numbers<[1], [0], [0], [1], [0, 0, 1, 1], [], []>} : vector<16x16xbf16>, vector<16x32xbf16>, vector<16x32xf32> -> vector<16x32xf32>
    %cst_18 = arith.constant 0.699999988 : f32
    %87 = vector.broadcast %cst_18 : f32 to vector<16x32xf32>
    %88 = arith.mulf %71, %87 : vector<16x32xf32>
    %cst_19 = arith.constant 3.000000e-01 : f32
    %89 = vector.broadcast %cst_19 : f32 to vector<16x32xf32>
    %90 = arith.mulf %86, %89 : vector<16x32xf32>
    %91 = arith.addf %88, %90 : vector<16x32xf32>
    %c0_20 = arith.constant 0 : index
    %c0_21 = arith.constant 0 : index
    %92 = vector.load %arg5[%c0_20, %c0_21] : memref<32x32xbf16, #tpu.memory_space<vmem>>, vector<32x32xbf16>
    %c0_22 = arith.constant 0 : index
    %c0_23 = arith.constant 0 : index
    %93 = vector.load %arg7[%c0_22, %c0_23] : memref<32x8xbf16, #tpu.memory_space<vmem>>, vector<32x8xbf16>
    %c0_24 = arith.constant 0 : index
    %c0_25 = arith.constant 0 : index
    %94 = vector.load %arg6[%c0_24, %c0_25] : memref<1x32xf32, #tpu.memory_space<vmem>>, vector<1x32xf32>
    %c0_26 = arith.constant 0 : index
    %c0_27 = arith.constant 0 : index
    %95 = vector.load %arg8[%c0_26, %c0_27] : memref<1x8xf32, #tpu.memory_space<vmem>>, vector<1x8xf32>
    %96 = arith.truncf %91 : vector<16x32xf32> to vector<16x32xbf16>
    %cst_28 = arith.constant dense<0.000000e+00> : vector<16x32xf32>
    %97 = tpu.matmul %96, %92, %cst_28 {dimension_numbers = #tpu.dot_dimension_numbers<[1], [0], [0], [1], [0, 0, 1, 1], [], []>} : vector<16x32xbf16>, vector<32x32xbf16>, vector<16x32xf32> -> vector<16x32xf32>
    %98 = vector.broadcast %94 : vector<1x32xf32> to vector<16x32xf32>
    %99 = arith.addf %97, %98 : vector<16x32xf32>
    %cst_29 = arith.constant 0.000000e+00 : f32
    %100 = vector.broadcast %cst_29 : f32 to vector<16x32xf32>
    %101 = arith.maximumf %99, %100 : vector<16x32xf32>
    %102 = arith.truncf %101 : vector<16x32xf32> to vector<16x32xbf16>
    %cst_30 = arith.constant dense<0.000000e+00> : vector<16x8xf32>
    %103 = tpu.matmul %102, %93, %cst_30 {dimension_numbers = #tpu.dot_dimension_numbers<[1], [0], [0], [1], [0, 0, 1, 1], [], []>} : vector<16x32xbf16>, vector<32x8xbf16>, vector<16x8xf32> -> vector<16x8xf32>
    %104 = vector.broadcast %95 : vector<1x8xf32> to vector<16x8xf32>
    %105 = arith.addf %103, %104 : vector<16x8xf32>
    %cst_31 = arith.constant dense<0xFF800000> : vector<16xf32>
    %106 = vector.multi_reduction <maximumf>, %105, %cst_31 [1] : vector<16x8xf32> to vector<16xf32>
    %107 = vector.shape_cast %106 : vector<16xf32> to vector<16x1xf32>
    %108 = vector.broadcast %107 : vector<16x1xf32> to vector<16x8xf32>
    %109 = arith.subf %105, %108 : vector<16x8xf32>
    %110 = math.exp %109 : vector<16x8xf32>
    %cst_32 = arith.constant dense<0.000000e+00> : vector<16xf32>
    %111 = vector.multi_reduction <add>, %110, %cst_32 [1] : vector<16x8xf32> to vector<16xf32>
    %112 = vector.shape_cast %111 : vector<16xf32> to vector<16x1xf32>
    %113 = tpu.reciprocal %112 {approx = true} : vector<16x1xf32> -> vector<16x1xf32>
    %114 = vector.broadcast %113 : vector<16x1xf32> to vector<16x8xf32>
    %115 = arith.mulf %110, %114 : vector<16x8xf32>
    %c0_33 = arith.constant 0 : index
    %c0_34 = arith.constant 0 : index
    %116 = vector.load %arg4[%c0_33, %c0_34] : memref<1x8xf32, #tpu.memory_space<vmem>>, vector<1x8xf32>
    %cst_35 = arith.constant 0.699999988 : f32
    %117 = vector.broadcast %cst_35 : f32 to vector<16x8xf32>
    %118 = arith.mulf %115, %117 : vector<16x8xf32>
    %cst_36 = arith.constant 3.000000e-01 : f32
    %119 = vector.broadcast %cst_36 : f32 to vector<1x8xf32>
    %120 = arith.mulf %116, %119 : vector<1x8xf32>
    %121 = vector.broadcast %120 : vector<1x8xf32> to vector<16x8xf32>
    %122 = arith.addf %118, %121 : vector<16x8xf32>
    %c0_37 = arith.constant 0 : index
    %c0_38 = arith.constant 0 : index
    %123 = vector.load %arg9[%c0_37, %c0_38] : memref<16x8xf32, #tpu.memory_space<vmem>>, vector<16x8xf32>
    tpu.vector_store %arg9[%c0_37, %c0_38], %122 {strides = array<i32>} : memref<16x8xf32, #tpu.memory_space<vmem>>, vector<16x8xf32>,
    return
  }
}

</mosaic_0001>

<llo_original>
// kernel: tpu_custom_call.1
$region0: #{tpu_custom_call.1}
  #allocation0 [shape = 'u32[]', space=smem, size = 0x4, offset = 0x4, fixed_abs, tag = 'smem constant byte address 0x4 - core index']
  #allocation1 [shape = 'u32[144,128]{1,0:T(1,128)}', space=vmem, size = 0x12000, scoped, tag = 'internal scratch']
  %s0 = inlined_call_operand.vmem [shape: bf16[16,8,16], index: 0, kind: input, shape index: {}]
  %s1 = inlined_call_operand.vmem [shape: bf16[16,8,8], index: 1, kind: input, shape index: {}]
  %s2 = inlined_call_operand.vmem [shape: bf16[16,32], index: 2, kind: input, shape index: {}]
  %s3 = inlined_call_operand.vmem [shape: bf16[16,32], index: 3, kind: input, shape index: {}]
  %s4 = inlined_call_operand.vmem [shape: f32[1,8], index: 4, kind: input, shape index: {}]
  %s5 = inlined_call_operand.vmem [shape: bf16[32,32], index: 5, kind: input, shape index: {}]
  %s6 = inlined_call_operand.vmem [shape: f32[1,32], index: 6, kind: input, shape index: {}]
  %s7 = inlined_call_operand.vmem [shape: bf16[32,8], index: 7, kind: input, shape index: {}]
  %s8 = inlined_call_operand.vmem [shape: f32[1,8], index: 8, kind: input, shape index: {}]
  %s9 = inlined_call_operand.vmem [shape: f32[16,8], index: 9, kind: output, shape index: {}]
  %s10 = sld [smem:[#allocation0]]
  $region46: #{tpu_custom_call.1} parent=0
    _
  %s12 = ssub.s32 1, %s10
  %s13 = scalar_select 0, %s12, %s10
  // Predicated region
  $region2: #{tpu_custom_call.1} parent=0 // pred_check
    _
  $region3: #{tpu_custom_call.1} parent=0 // pred_check_branch
    %15 = sbr.rel (0) target = $region5
  $region4: #{tpu_custom_call.1} parent=0 // pred_region
    _
  $region5: #{tpu_custom_call.1} parent=0 // pred_fallthru
    _
  // Predicated region
  $region6: #{tpu_custom_call.1} parent=0 // pred_check
    _
  $region7: #{tpu_custom_call.1} parent=0 // pred_check_branch
    %17 = sbr.rel (0) target = $region9
  $region8: #{tpu_custom_call.1} parent=0 // pred_region
    _
  $region9: #{tpu_custom_call.1} parent=0 // pred_fallthru
    _
  // Predicated region
  $region10: #{tpu_custom_call.1} parent=0 // pred_check
    _
  $region11: #{tpu_custom_call.1} parent=0 // pred_check_branch
    %19 = sbr.rel (0) target = $region13
  $region12: #{tpu_custom_call.1} parent=0 // pred_region
    _
  $region13: #{tpu_custom_call.1} parent=0 // pred_fallthru
    _
  // Predicated region
  $region14: #{tpu_custom_call.1} parent=0 // pred_check
    _
  $region15: #{tpu_custom_call.1} parent=0 // pred_check_branch
    %21 = sbr.rel (0) target = $region17
  $region16: #{tpu_custom_call.1} parent=0 // pred_region
    _
  $region17: #{tpu_custom_call.1} parent=0 // pred_fallthru
    _
  // Predicated region
  $region18: #{tpu_custom_call.1} parent=0 // pred_check
    _
  $region19: #{tpu_custom_call.1} parent=0 // pred_check_branch
    %23 = sbr.rel (0) target = $region21
  $region20: #{tpu_custom_call.1} parent=0 // pred_region
    _
  $region21: #{tpu_custom_call.1} parent=0 // pred_fallthru
    _
  // Predicated region
  $region22: #{tpu_custom_call.1} parent=0 // pred_check
    _
  $region23: #{tpu_custom_call.1} parent=0 // pred_check_branch
    %25 = sbr.rel (0) target = $region25
  $region24: #{tpu_custom_call.1} parent=0 // pred_region
    _
  $region25: #{tpu_custom_call.1} parent=0 // pred_fallthru
    _
  // Predicated region
  $region26: #{tpu_custom_call.1} parent=0 // pred_check
    _
  $region27: #{tpu_custom_call.1} parent=0 // pred_check_branch
    %27 = sbr.rel (0) target = $region29
  $region28: #{tpu_custom_call.1} parent=0 // pred_region
    _
  $region29: #{tpu_custom_call.1} parent=0 // pred_fallthru
    _
  // Predicated region
  $region30: #{tpu_custom_call.1} parent=0 // pred_check
    _
  $region31: #{tpu_custom_call.1} parent=0 // pred_check_branch
    %29 = sbr.rel (0) target = $region33
  $region32: #{tpu_custom_call.1} parent=0 // pred_region
    _
  $region33: #{tpu_custom_call.1} parent=0 // pred_fallthru
    _
  // Predicated region
  $region34: #{tpu_custom_call.1} parent=0 // pred_check
    _
  $region35: #{tpu_custom_call.1} parent=0 // pred_check_branch
    %31 = sbr.rel (0) target = $region37
  $region36: #{tpu_custom_call.1} parent=0 // pred_region
    _
  $region37: #{tpu_custom_call.1} parent=0 // pred_fallthru
    _
  %v33 = vld [vmem:[%s0] sm:$0xf]
  %v34 = vld [vmem:[%s0 + $0x4] sm:$0xf]
  %v35 = vld [vmem:[%s0 + $0x8] sm:$0xf]
  %v36 = vld [vmem:[%s0 + $0xc] sm:$0xf]
  %v37 = vld [vmem:[%s0 + $0x10] sm:$0xf]
  %v38 = vld [vmem:[%s0 + $0x14] sm:$0xf]
  %v39 = vld [vmem:[%s0 + $0x18] sm:$0xf]
  %v40 = vld [vmem:[%s0 + $0x1c] sm:$0xf]
  %v41 = vld [vmem:[%s0 + $0x20] sm:$0xf]
  %v42 = vld [vmem:[%s0 + $0x24] sm:$0xf]
  %v43 = vld [vmem:[%s0 + $0x28] sm:$0xf]
  %v44 = vld [vmem:[%s0 + $0x2c] sm:$0xf]
  %v45 = vld [vmem:[%s0 + $0x30] sm:$0xf]
  %v46 = vld [vmem:[%s0 + $0x34] sm:$0xf]
  %v47 = vld [vmem:[%s0 + $0x38] sm:$0xf]
  %v48 = vld [vmem:[%s0 + $0x3c] sm:$0xf]
  %v49 = vld [vmem:[%s1] sm:$0xf]
  %v50 = vld [vmem:[%s1 + $0x4] sm:$0xf]
  %v51 = vld [vmem:[%s1 + $0x8] sm:$0xf]
  %v52 = vld [vmem:[%s1 + $0xc] sm:$0xf]
  %v53 = vld [vmem:[%s1 + $0x10] sm:$0xf]
  %v54 = vld [vmem:[%s1 + $0x14] sm:$0xf]
  %v55 = vld [vmem:[%s1 + $0x18] sm:$0xf]
  %v56 = vld [vmem:[%s1 + $0x1c] sm:$0xf]
  %v57 = vld [vmem:[%s1 + $0x20] sm:$0xf]
  %v58 = vld [vmem:[%s1 + $0x24] sm:$0xf]
  %v59 = vld [vmem:[%s1 + $0x28] sm:$0xf]
  %v60 = vld [vmem:[%s1 + $0x2c] sm:$0xf]
  %v61 = vld [vmem:[%s1 + $0x30] sm:$0xf]
  %v62 = vld [vmem:[%s1 + $0x34] sm:$0xf]
  %v63 = vld [vmem:[%s1 + $0x38] sm:$0xf]
  %v64 = vld [vmem:[%s1 + $0x3c] sm:$0xf]
  %v65 = vld [vmem:[%s2] sm:$0xf]
  %v66 = vld [vmem:[%s2 + $0x4] sm:$0xf]
  %v83 = vunpack.c.l.b16 %v33
  %v84 = vunpack.c.l.b16 %v34
  %v85 = vunpack.c.l.b16 %v35
  %v86 = vunpack.c.l.b16 %v36
  %v87 = vunpack.c.l.b16 %v37
  %v88 = vunpack.c.l.b16 %v38
  %v89 = vunpack.c.l.b16 %v39
  %v90 = vunpack.c.l.b16 %v40
  %v91 = vunpack.c.l.b16 %v41
  %v92 = vunpack.c.l.b16 %v42
  %v93 = vunpack.c.l.b16 %v43
  %v94 = vunpack.c.l.b16 %v44
  %v95 = vunpack.c.l.b16 %v45
  %v96 = vunpack.c.l.b16 %v46
  %v97 = vunpack.c.l.b16 %v47
  %v98 = vunpack.c.l.b16 %v48
  %v99 = vpack.c.b16 %v84, %v83
  %v100 = vpack.c.b16 %v86, %v85
  %v101 = vpack.c.b16 %v88, %v87
  %v102 = vpack.c.b16 %v90, %v89
  %v103 = vpack.c.b16 %v92, %v91
  %v104 = vpack.c.b16 %v94, %v93
  %v105 = vpack.c.b16 %v96, %v95
  %v106 = vpack.c.b16 %v98, %v97
  %v109 = vunpack.c.l.b16 %v65
  %v110 = vunpack.c.l.b16 %v66
  %v111 = vpack.c.b16 %v110, %v109
  %vm113 = vcmask 130048
  %v115 = vsel %vm113, %v99, 0
  %v118 = vsel %vm113, %v100, 0
  %v121 = vsel %vm113, %v101, 0
  %v124 = vsel %vm113, %v102, 0
  %v127 = vsel %vm113, %v103, 0
  %v130 = vsel %vm113, %v104, 0
  %v133 = vsel %vm113, %v105, 0
  %v136 = vsel %vm113, %v106, 0
  %138 = vmatprep.subr.bf16.mxu0 0
  %139 = vmatpush1.bf16.msra.mxu0 %v111
  %140 = vmatprep.subr.bf16.mxu0 0
  %141 = vmatpush1.bf16.msra.mxu0 0
  %142 = vmatprep.subr.bf16.mxu0 0
  %143 = vmatpush1.bf16.msra.mxu0 0
  %144 = vmatprep.subr.bf16.mxu0 0
  %145 = vmatpush1.bf16.msra.mxu0 0
  %146 = vmatprep.subr.bf16.mxu0 0
  %147 = vmatpush1.bf16.msra.mxu0 0
  %148 = vmatprep.subr.bf16.mxu0 0
  %149 = vmatpush1.bf16.msra.mxu0 0
  %150 = vmatprep.subr.bf16.mxu0 0
  %151 = vmatpush1.bf16.msra.mxu0 0
  %152 = vmatprep.subr.bf16.mxu0 0
  %153 = vmatpush1.bf16.msra.mxu0 0
  %154 = vmatprep.subr.bf16.mxu0 0
  %155 = vmatpush1.bf16.msra.mxu0 0
  %156 = vmatprep.subr.bf16.mxu0 0
  %157 = vmatpush1.bf16.msra.mxu0 0
  %158 = vmatprep.subr.bf16.mxu0 0
  %159 = vmatpush1.bf16.msra.mxu0 0
  %160 = vmatprep.subr.bf16.mxu0 0
  %161 = vmatpush1.bf16.msra.mxu0 0
  %162 = vmatprep.subr.bf16.mxu0 0
  %163 = vmatpush1.bf16.msra.mxu0 0
  %164 = vmatprep.subr.bf16.mxu0 0
  %165 = vmatpush1.bf16.msra.mxu0 0
  %166 = vmatprep.subr.bf16.mxu0 0
  %167 = vmatpush1.bf16.msra.mxu0 0
  %168 = vmatprep.subr.bf16.mxu0 0
  %169 = vmatpush1.bf16.msra.mxu0 0
  %170 = vmatprep.mubr.bf16.mxu0 0
  %171 = vmatmul.mubr.bf16.gmra.mrb[0].mxu0 %v115
  %v172 = vpop.f32.mrb[0].mxu0
  %v173 = vadd.f32 0.0, %v172
  %v174 = vpop.f32.mrb[0].mxu0
  %v175 = vpop.f32.mrb[0].mxu0
  %v176 = vadd.f32 0.0, %v175
  %v177 = vpop.f32.mrb[0].mxu0
  %178 = vmatprep.mubr.bf16.mxu0 0
  %179 = vmatmul.mubr.bf16.gmra.mrb[0].mxu0 %v118
  %v180 = vpop.f32.mrb[0].mxu0
  %v181 = vadd.f32 0.0, %v180
  %v182 = vpop.f32.mrb[0].mxu0
  %v183 = vpop.f32.mrb[0].mxu0
  %v184 = vadd.f32 0.0, %v183
  %v185 = vpop.f32.mrb[0].mxu0
  %186 = vmatprep.mubr.bf16.mxu0 0
  %187 = vmatmul.mubr.bf16.gmra.mrb[0].mxu0 %v121
  %v188 = vpop.f32.mrb[0].mxu0
  %v189 = vadd.f32 0.0, %v188
  %v190 = vpop.f32.mrb[0].mxu0
  %v191 = vpop.f32.mrb[0].mxu0
  %v192 = vadd.f32 0.0, %v191
  %v193 = vpop.f32.mrb[0].mxu0
  %194 = vmatprep.mubr.bf16.mxu0 0
  %195 = vmatmul.mubr.bf16.gmra.mrb[0].mxu0 %v124
  %v196 = vpop.f32.mrb[0].mxu0
  %v197 = vadd.f32 0.0, %v196
  %v198 = vpop.f32.mrb[0].mxu0
  %v199 = vpop.f32.mrb[0].mxu0
  %v200 = vadd.f32 0.0, %v199
  %v201 = vpop.f32.mrb[0].mxu0
  %202 = vmatprep.mubr.bf16.mxu0 0
  %203 = vmatmul.mubr.bf16.gmra.mrb[0].mxu0 %v127
  %v204 = vpop.f32.mrb[0].mxu0
  %v205 = vadd.f32 0.0, %v204
  %v206 = vpop.f32.mrb[0].mxu0
  %v207 = vpop.f32.mrb[0].mxu0
  %v208 = vadd.f32 0.0, %v207
  %v209 = vpop.f32.mrb[0].mxu0
  %210 = vmatprep.mubr.bf16.mxu0 0
  %211 = vmatmul.mubr.bf16.gmra.mrb[0].mxu0 %v130
  %v212 = vpop.f32.mrb[0].mxu0
  %v213 = vadd.f32 0.0, %v212
  %v214 = vpop.f32.mrb[0].mxu0
  %v215 = vpop.f32.mrb[0].mxu0
  %v216 = vadd.f32 0.0, %v215
  %v217 = vpop.f32.mrb[0].mxu0
  %218 = vmatprep.mubr.bf16.mxu0 0
  %219 = vmatmul.mubr.bf16.gmra.mrb[0].mxu0 %v133
  %v220 = vpop.f32.mrb[0].mxu0
  %v221 = vadd.f32 0.0, %v220
  %v222 = vpop.f32.mrb[0].mxu0
  %v223 = vpop.f32.mrb[0].mxu0
  %v224 = vadd.f32 0.0, %v223
  %v225 = vpop.f32.mrb[0].mxu0
  %226 = vmatprep.mubr.bf16.mxu0 0
  %227 = vmatmul.mubr.bf16.gmra.mrb[0].mxu0 %v136
  %v228 = vpop.f32.mrb[0].mxu0
  %v229 = vadd.f32 0.0, %v228
  %v230 = vpop.f32.mrb[0].mxu0
  %v231 = vpop.f32.mrb[0].mxu0
  %v232 = vadd.f32 0.0, %v231
  %v233 = vpop.f32.mrb[0].mxu0
  %234 = vdwg.mxu0
  %v235 = vunpack.c.l.bf16 %v49
  %v236 = vunpack.c.l.bf16 %v50
  %v237 = vunpack.c.l.bf16 %v51
  %v238 = vunpack.c.l.bf16 %v52
  %v239 = vunpack.c.l.bf16 %v53
  %v240 = vunpack.c.l.bf16 %v54
  %v241 = vunpack.c.l.bf16 %v55
  %v242 = vunpack.c.l.bf16 %v56
  %v243 = vunpack.c.l.bf16 %v57
  %v244 = vunpack.c.l.bf16 %v58
  %v245 = vunpack.c.l.bf16 %v59
  %v246 = vunpack.c.l.bf16 %v60
  %v247 = vunpack.c.l.bf16 %v61
  %v248 = vunpack.c.l.bf16 %v62
  %v249 = vunpack.c.l.bf16 %v63
  %v250 = vunpack.c.l.bf16 %v64
  %252 = vset.pattern.permute.xlu0 0
  %253 = vperm.xlu0 %252, %v235
  %v254 = vpop.permute.xlu0 %253
  %257 = vset.pattern.permute.xlu0 0
  %258 = vperm.xlu0 %257, %v236
  %v259 = vpop.permute.xlu0 %258
  %262 = vset.pattern.permute.xlu0 0
  %263 = vperm.xlu0 %262, %v237
  %v264 = vpop.permute.xlu0 %263
  %267 = vset.pattern.permute.xlu0 0
  %268 = vperm.xlu0 %267, %v238
  %v269 = vpop.permute.xlu0 %268
  %272 = vset.pattern.permute.xlu0 0
  %273 = vperm.xlu0 %272, %v239
  %v274 = vpop.permute.xlu0 %273
  %277 = vset.pattern.permute.xlu0 0
  %278 = vperm.xlu0 %277, %v240
  %v279 = vpop.permute.xlu0 %278
  %282 = vset.pattern.permute.xlu0 0
  %283 = vperm.xlu0 %282, %v241
  %v284 = vpop.permute.xlu0 %283
  %287 = vset.pattern.permute.xlu0 0
  %288 = vperm.xlu0 %287, %v242
  %v289 = vpop.permute.xlu0 %288
  %292 = vset.pattern.permute.xlu0 0
  %293 = vperm.xlu0 %292, %v243
  %v294 = vpop.permute.xlu0 %293
  %297 = vset.pattern.permute.xlu0 0
  %298 = vperm.xlu0 %297, %v244
  %v299 = vpop.permute.xlu0 %298
  %302 = vset.pattern.permute.xlu0 0
  %303 = vperm.xlu0 %302, %v245
  %v304 = vpop.permute.xlu0 %303
  %307 = vset.pattern.permute.xlu0 0
  %308 = vperm.xlu0 %307, %v246
  %v309 = vpop.permute.xlu0 %308
  %312 = vset.pattern.permute.xlu0 0
  %313 = vperm.xlu0 %312, %v247
  %v314 = vpop.permute.xlu0 %313
  %317 = vset.pattern.permute.xlu0 0
  %318 = vperm.xlu0 %317, %v248
  %v319 = vpop.permute.xlu0 %318
  %322 = vset.pattern.permute.xlu0 0
  %323 = vperm.xlu0 %322, %v249
  %v324 = vpop.permute.xlu0 %323
  %327 = vset.pattern.permute.xlu0 0
  %328 = vperm.xlu0 %327, %v250
  %v329 = vpop.permute.xlu0 %328
  %v331 = vlaneseq
  %v332 = vshrl.u32 %v331, 7
  %v333 = vsub.s32 0, %v332
  %v334 = vrot.slane %v173, %v333
  %v335 = vlaneseq
  %v336 = vshrl.u32 %v335, 7
  %v337 = vsub.s32 0, %v336
  %v338 = vrot.slane %v176, %v337
  %v339 = vlaneseq
  %v340 = vshrl.u32 %v339, 7
  %v341 = vsub.s32 0, %v340
  %v342 = vrot.slane %v181, %v341
  %v343 = vlaneseq
  %v344 = vshrl.u32 %v343, 7
  %v345 = vsub.s32 0, %v344
  %v346 = vrot.slane %v184, %v345
  %v347 = vlaneseq
  %v348 = vshrl.u32 %v347, 7
  %v349 = vsub.s32 0, %v348
  %v350 = vrot.slane %v189, %v349
  %v351 = vlaneseq
  %v352 = vshrl.u32 %v351, 7
  %v353 = vsub.s32 0, %v352
  %v354 = vrot.slane %v192, %v353
  %v355 = vlaneseq
  %v356 = vshrl.u32 %v355, 7
  %v357 = vsub.s32 0, %v356
  %v358 = vrot.slane %v197, %v357
  %v359 = vlaneseq
  %v360 = vshrl.u32 %v359, 7
  %v361 = vsub.s32 0, %v360
  %v362 = vrot.slane %v200, %v361
  %v363 = vlaneseq
  %v364 = vshrl.u32 %v363, 7
  %v365 = vsub.s32 0, %v364
  %v366 = vrot.slane %v205, %v365
  %v367 = vlaneseq
  %v368 = vshrl.u32 %v367, 7
  %v369 = vsub.s32 0, %v368
  %v370 = vrot.slane %v208, %v369
  %v371 = vlaneseq
  %v372 = vshrl.u32 %v371, 7
  %v373 = vsub.s32 0, %v372
  %v374 = vrot.slane %v213, %v373
  %v375 = vlaneseq
  %v376 = vshrl.u32 %v375, 7
  %v377 = vsub.s32 0, %v376
  %v378 = vrot.slane %v216, %v377
  %v379 = vlaneseq
  %v380 = vshrl.u32 %v379, 7
  %v381 = vsub.s32 0, %v380
  %v382 = vrot.slane %v221, %v381
  %v383 = vlaneseq
  %v384 = vshrl.u32 %v383, 7
  %v385 = vsub.s32 0, %v384
  %v386 = vrot.slane %v224, %v385
  %v387 = vlaneseq
  %v388 = vshrl.u32 %v387, 7
  %v389 = vsub.s32 0, %v388
  %v390 = vrot.slane %v229, %v389
  %v391 = vlaneseq
  %v392 = vshrl.u32 %v391, 7
  %v393 = vsub.s32 0, %v392
  %v394 = vrot.slane %v232, %v393
  %v395 = vmul.f32 %v254, %v334
  %v396 = vmul.f32 %v259, %v338
  %v397 = vmul.f32 %v264, %v342
  %v398 = vmul.f32 %v269, %v346
  %v399 = vmul.f32 %v274, %v350
  %v400 = vmul.f32 %v279, %v354
  %v401 = vmul.f32 %v284, %v358
  %v402 = vmul.f32 %v289, %v362
  %v403 = vmul.f32 %v294, %v366
  %v404 = vmul.f32 %v299, %v370
  %v405 = vmul.f32 %v304, %v374
  %v406 = vmul.f32 %v309, %v378
  %v407 = vmul.f32 %v314, %v382
  %v408 = vmul.f32 %v319, %v386
  %v409 = vmul.f32 %v324, %v390
  %v410 = vmul.f32 %v329, %v394
  %411 = vset.pattern.permute.xlu0 1
  %412 = vperm.xlu0 %411, %v235
  %v413 = vpop.permute.xlu0 %412
  %415 = vset.pattern.permute.xlu0 1
  %416 = vperm.xlu0 %415, %v236
  %v417 = vpop.permute.xlu0 %416
  %419 = vset.pattern.permute.xlu0 1
  %420 = vperm.xlu0 %419, %v237
  %v421 = vpop.permute.xlu0 %420
  %423 = vset.pattern.permute.xlu0 1
  %424 = vperm.xlu0 %423, %v238
  %v425 = vpop.permute.xlu0 %424
  %427 = vset.pattern.permute.xlu0 1
  %428 = vperm.xlu0 %427, %v239
  %v429 = vpop.permute.xlu0 %428
  %431 = vset.pattern.permute.xlu0 1
  %432 = vperm.xlu0 %431, %v240
  %v433 = vpop.permute.xlu0 %432
  %435 = vset.pattern.permute.xlu0 1
  %436 = vperm.xlu0 %435, %v241
  %v437 = vpop.permute.xlu0 %436
  %439 = vset.pattern.permute.xlu0 1
  %440 = vperm.xlu0 %439, %v242
  %v441 = vpop.permute.xlu0 %440
  %443 = vset.pattern.permute.xlu0 1
  %444 = vperm.xlu0 %443, %v243
  %v445 = vpop.permute.xlu0 %444
  %447 = vset.pattern.permute.xlu0 1
  %448 = vperm.xlu0 %447, %v244
  %v449 = vpop.permute.xlu0 %448
  %451 = vset.pattern.permute.xlu0 1
  %452 = vperm.xlu0 %451, %v245
  %v453 = vpop.permute.xlu0 %452
  %455 = vset.pattern.permute.xlu0 1
  %456 = vperm.xlu0 %455, %v246
  %v457 = vpop.permute.xlu0 %456
  %459 = vset.pattern.permute.xlu0 1
  %460 = vperm.xlu0 %459, %v247
  %v461 = vpop.permute.xlu0 %460
  %463 = vset.pattern.permute.xlu0 1
  %464 = vperm.xlu0 %463, %v248
  %v465 = vpop.permute.xlu0 %464
  %467 = vset.pattern.permute.xlu0 1
  %468 = vperm.xlu0 %467, %v249
  %v469 = vpop.permute.xlu0 %468
  %471 = vset.pattern.permute.xlu0 1
  %472 = vperm.xlu0 %471, %v250
  %v473 = vpop.permute.xlu0 %472
  %v475 = vlaneseq
  %v476 = vshrl.u32 %v475, 7
  %v477 = vsub.s32 1, %v476
  %v478 = vrot.slane %v173, %v477
  %v479 = vlaneseq
  %v480 = vshrl.u32 %v479, 7
  %v481 = vsub.s32 1, %v480
  %v482 = vrot.slane %v176, %v481
  %v483 = vlaneseq
  %v484 = vshrl.u32 %v483, 7
  %v485 = vsub.s32 1, %v484
  %v486 = vrot.slane %v181, %v485
  %v487 = vlaneseq
  %v488 = vshrl.u32 %v487, 7
  %v489 = vsub.s32 1, %v488
  %v490 = vrot.slane %v184, %v489
  %v491 = vlaneseq
  %v492 = vshrl.u32 %v491, 7
  %v493 = vsub.s32 1, %v492
  %v494 = vrot.slane %v189, %v493
  %v495 = vlaneseq
  %v496 = vshrl.u32 %v495, 7
  %v497 = vsub.s32 1, %v496
  %v498 = vrot.slane %v192, %v497
  %v499 = vlaneseq
  %v500 = vshrl.u32 %v499, 7
  %v501 = vsub.s32 1, %v500
  %v502 = vrot.slane %v197, %v501
  %v503 = vlaneseq
  %v504 = vshrl.u32 %v503, 7
  %v505 = vsub.s32 1, %v504
  %v506 = vrot.slane %v200, %v505
  %v507 = vlaneseq
  %v508 = vshrl.u32 %v507, 7
  %v509 = vsub.s32 1, %v508
  %v510 = vrot.slane %v205, %v509
  %v511 = vlaneseq
  %v512 = vshrl.u32 %v511, 7
  %v513 = vsub.s32 1, %v512
  %v514 = vrot.slane %v208, %v513
  %v515 = vlaneseq
  %v516 = vshrl.u32 %v515, 7
  %v517 = vsub.s32 1, %v516
  %v518 = vrot.slane %v213, %v517
  %v519 = vlaneseq
  %v520 = vshrl.u32 %v519, 7
  %v521 = vsub.s32 1, %v520
  %v522 = vrot.slane %v216, %v521
  %v523 = vlaneseq
  %v524 = vshrl.u32 %v523, 7
  %v525 = vsub.s32 1, %v524
  %v526 = vrot.slane %v221, %v525
  %v527 = vlaneseq
  %v528 = vshrl.u32 %v527, 7
  %v529 = vsub.s32 1, %v528
  %v530 = vrot.slane %v224, %v529
  %v531 = vlaneseq
  %v532 = vshrl.u32 %v531, 7
  %v533 = vsub.s32 1, %v532
  %v534 = vrot.slane %v229, %v533
  %v535 = vlaneseq
  %v536 = vshrl.u32 %v535, 7
  %v537 = vsub.s32 1, %v536
  %v538 = vrot.slane %v232, %v537
  %v539 = vmul.f32 %v413, %v478
  %v540 = vmul.f32 %v417, %v482
  %v541 = vmul.f32 %v421, %v486
  %v542 = vmul.f32 %v425, %v490
  %v543 = vmul.f32 %v429, %v494
  %v544 = vmul.f32 %v433, %v498
  %v545 = vmul.f32 %v437, %v502
  %v546 = vmul.f32 %v441, %v506
  %v547 = vmul.f32 %v445, %v510
  %v548 = vmul.f32 %v449, %v514
  %v549 = vmul.f32 %v453, %v518
  %v550 = vmul.f32 %v457, %v522
  %v551 = vmul.f32 %v461, %v526
  %v552 = vmul.f32 %v465, %v530
  %v553 = vmul.f32 %v469, %v534
  %v554 = vmul.f32 %v473, %v538
  %v555 = vadd.f32 %v395, %v539
  %v556 = vadd.f32 %v396, %v540
  %v557 = vadd.f32 %v397, %v541
  %v558 = vadd.f32 %v398, %v542
  %v559 = vadd.f32 %v399, %v543
  %v560 = vadd.f32 %v400, %v544
  %v561 = vadd.f32 %v401, %v545
  %v562 = vadd.f32 %v402, %v546
  %v563 = vadd.f32 %v403, %v547
  %v564 = vadd.f32 %v404, %v548
  %v565 = vadd.f32 %v405, %v549
  %v566 = vadd.f32 %v406, %v550
  %v567 = vadd.f32 %v407, %v551
  %v568 = vadd.f32 %v408, %v552
  %v569 = vadd.f32 %v409, %v553
  %v570 = vadd.f32 %v410, %v554
  %571 = vset.pattern.permute.xlu0 2
  %572 = vperm.xlu0 %571, %v235
  %v573 = vpop.permute.xlu0 %572
  %575 = vset.pattern.permute.xlu0 2
  %576 = vperm.xlu0 %575, %v236
  %v577 = vpop.permute.xlu0 %576
  %579 = vset.pattern.permute.xlu0 2
  %580 = vperm.xlu0 %579, %v237
  %v581 = vpop.permute.xlu0 %580
  %583 = vset.pattern.permute.xlu0 2
  %584 = vperm.xlu0 %583, %v238
  %v585 = vpop.permute.xlu0 %584
  %587 = vset.pattern.permute.xlu0 2
  %588 = vperm.xlu0 %587, %v239
  %v589 = vpop.permute.xlu0 %588
  %591 = vset.pattern.permute.xlu0 2
  %592 = vperm.xlu0 %591, %v240
  %v593 = vpop.permute.xlu0 %592
  %595 = vset.pattern.permute.xlu0 2
  %596 = vperm.xlu0 %595, %v241
  %v597 = vpop.permute.xlu0 %596
  %599 = vset.pattern.permute.xlu0 2
  %600 = vperm.xlu0 %599, %v242
  %v601 = vpop.permute.xlu0 %600
  %603 = vset.pattern.permute.xlu0 2
  %604 = vperm.xlu0 %603, %v243
  %v605 = vpop.permute.xlu0 %604
  %607 = vset.pattern.permute.xlu0 2
  %608 = vperm.xlu0 %607, %v244
  %v609 = vpop.permute.xlu0 %608
  %611 = vset.pattern.permute.xlu0 2
  %612 = vperm.xlu0 %611, %v245
  %v613 = vpop.permute.xlu0 %612
  %615 = vset.pattern.permute.xlu0 2
  %616 = vperm.xlu0 %615, %v246
  %v617 = vpop.permute.xlu0 %616
  %619 = vset.pattern.permute.xlu0 2
  %620 = vperm.xlu0 %619, %v247
  %v621 = vpop.permute.xlu0 %620
  %623 = vset.pattern.permute.xlu0 2
  %624 = vperm.xlu0 %623, %v248
  %v625 = vpop.permute.xlu0 %624
  %627 = vset.pattern.permute.xlu0 2
  %628 = vperm.xlu0 %627, %v249
  %v629 = vpop.permute.xlu0 %628
  %631 = vset.pattern.permute.xlu0 2
  %632 = vperm.xlu0 %631, %v250
  %v633 = vpop.permute.xlu0 %632
  %v635 = vlaneseq
  %v636 = vshrl.u32 %v635, 7
  %v637 = vsub.s32 2, %v636
  %v638 = vrot.slane %v173, %v637
  %v639 = vlaneseq
  %v640 = vshrl.u32 %v639, 7
  %v641 = vsub.s32 2, %v640
  %v642 = vrot.slane %v176, %v641
  %v643 = vlaneseq
  %v644 = vshrl.u32 %v643, 7
  %v645 = vsub.s32 2, %v644
  %v646 = vrot.slane %v181, %v645
  %v647 = vlaneseq
  %v648 = vshrl.u32 %v647, 7
  %v649 = vsub.s32 2, %v648
  %v650 = vrot.slane %v184, %v649
  %v651 = vlaneseq
  %v652 = vshrl.u32 %v651, 7
  %v653 = vsub.s32 2, %v652
  %v654 = vrot.slane %v189, %v653
  %v655 = vlaneseq
  %v656 = vshrl.u32 %v655, 7
  %v657 = vsub.s32 2, %v656
  %v658 = vrot.slane %v192, %v657
  %v659 = vlaneseq
  %v660 = vshrl.u32 %v659, 7
  %v661 = vsub.s32 2, %v660
  %v662 = vrot.slane %v197, %v661
  %v663 = vlaneseq
  %v664 = vshrl.u32 %v663, 7
  %v665 = vsub.s32 2, %v664
  %v666 = vrot.slane %v200, %v665
  %v667 = vlaneseq
  %v668 = vshrl.u32 %v667, 7
  %v669 = vsub.s32 2, %v668
  %v670 = vrot.slane %v205, %v669
  %v671 = vlaneseq
  %v672 = vshrl.u32 %v671, 7
  %v673 = vsub.s32 2, %v672
  %v674 = vrot.slane %v208, %v673
  %v675 = vlaneseq
  %v676 = vshrl.u32 %v675, 7
  %v677 = vsub.s32 2, %v676
  %v678 = vrot.slane %v213, %v677
  %v679 = vlaneseq
  %v680 = vshrl.u32 %v679, 7
  %v681 = vsub.s32 2, %v680
  %v682 = vrot.slane %v216, %v681
  %v683 = vlaneseq
  %v684 = vshrl.u32 %v683, 7
  %v685 = vsub.s32 2, %v684
  %v686 = vrot.slane %v221, %v685
  %v687 = vlaneseq
  %v688 = vshrl.u32 %v687, 7
  %v689 = vsub.s32 2, %v688
  %v690 = vrot.slane %v224, %v689
  %v691 = vlaneseq
  %v692 = vshrl.u32 %v691, 7
  %v693 = vsub.s32 2, %v692
  %v694 = vrot.slane %v229, %v693
  %v695 = vlaneseq
  %v696 = vshrl.u32 %v695, 7
  %v697 = vsub.s32 2, %v696
  %v698 = vrot.slane %v232, %v697
  %v699 = vmul.f32 %v573, %v638
  %v700 = vmul.f32 %v577, %v642
  %v701 = vmul.f32 %v581, %v646
  %v702 = vmul.f32 %v585, %v650
  %v703 = vmul.f32 %v589, %v654
  %v704 = vmul.f32 %v593, %v658
  %v705 = vmul.f32 %v597, %v662
  %v706 = vmul.f32 %v601, %v666
  %v707 = vmul.f32 %v605, %v670
  %v708 = vmul.f32 %v609, %v674
  %v709 = vmul.f32 %v613, %v678
  %v710 = vmul.f32 %v617, %v682
  %v711 = vmul.f32 %v621, %v686
  %v712 = vmul.f32 %v625, %v690
  %v713 = vmul.f32 %v629, %v694
  %v714 = vmul.f32 %v633, %v698
  %v715 = vadd.f32 %v555, %v699
  %v716 = vadd.f32 %v556, %v700
  %v717 = vadd.f32 %v557, %v701
  %v718 = vadd.f32 %v558, %v702
  %v719 = vadd.f32 %v559, %v703
  %v720 = vadd.f32 %v560, %v704
  %v721 = vadd.f32 %v561, %v705
  %v722 = vadd.f32 %v562, %v706
  %v723 = vadd.f32 %v563, %v707
  %v724 = vadd.f32 %v564, %v708
  %v725 = vadd.f32 %v565, %v709
  %v726 = vadd.f32 %v566, %v710
  %v727 = vadd.f32 %v567, %v711
  %v728 = vadd.f32 %v568, %v712
  %v729 = vadd.f32 %v569, %v713
  %v730 = vadd.f32 %v570, %v714
  %731 = vset.pattern.permute.xlu0 3
  %732 = vperm.xlu0 %731, %v235
  %v733 = vpop.permute.xlu0 %732
  %735 = vset.pattern.permute.xlu0 3
  %736 = vperm.xlu0 %735, %v236
  %v737 = vpop.permute.xlu0 %736
  %739 = vset.pattern.permute.xlu0 3
  %740 = vperm.xlu0 %739, %v237
  %v741 = vpop.permute.xlu0 %740
  %743 = vset.pattern.permute.xlu0 3
  %744 = vperm.xlu0 %743, %v238
  %v745 = vpop.permute.xlu0 %744
  %747 = vset.pattern.permute.xlu0 3
  %748 = vperm.xlu0 %747, %v239
  %v749 = vpop.permute.xlu0 %748
  %751 = vset.pattern.permute.xlu0 3
  %752 = vperm.xlu0 %751, %v240
  %v753 = vpop.permute.xlu0 %752
  %755 = vset.pattern.permute.xlu0 3
  %756 = vperm.xlu0 %755, %v241
  %v757 = vpop.permute.xlu0 %756
  %759 = vset.pattern.permute.xlu0 3
  %760 = vperm.xlu0 %759, %v242
  %v761 = vpop.permute.xlu0 %760
  %763 = vset.pattern.permute.xlu0 3
  %764 = vperm.xlu0 %763, %v243
  %v765 = vpop.permute.xlu0 %764
  %767 = vset.pattern.permute.xlu0 3
  %768 = vperm.xlu0 %767, %v244
  %v769 = vpop.permute.xlu0 %768
  %771 = vset.pattern.permute.xlu0 3
  %772 = vperm.xlu0 %771, %v245
  %v773 = vpop.permute.xlu0 %772
  %775 = vset.pattern.permute.xlu0 3
  %776 = vperm.xlu0 %775, %v246
  %v777 = vpop.permute.xlu0 %776
  %779 = vset.pattern.permute.xlu0 3
  %780 = vperm.xlu0 %779, %v247
  %v781 = vpop.permute.xlu0 %780
  %783 = vset.pattern.permute.xlu0 3
  %784 = vperm.xlu0 %783, %v248
  %v785 = vpop.permute.xlu0 %784
  %787 = vset.pattern.permute.xlu0 3
  %788 = vperm.xlu0 %787, %v249
  %v789 = vpop.permute.xlu0 %788
  %791 = vset.pattern.permute.xlu0 3
  %792 = vperm.xlu0 %791, %v250
  %v793 = vpop.permute.xlu0 %792
  %v795 = vlaneseq
  %v796 = vshrl.u32 %v795, 7
  %v797 = vsub.s32 3, %v796
  %v798 = vrot.slane %v173, %v797
  %v799 = vlaneseq
  %v800 = vshrl.u32 %v799, 7
  %v801 = vsub.s32 3, %v800
  %v802 = vrot.slane %v176, %v801
  %v803 = vlaneseq
  %v804 = vshrl.u32 %v803, 7
  %v805 = vsub.s32 3, %v804
  %v806 = vrot.slane %v181, %v805
  %v807 = vlaneseq
  %v808 = vshrl.u32 %v807, 7
  %v809 = vsub.s32 3, %v808
  %v810 = vrot.slane %v184, %v809
  %v811 = vlaneseq
  %v812 = vshrl.u32 %v811, 7
  %v813 = vsub.s32 3, %v812
  %v814 = vrot.slane %v189, %v813
  %v815 = vlaneseq
  %v816 = vshrl.u32 %v815, 7
  %v817 = vsub.s32 3, %v816
  %v818 = vrot.slane %v192, %v817
  %v819 = vlaneseq
  %v820 = vshrl.u32 %v819, 7
  %v821 = vsub.s32 3, %v820
  %v822 = vrot.slane %v197, %v821
  %v823 = vlaneseq
  %v824 = vshrl.u32 %v823, 7
  %v825 = vsub.s32 3, %v824
  %v826 = vrot.slane %v200, %v825
  %v827 = vlaneseq
  %v828 = vshrl.u32 %v827, 7
  %v829 = vsub.s32 3, %v828
  %v830 = vrot.slane %v205, %v829
  %v831 = vlaneseq
  %v832 = vshrl.u32 %v831, 7
  %v833 = vsub.s32 3, %v832
  %v834 = vrot.slane %v208, %v833
  %v835 = vlaneseq
  %v836 = vshrl.u32 %v835, 7
  %v837 = vsub.s32 3, %v836
  %v838 = vrot.slane %v213, %v837
  %v839 = vlaneseq
  %v840 = vshrl.u32 %v839, 7
  %v841 = vsub.s32 3, %v840
  %v842 = vrot.slane %v216, %v841
  %v843 = vlaneseq
  %v844 = vshrl.u32 %v843, 7
  %v845 = vsub.s32 3, %v844
  %v846 = vrot.slane %v221, %v845
  %v847 = vlaneseq
  %v848 = vshrl.u32 %v847, 7
  %v849 = vsub.s32 3, %v848
  %v850 = vrot.slane %v224, %v849
  %v851 = vlaneseq
  %v852 = vshrl.u32 %v851, 7
  %v853 = vsub.s32 3, %v852
  %v854 = vrot.slane %v229, %v853
  %v855 = vlaneseq
  %v856 = vshrl.u32 %v855, 7
  %v857 = vsub.s32 3, %v856
  %v858 = vrot.slane %v232, %v857
  %v859 = vmul.f32 %v733, %v798
  %v860 = vmul.f32 %v737, %v802
  %v861 = vmul.f32 %v741, %v806
  %v862 = vmul.f32 %v745, %v810
  %v863 = vmul.f32 %v749, %v814
  %v864 = vmul.f32 %v753, %v818
  %v865 = vmul.f32 %v757, %v822
  %v866 = vmul.f32 %v761, %v826
  %v867 = vmul.f32 %v765, %v830
  %v868 = vmul.f32 %v769, %v834
  %v869 = vmul.f32 %v773, %v838
  %v870 = vmul.f32 %v777, %v842
  %v871 = vmul.f32 %v781, %v846
  %v872 = vmul.f32 %v785, %v850
  %v873 = vmul.f32 %v789, %v854
  %v874 = vmul.f32 %v793, %v858
  %v875 = vadd.f32 %v715, %v859
  %v876 = vadd.f32 %v716, %v860
  %v877 = vadd.f32 %v717, %v861
  %v878 = vadd.f32 %v718, %v862
  %v879 = vadd.f32 %v719, %v863
  %v880 = vadd.f32 %v720, %v864
  %v881 = vadd.f32 %v721, %v865
  %v882 = vadd.f32 %v722, %v866
  %v883 = vadd.f32 %v723, %v867
  %v884 = vadd.f32 %v724, %v868
  %v885 = vadd.f32 %v725, %v869
  %v886 = vadd.f32 %v726, %v870
  %v887 = vadd.f32 %v727, %v871
  %v888 = vadd.f32 %v728, %v872
  %v889 = vadd.f32 %v729, %v873
  %v890 = vadd.f32 %v730, %v874
  %891 = vset.pattern.permute.xlu0 4
  %892 = vperm.xlu0 %891, %v235
  %v893 = vpop.permute.xlu0 %892
  %895 = vset.pattern.permute.xlu0 4
  %896 = vperm.xlu0 %895, %v236
  %v897 = vpop.permute.xlu0 %896
  %899 = vset.pattern.permute.xlu0 4
  %900 = vperm.xlu0 %899, %v237
  %v901 = vpop.permute.xlu0 %900
  %903 = vset.pattern.permute.xlu0 4
  %904 = vperm.xlu0 %903, %v238
  %v905 = vpop.permute.xlu0 %904
  %907 = vset.pattern.permute.xlu0 4
  %908 = vperm.xlu0 %907, %v239
  %v909 = vpop.permute.xlu0 %908
  %911 = vset.pattern.permute.xlu0 4
  %912 = vperm.xlu0 %911, %v240
  %v913 = vpop.permute.xlu0 %912
  %915 = vset.pattern.permute.xlu0 4
  %916 = vperm.xlu0 %915, %v241
  %v917 = vpop.permute.xlu0 %916
  %919 = vset.pattern.permute.xlu0 4
  %920 = vperm.xlu0 %919, %v242
  %v921 = vpop.permute.xlu0 %920
  %923 = vset.pattern.permute.xlu0 4
  %924 = vperm.xlu0 %923, %v243
  %v925 = vpop.permute.xlu0 %924
  %927 = vset.pattern.permute.xlu0 4
  %928 = vperm.xlu0 %927, %v244
  %v929 = vpop.permute.xlu0 %928
  %931 = vset.pattern.permute.xlu0 4
  %932 = vperm.xlu0 %931, %v245
  %v933 = vpop.permute.xlu0 %932
  %935 = vset.pattern.permute.xlu0 4
  %936 = vperm.xlu0 %935, %v246
  %v937 = vpop.permute.xlu0 %936
  %939 = vset.pattern.permute.xlu0 4
  %940 = vperm.xlu0 %939, %v247
  %v941 = vpop.permute.xlu0 %940
  %943 = vset.pattern.permute.xlu0 4
  %944 = vperm.xlu0 %943, %v248
  %v945 = vpop.permute.xlu0 %944
  %947 = vset.pattern.permute.xlu0 4
  %948 = vperm.xlu0 %947, %v249
  %v949 = vpop.permute.xlu0 %948
  %951 = vset.pattern.permute.xlu0 4
  %952 = vperm.xlu0 %951, %v250
  %v953 = vpop.permute.xlu0 %952
  %v955 = vlaneseq
  %v956 = vshrl.u32 %v955, 7
  %v957 = vsub.s32 4, %v956
  %v958 = vrot.slane %v173, %v957
  %v959 = vlaneseq
  %v960 = vshrl.u32 %v959, 7
  %v961 = vsub.s32 4, %v960
  %v962 = vrot.slane %v176, %v961
  %v963 = vlaneseq
  %v964 = vshrl.u32 %v963, 7
  %v965 = vsub.s32 4, %v964
  %v966 = vrot.slane %v181, %v965
  %v967 = vlaneseq
  %v968 = vshrl.u32 %v967, 7
  %v969 = vsub.s32 4, %v968
  %v970 = vrot.slane %v184, %v969
  %v971 = vlaneseq
  %v972 = vshrl.u32 %v971, 7
  %v973 = vsub.s32 4, %v972
  %v974 = vrot.slane %v189, %v973
  %v975 = vlaneseq
  %v976 = vshrl.u32 %v975, 7
  %v977 = vsub.s32 4, %v976
  %v978 = vrot.slane %v192, %v977
  %v979 = vlaneseq
  %v980 = vshrl.u32 %v979, 7
  %v981 = vsub.s32 4, %v980
  %v982 = vrot.slane %v197, %v981
  %v983 = vlaneseq
  %v984 = vshrl.u32 %v983, 7
  %v985 = vsub.s32 4, %v984
  %v986 = vrot.slane %v200, %v985
  %v987 = vlaneseq
  %v988 = vshrl.u32 %v987, 7
  %v989 = vsub.s32 4, %v988
  %v990 = vrot.slane %v205, %v989
  %v991 = vlaneseq
  %v992 = vshrl.u32 %v991, 7
  %v993 = vsub.s32 4, %v992
  %v994 = vrot.slane %v208, %v993
  %v995 = vlaneseq
  %v996 = vshrl.u32 %v995, 7
  %v997 = vsub.s32 4, %v996
  %v998 = vrot.slane %v213, %v997
  %v999 = vlaneseq
  %v1000 = vshrl.u32 %v999, 7
  %v1001 = vsub.s32 4, %v1000
  %v1002 = vrot.slane %v216, %v1001
  %v1003 = vlaneseq
  %v1004 = vshrl.u32 %v1003, 7
  %v1005 = vsub.s32 4, %v1004
  %v1006 = vrot.slane %v221, %v1005
  %v1007 = vlaneseq
  %v1008 = vshrl.u32 %v1007, 7
  %v1009 = vsub.s32 4, %v1008
  %v1010 = vrot.slane %v224, %v1009
  %v1011 = vlaneseq
  %v1012 = vshrl.u32 %v1011, 7
  %v1013 = vsub.s32 4, %v1012
  %v1014 = vrot.slane %v229, %v1013
  %v1015 = vlaneseq
  %v1016 = vshrl.u32 %v1015, 7
  %v1017 = vsub.s32 4, %v1016
  %v1018 = vrot.slane %v232, %v1017
  %v1019 = vmul.f32 %v893, %v958
  %v1020 = vmul.f32 %v897, %v962
  %v1021 = vmul.f32 %v901, %v966
  %v1022 = vmul.f32 %v905, %v970
  %v1023 = vmul.f32 %v909, %v974
  %v1024 = vmul.f32 %v913, %v978
  %v1025 = vmul.f32 %v917, %v982
  %v1026 = vmul.f32 %v921, %v986
  %v1027 = vmul.f32 %v925, %v990
  %v1028 = vmul.f32 %v929, %v994
  %v1029 = vmul.f32 %v933, %v998
  %v1030 = vmul.f32 %v937, %v1002
  %v1031 = vmul.f32 %v941, %v1006
  %v1032 = vmul.f32 %v945, %v1010
  %v1033 = vmul.f32 %v949, %v1014
  %v1034 = vmul.f32 %v953, %v1018
  %v1035 = vadd.f32 %v875, %v1019
  %v1036 = vadd.f32 %v876, %v1020
  %v1037 = vadd.f32 %v877, %v1021
  %v1038 = vadd.f32 %v878, %v1022
  %v1039 = vadd.f32 %v879, %v1023
  %v1040 = vadd.f32 %v880, %v1024
  %v1041 = vadd.f32 %v881, %v1025
  %v1042 = vadd.f32 %v882, %v1026
  %v1043 = vadd.f32 %v883, %v1027
  %v1044 = vadd.f32 %v884, %v1028
  %v1045 = vadd.f32 %v885, %v1029
  %v1046 = vadd.f32 %v886, %v1030
  %v1047 = vadd.f32 %v887, %v1031
  %v1048 = vadd.f32 %v888, %v1032
  %v1049 = vadd.f32 %v889, %v1033
  %v1050 = vadd.f32 %v890, %v1034
  %1051 = vset.pattern.permute.xlu0 5
  %1052 = vperm.xlu0 %1051, %v235
  %v1053 = vpop.permute.xlu0 %1052
  %1055 = vset.pattern.permute.xlu0 5
  %1056 = vperm.xlu0 %1055, %v236
  %v1057 = vpop.permute.xlu0 %1056
  %1059 = vset.pattern.permute.xlu0 5
  %1060 = vperm.xlu0 %1059, %v237
  %v1061 = vpop.permute.xlu0 %1060
  %1063 = vset.pattern.permute.xlu0 5
  %1064 = vperm.xlu0 %1063, %v238
  %v1065 = vpop.permute.xlu0 %1064
  %1067 = vset.pattern.permute.xlu0 5
  %1068 = vperm.xlu0 %1067, %v239
  %v1069 = vpop.permute.xlu0 %1068
  %1071 = vset.pattern.permute.xlu0 5
  %1072 = vperm.xlu0 %1071, %v240
  %v1073 = vpop.permute.xlu0 %1072
  %1075 = vset.pattern.permute.xlu0 5
  %1076 = vperm.xlu0 %1075, %v241
  %v1077 = vpop.permute.xlu0 %1076
  %1079 = vset.pattern.permute.xlu0 5
  %1080 = vperm.xlu0 %1079, %v242
  %v1081 = vpop.permute.xlu0 %1080
  %1083 = vset.pattern.permute.xlu0 5
  %1084 = vperm.xlu0 %1083, %v243
  %v1085 = vpop.permute.xlu0 %1084
  %1087 = vset.pattern.permute.xlu0 5
  %1088 = vperm.xlu0 %1087, %v244
  %v1089 = vpop.permute.xlu0 %1088
  %1091 = vset.pattern.permute.xlu0 5
  %1092 = vperm.xlu0 %1091, %v245
  %v1093 = vpop.permute.xlu0 %1092
  %1095 = vset.pattern.permute.xlu0 5
  %1096 = vperm.xlu0 %1095, %v246
  %v1097 = vpop.permute.xlu0 %1096
  %1099 = vset.pattern.permute.xlu0 5
  %1100 = vperm.xlu0 %1099, %v247
  %v1101 = vpop.permute.xlu0 %1100
  %1103 = vset.pattern.permute.xlu0 5
  %1104 = vperm.xlu0 %1103, %v248
  %v1105 = vpop.permute.xlu0 %1104
  %1107 = vset.pattern.permute.xlu0 5
  %1108 = vperm.xlu0 %1107, %v249
  %v1109 = vpop.permute.xlu0 %1108
  %1111 = vset.pattern.permute.xlu0 5
  %1112 = vperm.xlu0 %1111, %v250
  %v1113 = vpop.permute.xlu0 %1112
  %v1115 = vlaneseq
  %v1116 = vshrl.u32 %v1115, 7
  %v1117 = vsub.s32 5, %v1116
  %v1118 = vrot.slane %v173, %v1117
  %v1119 = vlaneseq
  %v1120 = vshrl.u32 %v1119, 7
  %v1121 = vsub.s32 5, %v1120
  %v1122 = vrot.slane %v176, %v1121
  %v1123 = vlaneseq
  %v1124 = vshrl.u32 %v1123, 7
  %v1125 = vsub.s32 5, %v1124
  %v1126 = vrot.slane %v181, %v1125
  %v1127 = vlaneseq
  %v1128 = vshrl.u32 %v1127, 7
  %v1129 = vsub.s32 5, %v1128
  %v1130 = vrot.slane %v184, %v1129
  %v1131 = vlaneseq
  %v1132 = vshrl.u32 %v1131, 7
  %v1133 = vsub.s32 5, %v1132
  %v1134 = vrot.slane %v189, %v1133
  %v1135 = vlaneseq
  %v1136 = vshrl.u32 %v1135, 7
  %v1137 = vsub.s32 5, %v1136
  %v1138 = vrot.slane %v192, %v1137
  %v1139 = vlaneseq
  %v1140 = vshrl.u32 %v1139, 7
  %v1141 = vsub.s32 5, %v1140
  %v1142 = vrot.slane %v197, %v1141
  %v1143 = vlaneseq
  %v1144 = vshrl.u32 %v1143, 7
  %v1145 = vsub.s32 5, %v1144
  %v1146 = vrot.slane %v200, %v1145
  %v1147 = vlaneseq
  %v1148 = vshrl.u32 %v1147, 7
  %v1149 = vsub.s32 5, %v1148
  %v1150 = vrot.slane %v205, %v1149
  %v1151 = vlaneseq
  %v1152 = vshrl.u32 %v1151, 7
  %v1153 = vsub.s32 5, %v1152
  %v1154 = vrot.slane %v208, %v1153
  %v1155 = vlaneseq
  %v1156 = vshrl.u32 %v1155, 7
  %v1157 = vsub.s32 5, %v1156
  %v1158 = vrot.slane %v213, %v1157
  %v1159 = vlaneseq
  %v1160 = vshrl.u32 %v1159, 7
  %v1161 = vsub.s32 5, %v1160
  %v1162 = vrot.slane %v216, %v1161
  %v1163 = vlaneseq
  %v1164 = vshrl.u32 %v1163, 7
  %v1165 = vsub.s32 5, %v1164
  %v1166 = vrot.slane %v221, %v1165
  %v1167 = vlaneseq
  %v1168 = vshrl.u32 %v1167, 7
  %v1169 = vsub.s32 5, %v1168
  %v1170 = vrot.slane %v224, %v1169
  %v1171 = vlaneseq
  %v1172 = vshrl.u32 %v1171, 7
  %v1173 = vsub.s32 5, %v1172
  %v1174 = vrot.slane %v229, %v1173
  %v1175 = vlaneseq
  %v1176 = vshrl.u32 %v1175, 7
  %v1177 = vsub.s32 5, %v1176
  %v1178 = vrot.slane %v232, %v1177
  %v1179 = vmul.f32 %v1053, %v1118
  %v1180 = vmul.f32 %v1057, %v1122
  %v1181 = vmul.f32 %v1061, %v1126
  %v1182 = vmul.f32 %v1065, %v1130
  %v1183 = vmul.f32 %v1069, %v1134
  %v1184 = vmul.f32 %v1073, %v1138
  %v1185 = vmul.f32 %v1077, %v1142
  %v1186 = vmul.f32 %v1081, %v1146
  %v1187 = vmul.f32 %v1085, %v1150
  %v1188 = vmul.f32 %v1089, %v1154
  %v1189 = vmul.f32 %v1093, %v1158
  %v1190 = vmul.f32 %v1097, %v1162
  %v1191 = vmul.f32 %v1101, %v1166
  %v1192 = vmul.f32 %v1105, %v1170
  %v1193 = vmul.f32 %v1109, %v1174
  %v1194 = vmul.f32 %v1113, %v1178
  %v1195 = vadd.f32 %v1035, %v1179
  %v1196 = vadd.f32 %v1036, %v1180
  %v1197 = vadd.f32 %v1037, %v1181
  %v1198 = vadd.f32 %v1038, %v1182
  %v1199 = vadd.f32 %v1039, %v1183
  %v1200 = vadd.f32 %v1040, %v1184
  %v1201 = vadd.f32 %v1041, %v1185
  %v1202 = vadd.f32 %v1042, %v1186
  %v1203 = vadd.f32 %v1043, %v1187
  %v1204 = vadd.f32 %v1044, %v1188
  %v1205 = vadd.f32 %v1045, %v1189
  %v1206 = vadd.f32 %v1046, %v1190
  %v1207 = vadd.f32 %v1047, %v1191
  %v1208 = vadd.f32 %v1048, %v1192
  %v1209 = vadd.f32 %v1049, %v1193
  %v1210 = vadd.f32 %v1050, %v1194
  %1211 = vset.pattern.permute.xlu0 6
  %1212 = vperm.xlu0 %1211, %v235
  %v1213 = vpop.permute.xlu0 %1212
  %1215 = vset.pattern.permute.xlu0 6
  %1216 = vperm.xlu0 %1215, %v236
  %v1217 = vpop.permute.xlu0 %1216
  %1219 = vset.pattern.permute.xlu0 6
  %1220 = vperm.xlu0 %1219, %v237
  %v1221 = vpop.permute.xlu0 %1220
  %1223 = vset.pattern.permute.xlu0 6
  %1224 = vperm.xlu0 %1223, %v238
  %v1225 = vpop.permute.xlu0 %1224
  %1227 = vset.pattern.permute.xlu0 6
  %1228 = vperm.xlu0 %1227, %v239
  %v1229 = vpop.permute.xlu0 %1228
  %1231 = vset.pattern.permute.xlu0 6
  %1232 = vperm.xlu0 %1231, %v240
  %v1233 = vpop.permute.xlu0 %1232
  %1235 = vset.pattern.permute.xlu0 6
  %1236 = vperm.xlu0 %1235, %v241
  %v1237 = vpop.permute.xlu0 %1236
  %1239 = vset.pattern.permute.xlu0 6
  %1240 = vperm.xlu0 %1239, %v242
  %v1241 = vpop.permute.xlu0 %1240
  %1243 = vset.pattern.permute.xlu0 6
  %1244 = vperm.xlu0 %1243, %v243
  %v1245 = vpop.permute.xlu0 %1244
  %1247 = vset.pattern.permute.xlu0 6
  %1248 = vperm.xlu0 %1247, %v244
  %v1249 = vpop.permute.xlu0 %1248
  %1251 = vset.pattern.permute.xlu0 6
  %1252 = vperm.xlu0 %1251, %v245
  %v1253 = vpop.permute.xlu0 %1252
  %1255 = vset.pattern.permute.xlu0 6
  %1256 = vperm.xlu0 %1255, %v246
  %v1257 = vpop.permute.xlu0 %1256
  %1259 = vset.pattern.permute.xlu0 6
  %1260 = vperm.xlu0 %1259, %v247
  %v1261 = vpop.permute.xlu0 %1260
  %1263 = vset.pattern.permute.xlu0 6
  %1264 = vperm.xlu0 %1263, %v248
  %v1265 = vpop.permute.xlu0 %1264
  %1267 = vset.pattern.permute.xlu0 6
  %1268 = vperm.xlu0 %1267, %v249
  %v1269 = vpop.permute.xlu0 %1268
  %1271 = vset.pattern.permute.xlu0 6
  %1272 = vperm.xlu0 %1271, %v250
  %v1273 = vpop.permute.xlu0 %1272
  %v1275 = vlaneseq
  %v1276 = vshrl.u32 %v1275, 7
  %v1277 = vsub.s32 6, %v1276
  %v1278 = vrot.slane %v173, %v1277
  %v1279 = vlaneseq
  %v1280 = vshrl.u32 %v1279, 7
  %v1281 = vsub.s32 6, %v1280
  %v1282 = vrot.slane %v176, %v1281
  %v1283 = vlaneseq
  %v1284 = vshrl.u32 %v1283, 7
  %v1285 = vsub.s32 6, %v1284
  %v1286 = vrot.slane %v181, %v1285
  %v1287 = vlaneseq
  %v1288 = vshrl.u32 %v1287, 7
  %v1289 = vsub.s32 6, %v1288
  %v1290 = vrot.slane %v184, %v1289
  %v1291 = vlaneseq
  %v1292 = vshrl.u32 %v1291, 7
  %v1293 = vsub.s32 6, %v1292
  %v1294 = vrot.slane %v189, %v1293
  %v1295 = vlaneseq
  %v1296 = vshrl.u32 %v1295, 7
  %v1297 = vsub.s32 6, %v1296
  %v1298 = vrot.slane %v192, %v1297
  %v1299 = vlaneseq
  %v1300 = vshrl.u32 %v1299, 7
  %v1301 = vsub.s32 6, %v1300
  %v1302 = vrot.slane %v197, %v1301
  %v1303 = vlaneseq
  %v1304 = vshrl.u32 %v1303, 7
  %v1305 = vsub.s32 6, %v1304
  %v1306 = vrot.slane %v200, %v1305
  %v1307 = vlaneseq
  %v1308 = vshrl.u32 %v1307, 7
  %v1309 = vsub.s32 6, %v1308
  %v1310 = vrot.slane %v205, %v1309
  %v1311 = vlaneseq
  %v1312 = vshrl.u32 %v1311, 7
  %v1313 = vsub.s32 6, %v1312
  %v1314 = vrot.slane %v208, %v1313
  %v1315 = vlaneseq
  %v1316 = vshrl.u32 %v1315, 7
  %v1317 = vsub.s32 6, %v1316
  %v1318 = vrot.slane %v213, %v1317
  %v1319 = vlaneseq
  %v1320 = vshrl.u32 %v1319, 7
  %v1321 = vsub.s32 6, %v1320
  %v1322 = vrot.slane %v216, %v1321
  %v1323 = vlaneseq
  %v1324 = vshrl.u32 %v1323, 7
  %v1325 = vsub.s32 6, %v1324
  %v1326 = vrot.slane %v221, %v1325
  %v1327 = vlaneseq
  %v1328 = vshrl.u32 %v1327, 7
  %v1329 = vsub.s32 6, %v1328
  %v1330 = vrot.slane %v224, %v1329
  %v1331 = vlaneseq
  %v1332 = vshrl.u32 %v1331, 7
  %v1333 = vsub.s32 6, %v1332
  %v1334 = vrot.slane %v229, %v1333
  %v1335 = vlaneseq
  %v1336 = vshrl.u32 %v1335, 7
  %v1337 = vsub.s32 6, %v1336
  %v1338 = vrot.slane %v232, %v1337
  %v1339 = vmul.f32 %v1213, %v1278
  %v1340 = vmul.f32 %v1217, %v1282
  %v1341 = vmul.f32 %v1221, %v1286
  %v1342 = vmul.f32 %v1225, %v1290
  %v1343 = vmul.f32 %v1229, %v1294
  %v1344 = vmul.f32 %v1233, %v1298
  %v1345 = vmul.f32 %v1237, %v1302
  %v1346 = vmul.f32 %v1241, %v1306
  %v1347 = vmul.f32 %v1245, %v1310
  %v1348 = vmul.f32 %v1249, %v1314
  %v1349 = vmul.f32 %v1253, %v1318
  %v1350 = vmul.f32 %v1257, %v1322
  %v1351 = vmul.f32 %v1261, %v1326
  %v1352 = vmul.f32 %v1265, %v1330
  %v1353 = vmul.f32 %v1269, %v1334
  %v1354 = vmul.f32 %v1273, %v1338
  %v1355 = vadd.f32 %v1195, %v1339
  %v1356 = vadd.f32 %v1196, %v1340
  %v1357 = vadd.f32 %v1197, %v1341
  %v1358 = vadd.f32 %v1198, %v1342
  %v1359 = vadd.f32 %v1199, %v1343
  %v1360 = vadd.f32 %v1200, %v1344
  %v1361 = vadd.f32 %v1201, %v1345
  %v1362 = vadd.f32 %v1202, %v1346
  %v1363 = vadd.f32 %v1203, %v1347
  %v1364 = vadd.f32 %v1204, %v1348
  %v1365 = vadd.f32 %v1205, %v1349
  %v1366 = vadd.f32 %v1206, %v1350
  %v1367 = vadd.f32 %v1207, %v1351
  %v1368 = vadd.f32 %v1208, %v1352
  %v1369 = vadd.f32 %v1209, %v1353
  %v1370 = vadd.f32 %v1210, %v1354
  %1371 = vset.pattern.permute.xlu0 7
  %1372 = vperm.xlu0 %1371, %v235
  %v1373 = vpop.permute.xlu0 %1372
  %1375 = vset.pattern.permute.xlu0 7
  %1376 = vperm.xlu0 %1375, %v236
  %v1377 = vpop.permute.xlu0 %1376
  %1379 = vset.pattern.permute.xlu0 7
  %1380 = vperm.xlu0 %1379, %v237
  %v1381 = vpop.permute.xlu0 %1380
  %1383 = vset.pattern.permute.xlu0 7
  %1384 = vperm.xlu0 %1383, %v238
  %v1385 = vpop.permute.xlu0 %1384
  %1387 = vset.pattern.permute.xlu0 7
  %1388 = vperm.xlu0 %1387, %v239
  %v1389 = vpop.permute.xlu0 %1388
  %1391 = vset.pattern.permute.xlu0 7
  %1392 = vperm.xlu0 %1391, %v240
  %v1393 = vpop.permute.xlu0 %1392
  %1395 = vset.pattern.permute.xlu0 7
  %1396 = vperm.xlu0 %1395, %v241
  %v1397 = vpop.permute.xlu0 %1396
  %1399 = vset.pattern.permute.xlu0 7
  %1400 = vperm.xlu0 %1399, %v242
  %v1401 = vpop.permute.xlu0 %1400
  %1403 = vset.pattern.permute.xlu0 7
  %1404 = vperm.xlu0 %1403, %v243
  %v1405 = vpop.permute.xlu0 %1404
  %1407 = vset.pattern.permute.xlu0 7
  %1408 = vperm.xlu0 %1407, %v244
  %v1409 = vpop.permute.xlu0 %1408
  %1411 = vset.pattern.permute.xlu0 7
  %1412 = vperm.xlu0 %1411, %v245
  %v1413 = vpop.permute.xlu0 %1412
  %1415 = vset.pattern.permute.xlu0 7
  %1416 = vperm.xlu0 %1415, %v246
  %v1417 = vpop.permute.xlu0 %1416
  %1419 = vset.pattern.permute.xlu0 7
  %1420 = vperm.xlu0 %1419, %v247
  %v1421 = vpop.permute.xlu0 %1420
  %1423 = vset.pattern.permute.xlu0 7
  %1424 = vperm.xlu0 %1423, %v248
  %v1425 = vpop.permute.xlu0 %1424
  %1427 = vset.pattern.permute.xlu0 7
  %1428 = vperm.xlu0 %1427, %v249
  %v1429 = vpop.permute.xlu0 %1428
  %1431 = vset.pattern.permute.xlu0 7
  %1432 = vperm.xlu0 %1431, %v250
  %v1433 = vpop.permute.xlu0 %1432
  %v1435 = vlaneseq
  %v1436 = vshrl.u32 %v1435, 7
  %v1437 = vsub.s32 7, %v1436
  %v1438 = vrot.slane %v173, %v1437
  %v1439 = vlaneseq
  %v1440 = vshrl.u32 %v1439, 7
  %v1441 = vsub.s32 7, %v1440
  %v1442 = vrot.slane %v176, %v1441
  %v1443 = vlaneseq
  %v1444 = vshrl.u32 %v1443, 7
  %v1445 = vsub.s32 7, %v1444
  %v1446 = vrot.slane %v181, %v1445
  %v1447 = vlaneseq
  %v1448 = vshrl.u32 %v1447, 7
  %v1449 = vsub.s32 7, %v1448
  %v1450 = vrot.slane %v184, %v1449
  %v1451 = vlaneseq
  %v1452 = vshrl.u32 %v1451, 7
  %v1453 = vsub.s32 7, %v1452
  %v1454 = vrot.slane %v189, %v1453
  %v1455 = vlaneseq
  %v1456 = vshrl.u32 %v1455, 7
  %v1457 = vsub.s32 7, %v1456
  %v1458 = vrot.slane %v192, %v1457
  %v1459 = vlaneseq
  %v1460 = vshrl.u32 %v1459, 7
  %v1461 = vsub.s32 7, %v1460
  %v1462 = vrot.slane %v197, %v1461
  %v1463 = vlaneseq
  %v1464 = vshrl.u32 %v1463, 7
  %v1465 = vsub.s32 7, %v1464
  %v1466 = vrot.slane %v200, %v1465
  %v1467 = vlaneseq
  %v1468 = vshrl.u32 %v1467, 7
  %v1469 = vsub.s32 7, %v1468
  %v1470 = vrot.slane %v205, %v1469
  %v1471 = vlaneseq
  %v1472 = vshrl.u32 %v1471, 7
  %v1473 = vsub.s32 7, %v1472
  %v1474 = vrot.slane %v208, %v1473
  %v1475 = vlaneseq
  %v1476 = vshrl.u32 %v1475, 7
  %v1477 = vsub.s32 7, %v1476
  %v1478 = vrot.slane %v213, %v1477
  %v1479 = vlaneseq
  %v1480 = vshrl.u32 %v1479, 7
  %v1481 = vsub.s32 7, %v1480
  %v1482 = vrot.slane %v216, %v1481
  %v1483 = vlaneseq
  %v1484 = vshrl.u32 %v1483, 7
  %v1485 = vsub.s32 7, %v1484
  %v1486 = vrot.slane %v221, %v1485
  %v1487 = vlaneseq
  %v1488 = vshrl.u32 %v1487, 7
  %v1489 = vsub.s32 7, %v1488
  %v1490 = vrot.slane %v224, %v1489
  %v1491 = vlaneseq
  %v1492 = vshrl.u32 %v1491, 7
  %v1493 = vsub.s32 7, %v1492
  %v1494 = vrot.slane %v229, %v1493
  %v1495 = vlaneseq
  %v1496 = vshrl.u32 %v1495, 7
  %v1497 = vsub.s32 7, %v1496
  %v1498 = vrot.slane %v232, %v1497
  %v1499 = vmul.f32 %v1373, %v1438
  %v1500 = vmul.f32 %v1377, %v1442
  %v1501 = vmul.f32 %v1381, %v1446
  %v1502 = vmul.f32 %v1385, %v1450
  %v1503 = vmul.f32 %v1389, %v1454
  %v1504 = vmul.f32 %v1393, %v1458
  %v1505 = vmul.f32 %v1397, %v1462
  %v1506 = vmul.f32 %v1401, %v1466
  %v1507 = vmul.f32 %v1405, %v1470
  %v1508 = vmul.f32 %v1409, %v1474
  %v1509 = vmul.f32 %v1413, %v1478
  %v1510 = vmul.f32 %v1417, %v1482
  %v1511 = vmul.f32 %v1421, %v1486
  %v1512 = vmul.f32 %v1425, %v1490
  %v1513 = vmul.f32 %v1429, %v1494
  %v1514 = vmul.f32 %v1433, %v1498
  %v1515 = vadd.f32 %v1355, %v1499
  %v1516 = vadd.f32 %v1356, %v1500
  %v1517 = vadd.f32 %v1357, %v1501
  %v1518 = vadd.f32 %v1358, %v1502
  %v1519 = vadd.f32 %v1359, %v1503
  %v1520 = vadd.f32 %v1360, %v1504
  %v1521 = vadd.f32 %v1361, %v1505
  %v1522 = vadd.f32 %v1362, %v1506
  %v1523 = vadd.f32 %v1363, %v1507
  %v1524 = vadd.f32 %v1364, %v1508
  %v1525 = vadd.f32 %v1365, %v1509
  %v1526 = vadd.f32 %v1366, %v1510
  %v1527 = vadd.f32 %v1367, %v1511
  %v1528 = vadd.f32 %v1368, %v1512
  %v1529 = vadd.f32 %v1369, %v1513
  %v1530 = vadd.f32 %v1370, %v1514
  %v1531 = vmax.f32 %v1515, 0.0
  %v1532 = vmax.f32 %v1516, 0.0
  %v1533 = vmax.f32 %v1517, 0.0
  %v1534 = vmax.f32 %v1518, 0.0
  %v1535 = vmax.f32 %v1519, 0.0
  %v1536 = vmax.f32 %v1520, 0.0
  %v1537 = vmax.f32 %v1521, 0.0
  %v1538 = vmax.f32 %v1522, 0.0
  %v1539 = vmax.f32 %v1523, 0.0
  %v1540 = vmax.f32 %v1524, 0.0
  %v1541 = vmax.f32 %v1525, 0.0
  %v1542 = vmax.f32 %v1526, 0.0
  %v1543 = vmax.f32 %v1527, 0.0
  %v1544 = vmax.f32 %v1528, 0.0
  %v1545 = vmax.f32 %v1529, 0.0
  %v1546 = vmax.f32 %v1530, 0.0
  %vm1547 = vcmask 64512
  %v1548 = vsel %vm1547, %v235, 0.0
  %v1549 = vrot.slane %v1548, 4
  %v1550 = vadd.f32 %v1548, %v1549
  %v1551 = vrot.slane %v1550, 2
  %v1552 = vadd.f32 %v1550, %v1551
  %v1553 = vrot.slane %v1552, 1
  %v1554 = vadd.f32 %v1552, %v1553
  %v1555 = vsel %vm1547, %v236, 0.0
  %v1556 = vrot.slane %v1555, 4
  %v1557 = vadd.f32 %v1555, %v1556
  %v1558 = vrot.slane %v1557, 2
  %v1559 = vadd.f32 %v1557, %v1558
  %v1560 = vrot.slane %v1559, 1
  %v1561 = vadd.f32 %v1559, %v1560
  %v1562 = vsel %vm1547, %v237, 0.0
  %v1563 = vrot.slane %v1562, 4
  %v1564 = vadd.f32 %v1562, %v1563
  %v1565 = vrot.slane %v1564, 2
  %v1566 = vadd.f32 %v1564, %v1565
  %v1567 = vrot.slane %v1566, 1
  %v1568 = vadd.f32 %v1566, %v1567
  %v1569 = vsel %vm1547, %v238, 0.0
  %v1570 = vrot.slane %v1569, 4
  %v1571 = vadd.f32 %v1569, %v1570
  %v1572 = vrot.slane %v1571, 2
  %v1573 = vadd.f32 %v1571, %v1572
  %v1574 = vrot.slane %v1573, 1
  %v1575 = vadd.f32 %v1573, %v1574
  %v1576 = vsel %vm1547, %v239, 0.0
  %v1577 = vrot.slane %v1576, 4
  %v1578 = vadd.f32 %v1576, %v1577
  %v1579 = vrot.slane %v1578, 2
  %v1580 = vadd.f32 %v1578, %v1579
  %v1581 = vrot.slane %v1580, 1
  %v1582 = vadd.f32 %v1580, %v1581
  %v1583 = vsel %vm1547, %v240, 0.0
  %v1584 = vrot.slane %v1583, 4
  %v1585 = vadd.f32 %v1583, %v1584
  %v1586 = vrot.slane %v1585, 2
  %v1587 = vadd.f32 %v1585, %v1586
  %v1588 = vrot.slane %v1587, 1
  %v1589 = vadd.f32 %v1587, %v1588
  %v1590 = vsel %vm1547, %v241, 0.0
  %v1591 = vrot.slane %v1590, 4
  %v1592 = vadd.f32 %v1590, %v1591
  %v1593 = vrot.slane %v1592, 2
  %v1594 = vadd.f32 %v1592, %v1593
  %v1595 = vrot.slane %v1594, 1
  %v1596 = vadd.f32 %v1594, %v1595
  %v1597 = vsel %vm1547, %v242, 0.0
  %v1598 = vrot.slane %v1597, 4
  %v1599 = vadd.f32 %v1597, %v1598
  %v1600 = vrot.slane %v1599, 2
  %v1601 = vadd.f32 %v1599, %v1600
  %v1602 = vrot.slane %v1601, 1
  %v1603 = vadd.f32 %v1601, %v1602
  %v1604 = vsel %vm1547, %v243, 0.0
  %v1605 = vrot.slane %v1604, 4
  %v1606 = vadd.f32 %v1604, %v1605
  %v1607 = vrot.slane %v1606, 2
  %v1608 = vadd.f32 %v1606, %v1607
  %v1609 = vrot.slane %v1608, 1
  %v1610 = vadd.f32 %v1608, %v1609
  %v1611 = vsel %vm1547, %v244, 0.0
  %v1612 = vrot.slane %v1611, 4
  %v1613 = vadd.f32 %v1611, %v1612
  %v1614 = vrot.slane %v1613, 2
  %v1615 = vadd.f32 %v1613, %v1614
  %v1616 = vrot.slane %v1615, 1
  %v1617 = vadd.f32 %v1615, %v1616
  %v1618 = vsel %vm1547, %v245, 0.0
  %v1619 = vrot.slane %v1618, 4
  %v1620 = vadd.f32 %v1618, %v1619
  %v1621 = vrot.slane %v1620, 2
  %v1622 = vadd.f32 %v1620, %v1621
  %v1623 = vrot.slane %v1622, 1
  %v1624 = vadd.f32 %v1622, %v1623
  %v1625 = vsel %vm1547, %v246, 0.0
  %v1626 = vrot.slane %v1625, 4
  %v1627 = vadd.f32 %v1625, %v1626
  %v1628 = vrot.slane %v1627, 2
  %v1629 = vadd.f32 %v1627, %v1628
  %v1630 = vrot.slane %v1629, 1
  %v1631 = vadd.f32 %v1629, %v1630
  %v1632 = vsel %vm1547, %v247, 0.0
  %v1633 = vrot.slane %v1632, 4
  %v1634 = vadd.f32 %v1632, %v1633
  %v1635 = vrot.slane %v1634, 2
  %v1636 = vadd.f32 %v1634, %v1635
  %v1637 = vrot.slane %v1636, 1
  %v1638 = vadd.f32 %v1636, %v1637
  %v1639 = vsel %vm1547, %v248, 0.0
  %v1640 = vrot.slane %v1639, 4
  %v1641 = vadd.f32 %v1639, %v1640
  %v1642 = vrot.slane %v1641, 2
  %v1643 = vadd.f32 %v1641, %v1642
  %v1644 = vrot.slane %v1643, 1
  %v1645 = vadd.f32 %v1643, %v1644
  %v1646 = vsel %vm1547, %v249, 0.0
  %v1647 = vrot.slane %v1646, 4
  %v1648 = vadd.f32 %v1646, %v1647
  %v1649 = vrot.slane %v1648, 2
  %v1650 = vadd.f32 %v1648, %v1649
  %v1651 = vrot.slane %v1650, 1
  %v1652 = vadd.f32 %v1650, %v1651
  %v1653 = vsel %vm1547, %v250, 0.0
  %v1654 = vrot.slane %v1653, 4
  %v1655 = vadd.f32 %v1653, %v1654
  %v1656 = vrot.slane %v1655, 2
  %v1657 = vadd.f32 %v1655, %v1656
  %v1658 = vrot.slane %v1657, 1
  %v1659 = vadd.f32 %v1657, %v1658
  %v1660 = vrcp.pop 8.0
  %v1661 = vmul.f32 %v1554, %v1660
  %v1662 = vmul.f32 %v1561, %v1660
  %v1663 = vmul.f32 %v1568, %v1660
  %v1664 = vmul.f32 %v1575, %v1660
  %v1665 = vmul.f32 %v1582, %v1660
  %v1666 = vmul.f32 %v1589, %v1660
  %v1667 = vmul.f32 %v1596, %v1660
  %v1668 = vmul.f32 %v1603, %v1660
  %v1669 = vmul.f32 %v1610, %v1660
  %v1670 = vmul.f32 %v1617, %v1660
  %v1671 = vmul.f32 %v1624, %v1660
  %v1672 = vmul.f32 %v1631, %v1660
  %v1673 = vmul.f32 %v1638, %v1660
  %v1674 = vmul.f32 %v1645, %v1660
  %v1675 = vmul.f32 %v1652, %v1660
  %v1676 = vmul.f32 %v1659, %v1660
  %v1677 = vlaneseq
  %v1678 = vshrl.u32 %v1677, 7
  %vm1679 = vcmp.eq.s32.totalorder %v1678, 0
  %v1680 = vsel %vm1679, 0.125, %v1661
  %v1681 = vsel %vm1679, 0.125, %v1662
  %v1682 = vsel %vm1679, 0.125, %v1663
  %v1683 = vsel %vm1679, 0.125, %v1664
  %v1684 = vsel %vm1679, 0.125, %v1665
  %v1685 = vsel %vm1679, 0.125, %v1666
  %v1686 = vsel %vm1679, 0.125, %v1667
  %v1687 = vsel %vm1679, 0.125, %v1668
  %v1688 = vsel %vm1679, 0.125, %v1669
  %v1689 = vsel %vm1679, 0.125, %v1670
  %v1690 = vsel %vm1679, 0.125, %v1671
  %v1691 = vsel %vm1679, 0.125, %v1672
  %v1692 = vsel %vm1679, 0.125, %v1673
  %v1693 = vsel %vm1679, 0.125, %v1674
  %v1694 = vsel %vm1679, 0.125, %v1675
  %v1695 = vsel %vm1679, 0.125, %v1676
  %v1697 = vsel %vm1547, %v1680, 0
  %1699 = vmatprep.subr.mxu0 0.0
  %1700 = vmatpush1.msra.mxu0 %v1531
  %1701 = vmatprep.subr.mxu0 0.0
  %1702 = vmatpush1.msra.mxu0 0.0
  %1703 = vmatprep.subr.mxu0 0.0
  %1704 = vmatpush1.msra.mxu0 0.0
  %1705 = vmatprep.subr.mxu0 0.0
  %1706 = vmatpush1.msra.mxu0 0.0
  %1707 = vmatprep.subr.mxu0 0.0
  %1708 = vmatpush1.msra.mxu0 0.0
  %1709 = vmatprep.subr.mxu0 0.0
  %1710 = vmatpush1.msra.mxu0 0.0
  %1711 = vmatprep.subr.mxu0 0.0
  %1712 = vmatpush1.msra.mxu0 0.0
  %1713 = vmatprep.subr.mxu0 0.0
  %1714 = vmatpush1.msra.mxu0 0.0
  %1715 = vmatprep.subr.mxu0 0.0
  %1716 = vmatpush1.msra.mxu0 0.0
  %1717 = vmatprep.subr.mxu0 0.0
  %1718 = vmatpush1.msra.mxu0 0.0
  %1719 = vmatprep.subr.mxu0 0.0
  %1720 = vmatpush1.msra.mxu0 0.0
  %1721 = vmatprep.subr.mxu0 0.0
  %1722 = vmatpush1.msra.mxu0 0.0
  %1723 = vmatprep.subr.mxu0 0.0
  %1724 = vmatpush1.msra.mxu0 0.0
  %1725 = vmatprep.subr.mxu0 0.0
  %1726 = vmatpush1.msra.mxu0 0.0
  %1727 = vmatprep.subr.mxu0 0.0
  %1728 = vmatpush1.msra.mxu0 0.0
  %1729 = vmatprep.subr.mxu0 0.0
  %1730 = vmatpush1.msra.mxu0 0.0
  %1731 = vmatprep.subr.mxu0 0.0
  %1732 = vmatpush1.msra.mxu0 0.0
  %1733 = vmatprep.subr.mxu0 0.0
  %1734 = vmatpush1.msra.mxu0 0.0
  %1735 = vmatprep.subr.mxu0 0.0
  %1736 = vmatpush1.msra.mxu0 0.0
  %1737 = vmatprep.subr.mxu0 0.0
  %1738 = vmatpush1.msra.mxu0 0.0
  %1739 = vmatprep.subr.mxu0 0.0
  %1740 = vmatpush1.msra.mxu0 0.0
  %1741 = vmatprep.subr.mxu0 0.0
  %1742 = vmatpush1.msra.mxu0 0.0
  %1743 = vmatprep.subr.mxu0 0.0
  %1744 = vmatpush1.msra.mxu0 0.0
  %1745 = vmatprep.subr.mxu0 0.0
  %1746 = vmatpush1.msra.mxu0 0.0
  %1747 = vmatprep.subr.mxu0 0.0
  %1748 = vmatpush1.msra.mxu0 0.0
  %1749 = vmatprep.subr.mxu0 0.0
  %1750 = vmatpush1.msra.mxu0 0.0
  %1751 = vmatprep.subr.mxu0 0.0
  %1752 = vmatpush1.msra.mxu0 0.0
  %1753 = vmatprep.subr.mxu0 0.0
  %1754 = vmatpush1.msra.mxu0 0.0
  %1755 = vmatprep.subr.mxu0 0.0
  %1756 = vmatpush1.msra.mxu0 0.0
  %1757 = vmatprep.subr.mxu0 0.0
  %1758 = vmatpush1.msra.mxu0 0.0
  %1759 = vmatprep.subr.mxu0 0.0
  %1760 = vmatpush1.msra.mxu0 0.0
  %1761 = vmatprep.subr.mxu0 0.0
  %1762 = vmatpush1.msra.mxu0 0.0
  %1763 = vmatprep.mubr.f32.mxu0 0.0
  %1764 = vmatmul.mubr.f32.gmra.mrb[0].mxu0 %v1697
  %v1765 = vpop.f32.mrb[0].mxu0
  %v1766 = vadd.f32 0.0, %v1765
  %v1767 = vpop.f32.mrb[0].mxu0
  %1768 = vdwg.mxu0
  %v1770 = vsel %vm1547, %v1681, 0
  %1772 = vmatprep.subr.mxu0 0.0
  %1773 = vmatpush1.msra.mxu0 %v1532
  %1774 = vmatprep.subr.mxu0 0.0
  %1775 = vmatpush1.msra.mxu0 0.0
  %1776 = vmatprep.subr.mxu0 0.0
  %1777 = vmatpush1.msra.mxu0 0.0
  %1778 = vmatprep.subr.mxu0 0.0
  %1779 = vmatpush1.msra.mxu0 0.0
  %1780 = vmatprep.subr.mxu0 0.0
  %1781 = vmatpush1.msra.mxu0 0.0
  %1782 = vmatprep.subr.mxu0 0.0
  %1783 = vmatpush1.msra.mxu0 0.0
  %1784 = vmatprep.subr.mxu0 0.0
  %1785 = vmatpush1.msra.mxu0 0.0
  %1786 = vmatprep.subr.mxu0 0.0
  %1787 = vmatpush1.msra.mxu0 0.0
  %1788 = vmatprep.subr.mxu0 0.0
  %1789 = vmatpush1.msra.mxu0 0.0
  %1790 = vmatprep.subr.mxu0 0.0
  %1791 = vmatpush1.msra.mxu0 0.0
  %1792 = vmatprep.subr.mxu0 0.0
  %1793 = vmatpush1.msra.mxu0 0.0
  %1794 = vmatprep.subr.mxu0 0.0
  %1795 = vmatpush1.msra.mxu0 0.0
  %1796 = vmatprep.subr.mxu0 0.0
  %1797 = vmatpush1.msra.mxu0 0.0
  %1798 = vmatprep.subr.mxu0 0.0
  %1799 = vmatpush1.msra.mxu0 0.0
  %1800 = vmatprep.subr.mxu0 0.0
  %1801 = vmatpush1.msra.mxu0 0.0
  %1802 = vmatprep.subr.mxu0 0.0
  %1803 = vmatpush1.msra.mxu0 0.0
  %1804 = vmatprep.subr.mxu0 0.0
  %1805 = vmatpush1.msra.mxu0 0.0
  %1806 = vmatprep.subr.mxu0 0.0
  %1807 = vmatpush1.msra.mxu0 0.0
  %1808 = vmatprep.subr.mxu0 0.0
  %1809 = vmatpush1.msra.mxu0 0.0
  %1810 = vmatprep.subr.mxu0 0.0
  %1811 = vmatpush1.msra.mxu0 0.0
  %1812 = vmatprep.subr.mxu0 0.0
  %1813 = vmatpush1.msra.mxu0 0.0
  %1814 = vmatprep.subr.mxu0 0.0
  %1815 = vmatpush1.msra.mxu0 0.0
  %1816 = vmatprep.subr.mxu0 0.0
  %1817 = vmatpush1.msra.mxu0 0.0
  %1818 = vmatprep.subr.mxu0 0.0
  %1819 = vmatpush1.msra.mxu0 0.0
  %1820 = vmatprep.subr.mxu0 0.0
  %1821 = vmatpush1.msra.mxu0 0.0
  %1822 = vmatprep.subr.mxu0 0.0
  %1823 = vmatpush1.msra.mxu0 0.0
  %1824 = vmatprep.subr.mxu0 0.0
  %1825 = vmatpush1.msra.mxu0 0.0
  %1826 = vmatprep.subr.mxu0 0.0
  %1827 = vmatpush1.msra.mxu0 0.0
  %1828 = vmatprep.subr.mxu0 0.0
  %1829 = vmatpush1.msra.mxu0 0.0
  %1830 = vmatprep.subr.mxu0 0.0
  %1831 = vmatpush1.msra.mxu0 0.0
  %1832 = vmatprep.subr.mxu0 0.0
  %1833 = vmatpush1.msra.mxu0 0.0
  %1834 = vmatprep.subr.mxu0 0.0
  %1835 = vmatpush1.msra.mxu0 0.0
  %1836 = vmatprep.mubr.f32.mxu0 0.0
  %1837 = vmatmul.mubr.f32.gmra.mrb[0].mxu0 %v1770
  %v1838 = vpop.f32.mrb[0].mxu0
  %v1839 = vadd.f32 0.0, %v1838
  %v1840 = vpop.f32.mrb[0].mxu0
  %1841 = vdwg.mxu0
  %v1843 = vsel %vm1547, %v1682, 0
  %1845 = vmatprep.subr.mxu0 0.0
  %1846 = vmatpush1.msra.mxu0 %v1533
  %1847 = vmatprep.subr.mxu0 0.0
  %1848 = vmatpush1.msra.mxu0 0.0
  %1849 = vmatprep.subr.mxu0 0.0
  %1850 = vmatpush1.msra.mxu0 0.0
  %1851 = vmatprep.subr.mxu0 0.0
  %1852 = vmatpush1.msra.mxu0 0.0
  %1853 = vmatprep.subr.mxu0 0.0
  %1854 = vmatpush1.msra.mxu0 0.0
  %1855 = vmatprep.subr.mxu0 0.0
  %1856 = vmatpush1.msra.mxu0 0.0
  %1857 = vmatprep.subr.mxu0 0.0
  %1858 = vmatpush1.msra.mxu0 0.0
  %1859 = vmatprep.subr.mxu0 0.0
  %1860 = vmatpush1.msra.mxu0 0.0
  %1861 = vmatprep.subr.mxu0 0.0
  %1862 = vmatpush1.msra.mxu0 0.0
  %1863 = vmatprep.subr.mxu0 0.0
  %1864 = vmatpush1.msra.mxu0 0.0
  %1865 = vmatprep.subr.mxu0 0.0
  %1866 = vmatpush1.msra.mxu0 0.0
  %1867 = vmatprep.subr.mxu0 0.0
  %1868 = vmatpush1.msra.mxu0 0.0
  %1869 = vmatprep.subr.mxu0 0.0
  %1870 = vmatpush1.msra.mxu0 0.0
  %1871 = vmatprep.subr.mxu0 0.0
  %1872 = vmatpush1.msra.mxu0 0.0
  %1873 = vmatprep.subr.mxu0 0.0
  %1874 = vmatpush1.msra.mxu0 0.0
  %1875 = vmatprep.subr.mxu0 0.0
  %1876 = vmatpush1.msra.mxu0 0.0
  %1877 = vmatprep.subr.mxu0 0.0
  %1878 = vmatpush1.msra.mxu0 0.0
  %1879 = vmatprep.subr.mxu0 0.0
  %1880 = vmatpush1.msra.mxu0 0.0
  %1881 = vmatprep.subr.mxu0 0.0
  %1882 = vmatpush1.msra.mxu0 0.0
  %1883 = vmatprep.subr.mxu0 0.0
  %1884 = vmatpush1.msra.mxu0 0.0
  %1885 = vmatprep.subr.mxu0 0.0
  %1886 = vmatpush1.msra.mxu0 0.0
  %1887 = vmatprep.subr.mxu0 0.0
  %1888 = vmatpush1.msra.mxu0 0.0
  %1889 = vmatprep.subr.mxu0 0.0
  %1890 = vmatpush1.msra.mxu0 0.0
  %1891 = vmatprep.subr.mxu0 0.0
  %1892 = vmatpush1.msra.mxu0 0.0
  %1893 = vmatprep.subr.mxu0 0.0
  %1894 = vmatpush1.msra.mxu0 0.0
  %1895 = vmatprep.subr.mxu0 0.0
  %1896 = vmatpush1.msra.mxu0 0.0
  %1897 = vmatprep.subr.mxu0 0.0
  %1898 = vmatpush1.msra.mxu0 0.0
  %1899 = vmatprep.subr.mxu0 0.0
  %1900 = vmatpush1.msra.mxu0 0.0
  %1901 = vmatprep.subr.mxu0 0.0
  %1902 = vmatpush1.msra.mxu0 0.0
  %1903 = vmatprep.subr.mxu0 0.0
  %1904 = vmatpush1.msra.mxu0 0.0
  %1905 = vmatprep.subr.mxu0 0.0
  %1906 = vmatpush1.msra.mxu0 0.0
  %1907 = vmatprep.subr.mxu0 0.0
  %1908 = vmatpush1.msra.mxu0 0.0
  %1909 = vmatprep.mubr.f32.mxu0 0.0
  %1910 = vmatmul.mubr.f32.gmra.mrb[0].mxu0 %v1843
  %v1911 = vpop.f32.mrb[0].mxu0
  %v1912 = vadd.f32 0.0, %v1911
  %v1913 = vpop.f32.mrb[0].mxu0
  %1914 = vdwg.mxu0
  %v1916 = vsel %vm1547, %v1683, 0
  %1918 = vmatprep.subr.mxu0 0.0
  %1919 = vmatpush1.msra.mxu0 %v1534
  %1920 = vmatprep.subr.mxu0 0.0
  %1921 = vmatpush1.msra.mxu0 0.0
  %1922 = vmatprep.subr.mxu0 0.0
  %1923 = vmatpush1.msra.mxu0 0.0
  %1924 = vmatprep.subr.mxu0 0.0
  %1925 = vmatpush1.msra.mxu0 0.0
  %1926 = vmatprep.subr.mxu0 0.0
  %1927 = vmatpush1.msra.mxu0 0.0
  %1928 = vmatprep.subr.mxu0 0.0
  %1929 = vmatpush1.msra.mxu0 0.0
  %1930 = vmatprep.subr.mxu0 0.0
  %1931 = vmatpush1.msra.mxu0 0.0
  %1932 = vmatprep.subr.mxu0 0.0
  %1933 = vmatpush1.msra.mxu0 0.0
  %1934 = vmatprep.subr.mxu0 0.0
  %1935 = vmatpush1.msra.mxu0 0.0
  %1936 = vmatprep.subr.mxu0 0.0
  %1937 = vmatpush1.msra.mxu0 0.0
  %1938 = vmatprep.subr.mxu0 0.0
  %1939 = vmatpush1.msra.mxu0 0.0
  %1940 = vmatprep.subr.mxu0 0.0
  %1941 = vmatpush1.msra.mxu0 0.0
  %1942 = vmatprep.subr.mxu0 0.0
  %1943 = vmatpush1.msra.mxu0 0.0
  %1944 = vmatprep.subr.mxu0 0.0
  %1945 = vmatpush1.msra.mxu0 0.0
  %1946 = vmatprep.subr.mxu0 0.0
  %1947 = vmatpush1.msra.mxu0 0.0
  %1948 = vmatprep.subr.mxu0 0.0
  %1949 = vmatpush1.msra.mxu0 0.0
  %1950 = vmatprep.subr.mxu0 0.0
  %1951 = vmatpush1.msra.mxu0 0.0
  %1952 = vmatprep.subr.mxu0 0.0
  %1953 = vmatpush1.msra.mxu0 0.0
  %1954 = vmatprep.subr.mxu0 0.0
  %1955 = vmatpush1.msra.mxu0 0.0
  %1956 = vmatprep.subr.mxu0 0.0
  %1957 = vmatpush1.msra.mxu0 0.0
  %1958 = vmatprep.subr.mxu0 0.0
  %1959 = vmatpush1.msra.mxu0 0.0
  %1960 = vmatprep.subr.mxu0 0.0
  %1961 = vmatpush1.msra.mxu0 0.0
  %1962 = vmatprep.subr.mxu0 0.0
  %1963 = vmatpush1.msra.mxu0 0.0
  %1964 = vmatprep.subr.mxu0 0.0
  %1965 = vmatpush1.msra.mxu0 0.0
  %1966 = vmatprep.subr.mxu0 0.0
  %1967 = vmatpush1.msra.mxu0 0.0
  %1968 = vmatprep.subr.mxu0 0.0
  %1969 = vmatpush1.msra.mxu0 0.0
  %1970 = vmatprep.subr.mxu0 0.0
  %1971 = vmatpush1.msra.mxu0 0.0
  %1972 = vmatprep.subr.mxu0 0.0
  %1973 = vmatpush1.msra.mxu0 0.0
  %1974 = vmatprep.subr.mxu0 0.0
  %1975 = vmatpush1.msra.mxu0 0.0
  %1976 = vmatprep.subr.mxu0 0.0
  %1977 = vmatpush1.msra.mxu0 0.0
  %1978 = vmatprep.subr.mxu0 0.0
  %1979 = vmatpush1.msra.mxu0 0.0
  %1980 = vmatprep.subr.mxu0 0.0
  %1981 = vmatpush1.msra.mxu0 0.0
  %1982 = vmatprep.mubr.f32.mxu0 0.0
  %1983 = vmatmul.mubr.f32.gmra.mrb[0].mxu0 %v1916
  %v1984 = vpop.f32.mrb[0].mxu0
  %v1985 = vadd.f32 0.0, %v1984
  %v1986 = vpop.f32.mrb[0].mxu0
  %1987 = vdwg.mxu0
  %v1989 = vsel %vm1547, %v1684, 0
  %1991 = vmatprep.subr.mxu0 0.0
  %1992 = vmatpush1.msra.mxu0 %v1535
  %1993 = vmatprep.subr.mxu0 0.0
  %1994 = vmatpush1.msra.mxu0 0.0
  %1995 = vmatprep.subr.mxu0 0.0
  %1996 = vmatpush1.msra.mxu0 0.0
  %1997 = vmatprep.subr.mxu0 0.0
  %1998 = vmatpush1.msra.mxu0 0.0
  %1999 = vmatprep.subr.mxu0 0.0
  %2000 = vmatpush1.msra.mxu0 0.0
  %2001 = vmatprep.subr.mxu0 0.0
  %2002 = vmatpush1.msra.mxu0 0.0
  %2003 = vmatprep.subr.mxu0 0.0
  %2004 = vmatpush1.msra.mxu0 0.0
  %2005 = vmatprep.subr.mxu0 0.0
  %2006 = vmatpush1.msra.mxu0 0.0
  %2007 = vmatprep.subr.mxu0 0.0
  %2008 = vmatpush1.msra.mxu0 0.0
  %2009 = vmatprep.subr.mxu0 0.0
  %2010 = vmatpush1.msra.mxu0 0.0
  %2011 = vmatprep.subr.mxu0 0.0
  %2012 = vmatpush1.msra.mxu0 0.0
  %2013 = vmatprep.subr.mxu0 0.0
  %2014 = vmatpush1.msra.mxu0 0.0
  %2015 = vmatprep.subr.mxu0 0.0
  %2016 = vmatpush1.msra.mxu0 0.0
  %2017 = vmatprep.subr.mxu0 0.0
  %2018 = vmatpush1.msra.mxu0 0.0
  %2019 = vmatprep.subr.mxu0 0.0
  %2020 = vmatpush1.msra.mxu0 0.0
  %2021 = vmatprep.subr.mxu0 0.0
  %2022 = vmatpush1.msra.mxu0 0.0
  %2023 = vmatprep.subr.mxu0 0.0
  %2024 = vmatpush1.msra.mxu0 0.0
  %2025 = vmatprep.subr.mxu0 0.0
  %2026 = vmatpush1.msra.mxu0 0.0
  %2027 = vmatprep.subr.mxu0 0.0
  %2028 = vmatpush1.msra.mxu0 0.0
  %2029 = vmatprep.subr.mxu0 0.0
  %2030 = vmatpush1.msra.mxu0 0.0
  %2031 = vmatprep.subr.mxu0 0.0
  %2032 = vmatpush1.msra.mxu0 0.0
  %2033 = vmatprep.subr.mxu0 0.0
  %2034 = vmatpush1.msra.mxu0 0.0
  %2035 = vmatprep.subr.mxu0 0.0
  %2036 = vmatpush1.msra.mxu0 0.0
  %2037 = vmatprep.subr.mxu0 0.0
  %2038 = vmatpush1.msra.mxu0 0.0
  %2039 = vmatprep.subr.mxu0 0.0
  %2040 = vmatpush1.msra.mxu0 0.0
  %2041 = vmatprep.subr.mxu0 0.0
  %2042 = vmatpush1.msra.mxu0 0.0
  %2043 = vmatprep.subr.mxu0 0.0
  %2044 = vmatpush1.msra.mxu0 0.0
  %2045 = vmatprep.subr.mxu0 0.0
  %2046 = vmatpush1.msra.mxu0 0.0
  %2047 = vmatprep.subr.mxu0 0.0
  %2048 = vmatpush1.msra.mxu0 0.0
  %2049 = vmatprep.subr.mxu0 0.0
  %2050 = vmatpush1.msra.mxu0 0.0
  %2051 = vmatprep.subr.mxu0 0.0
  %2052 = vmatpush1.msra.mxu0 0.0
  %2053 = vmatprep.subr.mxu0 0.0
  %2054 = vmatpush1.msra.mxu0 0.0
  %2055 = vmatprep.mubr.f32.mxu0 0.0
  %2056 = vmatmul.mubr.f32.gmra.mrb[0].mxu0 %v1989
  %v2057 = vpop.f32.mrb[0].mxu0
  %v2058 = vadd.f32 0.0, %v2057
  %v2059 = vpop.f32.mrb[0].mxu0
  %2060 = vdwg.mxu0
  %v2062 = vsel %vm1547, %v1685, 0
  %2064 = vmatprep.subr.mxu0 0.0
  %2065 = vmatpush1.msra.mxu0 %v1536
  %2066 = vmatprep.subr.mxu0 0.0
  %2067 = vmatpush1.msra.mxu0 0.0
  %2068 = vmatprep.subr.mxu0 0.0
  %2069 = vmatpush1.msra.mxu0 0.0
  %2070 = vmatprep.subr.mxu0 0.0
  %2071 = vmatpush1.msra.mxu0 0.0
  %2072 = vmatprep.subr.mxu0 0.0
  %2073 = vmatpush1.msra.mxu0 0.0
  %2074 = vmatprep.subr.mxu0 0.0
  %2075 = vmatpush1.msra.mxu0 0.0
  %2076 = vmatprep.subr.mxu0 0.0
  %2077 = vmatpush1.msra.mxu0 0.0
  %2078 = vmatprep.subr.mxu0 0.0
  %2079 = vmatpush1.msra.mxu0 0.0
  %2080 = vmatprep.subr.mxu0 0.0
  %2081 = vmatpush1.msra.mxu0 0.0
  %2082 = vmatprep.subr.mxu0 0.0
  %2083 = vmatpush1.msra.mxu0 0.0
  %2084 = vmatprep.subr.mxu0 0.0
  %2085 = vmatpush1.msra.mxu0 0.0
  %2086 = vmatprep.subr.mxu0 0.0
  %2087 = vmatpush1.msra.mxu0 0.0
  %2088 = vmatprep.subr.mxu0 0.0
  %2089 = vmatpush1.msra.mxu0 0.0
  %2090 = vmatprep.subr.mxu0 0.0
  %2091 = vmatpush1.msra.mxu0 0.0
  %2092 = vmatprep.subr.mxu0 0.0
  %2093 = vmatpush1.msra.mxu0 0.0
  %2094 = vmatprep.subr.mxu0 0.0
  %2095 = vmatpush1.msra.mxu0 0.0
  %2096 = vmatprep.subr.mxu0 0.0
  %2097 = vmatpush1.msra.mxu0 0.0
  %2098 = vmatprep.subr.mxu0 0.0
  %2099 = vmatpush1.msra.mxu0 0.0
  %2100 = vmatprep.subr.mxu0 0.0
  %2101 = vmatpush1.msra.mxu0 0.0
  %2102 = vmatprep.subr.mxu0 0.0
  %2103 = vmatpush1.msra.mxu0 0.0
  %2104 = vmatprep.subr.mxu0 0.0
  %2105 = vmatpush1.msra.mxu0 0.0
  %2106 = vmatprep.subr.mxu0 0.0
  %2107 = vmatpush1.msra.mxu0 0.0
  %2108 = vmatprep.subr.mxu0 0.0
  %2109 = vmatpush1.msra.mxu0 0.0
  %2110 = vmatprep.subr.mxu0 0.0
  %2111 = vmatpush1.msra.mxu0 0.0
  %2112 = vmatprep.subr.mxu0 0.0
  %2113 = vmatpush1.msra.mxu0 0.0
  %2114 = vmatprep.subr.mxu0 0.0
  %2115 = vmatpush1.msra.mxu0 0.0
  %2116 = vmatprep.subr.mxu0 0.0
  %2117 = vmatpush1.msra.mxu0 0.0
  %2118 = vmatprep.subr.mxu0 0.0
  %2119 = vmatpush1.msra.mxu0 0.0
  %2120 = vmatprep.subr.mxu0 0.0
  %2121 = vmatpush1.msra.mxu0 0.0
  %2122 = vmatprep.subr.mxu0 0.0
  %2123 = vmatpush1.msra.mxu0 0.0
  %2124 = vmatprep.subr.mxu0 0.0
  %2125 = vmatpush1.msra.mxu0 0.0
  %2126 = vmatprep.subr.mxu0 0.0
  %2127 = vmatpush1.msra.mxu0 0.0
  %2128 = vmatprep.mubr.f32.mxu0 0.0
  %2129 = vmatmul.mubr.f32.gmra.mrb[0].mxu0 %v2062
  %v2130 = vpop.f32.mrb[0].mxu0
  %v2131 = vadd.f32 0.0, %v2130
  %v2132 = vpop.f32.mrb[0].mxu0
  %2133 = vdwg.mxu0
  %v2135 = vsel %vm1547, %v1686, 0
  %2137 = vmatprep.subr.mxu0 0.0
  %2138 = vmatpush1.msra.mxu0 %v1537
  %2139 = vmatprep.subr.mxu0 0.0
  %2140 = vmatpush1.msra.mxu0 0.0
  %2141 = vmatprep.subr.mxu0 0.0
  %2142 = vmatpush1.msra.mxu0 0.0
  %2143 = vmatprep.subr.mxu0 0.0
  %2144 = vmatpush1.msra.mxu0 0.0
  %2145 = vmatprep.subr.mxu0 0.0
  %2146 = vmatpush1.msra.mxu0 0.0
  %2147 = vmatprep.subr.mxu0 0.0
  %2148 = vmatpush1.msra.mxu0 0.0
  %2149 = vmatprep.subr.mxu0 0.0
  %2150 = vmatpush1.msra.mxu0 0.0
  %2151 = vmatprep.subr.mxu0 0.0
  %2152 = vmatpush1.msra.mxu0 0.0
  %2153 = vmatprep.subr.mxu0 0.0
  %2154 = vmatpush1.msra.mxu0 0.0
  %2155 = vmatprep.subr.mxu0 0.0
  %2156 = vmatpush1.msra.mxu0 0.0
  %2157 = vmatprep.subr.mxu0 0.0
  %2158 = vmatpush1.msra.mxu0 0.0
  %2159 = vmatprep.subr.mxu0 0.0
  %2160 = vmatpush1.msra.mxu0 0.0
  %2161 = vmatprep.subr.mxu0 0.0
  %2162 = vmatpush1.msra.mxu0 0.0
  %2163 = vmatprep.subr.mxu0 0.0
  %2164 = vmatpush1.msra.mxu0 0.0
  %2165 = vmatprep.subr.mxu0 0.0
  %2166 = vmatpush1.msra.mxu0 0.0
  %2167 = vmatprep.subr.mxu0 0.0
  %2168 = vmatpush1.msra.mxu0 0.0
  %2169 = vmatprep.subr.mxu0 0.0
  %2170 = vmatpush1.msra.mxu0 0.0
  %2171 = vmatprep.subr.mxu0 0.0
  %2172 = vmatpush1.msra.mxu0 0.0
  %2173 = vmatprep.subr.mxu0 0.0
  %2174 = vmatpush1.msra.mxu0 0.0
  %2175 = vmatprep.subr.mxu0 0.0
  %2176 = vmatpush1.msra.mxu0 0.0
  %2177 = vmatprep.subr.mxu0 0.0
  %2178 = vmatpush1.msra.mxu0 0.0
  %2179 = vmatprep.subr.mxu0 0.0
  %2180 = vmatpush1.msra.mxu0 0.0
  %2181 = vmatprep.subr.mxu0 0.0
  %2182 = vmatpush1.msra.mxu0 0.0
  %2183 = vmatprep.subr.mxu0 0.0
  %2184 = vmatpush1.msra.mxu0 0.0
  %2185 = vmatprep.subr.mxu0 0.0
  %2186 = vmatpush1.msra.mxu0 0.0
  %2187 = vmatprep.subr.mxu0 0.0
  %2188 = vmatpush1.msra.mxu0 0.0
  %2189 = vmatprep.subr.mxu0 0.0
  %2190 = vmatpush1.msra.mxu0 0.0
  %2191 = vmatprep.subr.mxu0 0.0
  %2192 = vmatpush1.msra.mxu0 0.0
  %2193 = vmatprep.subr.mxu0 0.0
  %2194 = vmatpush1.msra.mxu0 0.0
  %2195 = vmatprep.subr.mxu0 0.0
  %2196 = vmatpush1.msra.mxu0 0.0
  %2197 = vmatprep.subr.mxu0 0.0
  %2198 = vmatpush1.msra.mxu0 0.0
  %2199 = vmatprep.subr.mxu0 0.0
  %2200 = vmatpush1.msra.mxu0 0.0
  %2201 = vmatprep.mubr.f32.mxu0 0.0
  %2202 = vmatmul.mubr.f32.gmra.mrb[0].mxu0 %v2135
  %v2203 = vpop.f32.mrb[0].mxu0
  %v2204 = vadd.f32 0.0, %v2203
  %v2205 = vpop.f32.mrb[0].mxu0
  %2206 = vdwg.mxu0
  %v2208 = vsel %vm1547, %v1687, 0
  %2210 = vmatprep.subr.mxu0 0.0
  %2211 = vmatpush1.msra.mxu0 %v1538
  %2212 = vmatprep.subr.mxu0 0.0
  %2213 = vmatpush1.msra.mxu0 0.0
  %2214 = vmatprep.subr.mxu0 0.0
  %2215 = vmatpush1.msra.mxu0 0.0
  %2216 = vmatprep.subr.mxu0 0.0
  %2217 = vmatpush1.msra.mxu0 0.0
  %2218 = vmatprep.subr.mxu0 0.0
  %2219 = vmatpush1.msra.mxu0 0.0
  %2220 = vmatprep.subr.mxu0 0.0
  %2221 = vmatpush1.msra.mxu0 0.0
  %2222 = vmatprep.subr.mxu0 0.0
  %2223 = vmatpush1.msra.mxu0 0.0
  %2224 = vmatprep.subr.mxu0 0.0
  %2225 = vmatpush1.msra.mxu0 0.0
  %2226 = vmatprep.subr.mxu0 0.0
  %2227 = vmatpush1.msra.mxu0 0.0
  %2228 = vmatprep.subr.mxu0 0.0
  %2229 = vmatpush1.msra.mxu0 0.0
  %2230 = vmatprep.subr.mxu0 0.0
  %2231 = vmatpush1.msra.mxu0 0.0
  %2232 = vmatprep.subr.mxu0 0.0
  %2233 = vmatpush1.msra.mxu0 0.0
  %2234 = vmatprep.subr.mxu0 0.0
  %2235 = vmatpush1.msra.mxu0 0.0
  %2236 = vmatprep.subr.mxu0 0.0
  %2237 = vmatpush1.msra.mxu0 0.0
  %2238 = vmatprep.subr.mxu0 0.0
  %2239 = vmatpush1.msra.mxu0 0.0
  %2240 = vmatprep.subr.mxu0 0.0
  %2241 = vmatpush1.msra.mxu0 0.0
  %2242 = vmatprep.subr.mxu0 0.0
  %2243 = vmatpush1.msra.mxu0 0.0
  %2244 = vmatprep.subr.mxu0 0.0
  %2245 = vmatpush1.msra.mxu0 0.0
  %2246 = vmatprep.subr.mxu0 0.0
  %2247 = vmatpush1.msra.mxu0 0.0
  %2248 = vmatprep.subr.mxu0 0.0
  %2249 = vmatpush1.msra.mxu0 0.0
  %2250 = vmatprep.subr.mxu0 0.0
  %2251 = vmatpush1.msra.mxu0 0.0
  %2252 = vmatprep.subr.mxu0 0.0
  %2253 = vmatpush1.msra.mxu0 0.0
  %2254 = vmatprep.subr.mxu0 0.0
  %2255 = vmatpush1.msra.mxu0 0.0
  %2256 = vmatprep.subr.mxu0 0.0
  %2257 = vmatpush1.msra.mxu0 0.0
  %2258 = vmatprep.subr.mxu0 0.0
  %2259 = vmatpush1.msra.mxu0 0.0
  %2260 = vmatprep.subr.mxu0 0.0
  %2261 = vmatpush1.msra.mxu0 0.0
  %2262 = vmatprep.subr.mxu0 0.0
  %2263 = vmatpush1.msra.mxu0 0.0
  %2264 = vmatprep.subr.mxu0 0.0
  %2265 = vmatpush1.msra.mxu0 0.0
  %2266 = vmatprep.subr.mxu0 0.0
  %2267 = vmatpush1.msra.mxu0 0.0
  %2268 = vmatprep.subr.mxu0 0.0
  %2269 = vmatpush1.msra.mxu0 0.0
  %2270 = vmatprep.subr.mxu0 0.0
  %2271 = vmatpush1.msra.mxu0 0.0
  %2272 = vmatprep.subr.mxu0 0.0
  %2273 = vmatpush1.msra.mxu0 0.0
  %2274 = vmatprep.mubr.f32.mxu0 0.0
  %2275 = vmatmul.mubr.f32.gmra.mrb[0].mxu0 %v2208
  %v2276 = vpop.f32.mrb[0].mxu0
  %v2277 = vadd.f32 0.0, %v2276
  %v2278 = vpop.f32.mrb[0].mxu0
  %2279 = vdwg.mxu0
  %v2281 = vsel %vm1547, %v1688, 0
  %2283 = vmatprep.subr.mxu0 0.0
  %2284 = vmatpush1.msra.mxu0 %v1539
  %2285 = vmatprep.subr.mxu0 0.0
  %2286 = vmatpush1.msra.mxu0 0.0
  %2287 = vmatprep.subr.mxu0 0.0
  %2288 = vmatpush1.msra.mxu0 0.0
  %2289 = vmatprep.subr.mxu0 0.0
  %2290 = vmatpush1.msra.mxu0 0.0
  %2291 = vmatprep.subr.mxu0 0.0
  %2292 = vmatpush1.msra.mxu0 0.0
  %2293 = vmatprep.subr.mxu0 0.0
  %2294 = vmatpush1.msra.mxu0 0.0
  %2295 = vmatprep.subr.mxu0 0.0
  %2296 = vmatpush1.msra.mxu0 0.0
  %2297 = vmatprep.subr.mxu0 0.0
  %2298 = vmatpush1.msra.mxu0 0.0
  %2299 = vmatprep.subr.mxu0 0.0
  %2300 = vmatpush1.msra.mxu0 0.0
  %2301 = vmatprep.subr.mxu0 0.0
  %2302 = vmatpush1.msra.mxu0 0.0
  %2303 = vmatprep.subr.mxu0 0.0
  %2304 = vmatpush1.msra.mxu0 0.0
  %2305 = vmatprep.subr.mxu0 0.0
  %2306 = vmatpush1.msra.mxu0 0.0
  %2307 = vmatprep.subr.mxu0 0.0
  %2308 = vmatpush1.msra.mxu0 0.0
  %2309 = vmatprep.subr.mxu0 0.0
  %2310 = vmatpush1.msra.mxu0 0.0
  %2311 = vmatprep.subr.mxu0 0.0
  %2312 = vmatpush1.msra.mxu0 0.0
  %2313 = vmatprep.subr.mxu0 0.0
  %2314 = vmatpush1.msra.mxu0 0.0
  %2315 = vmatprep.subr.mxu0 0.0
  %2316 = vmatpush1.msra.mxu0 0.0
  %2317 = vmatprep.subr.mxu0 0.0
  %2318 = vmatpush1.msra.mxu0 0.0
  %2319 = vmatprep.subr.mxu0 0.0
  %2320 = vmatpush1.msra.mxu0 0.0
  %2321 = vmatprep.subr.mxu0 0.0
  %2322 = vmatpush1.msra.mxu0 0.0
  %2323 = vmatprep.subr.mxu0 0.0
  %2324 = vmatpush1.msra.mxu0 0.0
  %2325 = vmatprep.subr.mxu0 0.0
  %2326 = vmatpush1.msra.mxu0 0.0
  %2327 = vmatprep.subr.mxu0 0.0
  %2328 = vmatpush1.msra.mxu0 0.0
  %2329 = vmatprep.subr.mxu0 0.0
  %2330 = vmatpush1.msra.mxu0 0.0
  %2331 = vmatprep.subr.mxu0 0.0
  %2332 = vmatpush1.msra.mxu0 0.0
  %2333 = vmatprep.subr.mxu0 0.0
  %2334 = vmatpush1.msra.mxu0 0.0
  %2335 = vmatprep.subr.mxu0 0.0
  %2336 = vmatpush1.msra.mxu0 0.0
  %2337 = vmatprep.subr.mxu0 0.0
  %2338 = vmatpush1.msra.mxu0 0.0
  %2339 = vmatprep.subr.mxu0 0.0
  %2340 = vmatpush1.msra.mxu0 0.0
  %2341 = vmatprep.subr.mxu0 0.0
  %2342 = vmatpush1.msra.mxu0 0.0
  %2343 = vmatprep.subr.mxu0 0.0
  %2344 = vmatpush1.msra.mxu0 0.0
  %2345 = vmatprep.subr.mxu0 0.0
  %2346 = vmatpush1.msra.mxu0 0.0
  %2347 = vmatprep.mubr.f32.mxu0 0.0
  %2348 = vmatmul.mubr.f32.gmra.mrb[0].mxu0 %v2281
  %v2349 = vpop.f32.mrb[0].mxu0
  %v2350 = vadd.f32 0.0, %v2349
  %v2351 = vpop.f32.mrb[0].mxu0
  %2352 = vdwg.mxu0
  %v2354 = vsel %vm1547, %v1689, 0
  %2356 = vmatprep.subr.mxu0 0.0
  %2357 = vmatpush1.msra.mxu0 %v1540
  %2358 = vmatprep.subr.mxu0 0.0
  %2359 = vmatpush1.msra.mxu0 0.0
  %2360 = vmatprep.subr.mxu0 0.0
  %2361 = vmatpush1.msra.mxu0 0.0
  %2362 = vmatprep.subr.mxu0 0.0
  %2363 = vmatpush1.msra.mxu0 0.0
  %2364 = vmatprep.subr.mxu0 0.0
  %2365 = vmatpush1.msra.mxu0 0.0
  %2366 = vmatprep.subr.mxu0 0.0
  %2367 = vmatpush1.msra.mxu0 0.0
  %2368 = vmatprep.subr.mxu0 0.0
  %2369 = vmatpush1.msra.mxu0 0.0
  %2370 = vmatprep.subr.mxu0 0.0
  %2371 = vmatpush1.msra.mxu0 0.0
  %2372 = vmatprep.subr.mxu0 0.0
  %2373 = vmatpush1.msra.mxu0 0.0
  %2374 = vmatprep.subr.mxu0 0.0
  %2375 = vmatpush1.msra.mxu0 0.0
  %2376 = vmatprep.subr.mxu0 0.0
  %2377 = vmatpush1.msra.mxu0 0.0
  %2378 = vmatprep.subr.mxu0 0.0
  %2379 = vmatpush1.msra.mxu0 0.0
  %2380 = vmatprep.subr.mxu0 0.0
  %2381 = vmatpush1.msra.mxu0 0.0
  %2382 = vmatprep.subr.mxu0 0.0
  %2383 = vmatpush1.msra.mxu0 0.0
  %2384 = vmatprep.subr.mxu0 0.0
  %2385 = vmatpush1.msra.mxu0 0.0
  %2386 = vmatprep.subr.mxu0 0.0
  %2387 = vmatpush1.msra.mxu0 0.0
  %2388 = vmatprep.subr.mxu0 0.0
  %2389 = vmatpush1.msra.mxu0 0.0
  %2390 = vmatprep.subr.mxu0 0.0
  %2391 = vmatpush1.msra.mxu0 0.0
  %2392 = vmatprep.subr.mxu0 0.0
  %2393 = vmatpush1.msra.mxu0 0.0
  %2394 = vmatprep.subr.mxu0 0.0
  %2395 = vmatpush1.msra.mxu0 0.0
  %2396 = vmatprep.subr.mxu0 0.0
  %2397 = vmatpush1.msra.mxu0 0.0
  %2398 = vmatprep.subr.mxu0 0.0
  %2399 = vmatpush1.msra.mxu0 0.0
  %2400 = vmatprep.subr.mxu0 0.0
  %2401 = vmatpush1.msra.mxu0 0.0
  %2402 = vmatprep.subr.mxu0 0.0
  %2403 = vmatpush1.msra.mxu0 0.0
  %2404 = vmatprep.subr.mxu0 0.0
  %2405 = vmatpush1.msra.mxu0 0.0
  %2406 = vmatprep.subr.mxu0 0.0
  %2407 = vmatpush1.msra.mxu0 0.0
  %2408 = vmatprep.subr.mxu0 0.0
  %2409 = vmatpush1.msra.mxu0 0.0
  %2410 = vmatprep.subr.mxu0 0.0
  %2411 = vmatpush1.msra.mxu0 0.0
  %2412 = vmatprep.subr.mxu0 0.0
  %2413 = vmatpush1.msra.mxu0 0.0
  %2414 = vmatprep.subr.mxu0 0.0
  %2415 = vmatpush1.msra.mxu0 0.0
  %2416 = vmatprep.subr.mxu0 0.0
  %2417 = vmatpush1.msra.mxu0 0.0
  %2418 = vmatprep.subr.mxu0 0.0
  %2419 = vmatpush1.msra.mxu0 0.0
  %2420 = vmatprep.mubr.f32.mxu0 0.0
  %2421 = vmatmul.mubr.f32.gmra.mrb[0].mxu0 %v2354
  %v2422 = vpop.f32.mrb[0].mxu0
  %v2423 = vadd.f32 0.0, %v2422
  %v2424 = vpop.f32.mrb[0].mxu0
  %2425 = vdwg.mxu0
  %v2427 = vsel %vm1547, %v1690, 0
  %2429 = vmatprep.subr.mxu0 0.0
  %2430 = vmatpush1.msra.mxu0 %v1541
  %2431 = vmatprep.subr.mxu0 0.0
  %2432 = vmatpush1.msra.mxu0 0.0
  %2433 = vmatprep.subr.mxu0 0.0
  %2434 = vmatpush1.msra.mxu0 0.0
  %2435 = vmatprep.subr.mxu0 0.0
  %2436 = vmatpush1.msra.mxu0 0.0
  %2437 = vmatprep.subr.mxu0 0.0
  %2438 = vmatpush1.msra.mxu0 0.0
  %2439 = vmatprep.subr.mxu0 0.0
  %2440 = vmatpush1.msra.mxu0 0.0
  %2441 = vmatprep.subr.mxu0 0.0
  %2442 = vmatpush1.msra.mxu0 0.0
  %2443 = vmatprep.subr.mxu0 0.0
  %2444 = vmatpush1.msra.mxu0 0.0
  %2445 = vmatprep.subr.mxu0 0.0
  %2446 = vmatpush1.msra.mxu0 0.0
  %2447 = vmatprep.subr.mxu0 0.0
  %2448 = vmatpush1.msra.mxu0 0.0
  %2449 = vmatprep.subr.mxu0 0.0
  %2450 = vmatpush1.msra.mxu0 0.0
  %2451 = vmatprep.subr.mxu0 0.0
  %2452 = vmatpush1.msra.mxu0 0.0
  %2453 = vmatprep.subr.mxu0 0.0
  %2454 = vmatpush1.msra.mxu0 0.0
  %2455 = vmatprep.subr.mxu0 0.0
  %2456 = vmatpush1.msra.mxu0 0.0
  %2457 = vmatprep.subr.mxu0 0.0
  %2458 = vmatpush1.msra.mxu0 0.0
  %2459 = vmatprep.subr.mxu0 0.0
  %2460 = vmatpush1.msra.mxu0 0.0
  %2461 = vmatprep.subr.mxu0 0.0
  %2462 = vmatpush1.msra.mxu0 0.0
  %2463 = vmatprep.subr.mxu0 0.0
  %2464 = vmatpush1.msra.mxu0 0.0
  %2465 = vmatprep.subr.mxu0 0.0
  %2466 = vmatpush1.msra.mxu0 0.0
  %2467 = vmatprep.subr.mxu0 0.0
  %2468 = vmatpush1.msra.mxu0 0.0
  %2469 = vmatprep.subr.mxu0 0.0
  %2470 = vmatpush1.msra.mxu0 0.0
  %2471 = vmatprep.subr.mxu0 0.0
  %2472 = vmatpush1.msra.mxu0 0.0
  %2473 = vmatprep.subr.mxu0 0.0
  %2474 = vmatpush1.msra.mxu0 0.0
  %2475 = vmatprep.subr.mxu0 0.0
  %2476 = vmatpush1.msra.mxu0 0.0
  %2477 = vmatprep.subr.mxu0 0.0
  %2478 = vmatpush1.msra.mxu0 0.0
  %2479 = vmatprep.subr.mxu0 0.0
  %2480 = vmatpush1.msra.mxu0 0.0
  %2481 = vmatprep.subr.mxu0 0.0
  %2482 = vmatpush1.msra.mxu0 0.0
  %2483 = vmatprep.subr.mxu0 0.0
  %2484 = vmatpush1.msra.mxu0 0.0
  %2485 = vmatprep.subr.mxu0 0.0
  %2486 = vmatpush1.msra.mxu0 0.0
  %2487 = vmatprep.subr.mxu0 0.0
  %2488 = vmatpush1.msra.mxu0 0.0
  %2489 = vmatprep.subr.mxu0 0.0
  %2490 = vmatpush1.msra.mxu0 0.0
  %2491 = vmatprep.subr.mxu0 0.0
  %2492 = vmatpush1.msra.mxu0 0.0
  %2493 = vmatprep.mubr.f32.mxu0 0.0
  %2494 = vmatmul.mubr.f32.gmra.mrb[0].mxu0 %v2427
  %v2495 = vpop.f32.mrb[0].mxu0
  %v2496 = vadd.f32 0.0, %v2495
  %v2497 = vpop.f32.mrb[0].mxu0
  %2498 = vdwg.mxu0
  %v2500 = vsel %vm1547, %v1691, 0
  %2502 = vmatprep.subr.mxu0 0.0
  %2503 = vmatpush1.msra.mxu0 %v1542
  %2504 = vmatprep.subr.mxu0 0.0
  %2505 = vmatpush1.msra.mxu0 0.0
  %2506 = vmatprep.subr.mxu0 0.0
  %2507 = vmatpush1.msra.mxu0 0.0
  %2508 = vmatprep.subr.mxu0 0.0
  %2509 = vmatpush1.msra.mxu0 0.0
  %2510 = vmatprep.subr.mxu0 0.0
  %2511 = vmatpush1.msra.mxu0 0.0
  %2512 = vmatprep.subr.mxu0 0.0
  %2513 = vmatpush1.msra.mxu0 0.0
  %2514 = vmatprep.subr.mxu0 0.0
  %2515 = vmatpush1.msra.mxu0 0.0
  %2516 = vmatprep.subr.mxu0 0.0
  %2517 = vmatpush1.msra.mxu0 0.0
  %2518 = vmatprep.subr.mxu0 0.0
  %2519 = vmatpush1.msra.mxu0 0.0
  %2520 = vmatprep.subr.mxu0 0.0
  %2521 = vmatpush1.msra.mxu0 0.0
  %2522 = vmatprep.subr.mxu0 0.0
  %2523 = vmatpush1.msra.mxu0 0.0
  %2524 = vmatprep.subr.mxu0 0.0
  %2525 = vmatpush1.msra.mxu0 0.0
  %2526 = vmatprep.subr.mxu0 0.0
  %2527 = vmatpush1.msra.mxu0 0.0
  %2528 = vmatprep.subr.mxu0 0.0
  %2529 = vmatpush1.msra.mxu0 0.0
  %2530 = vmatprep.subr.mxu0 0.0
  %2531 = vmatpush1.msra.mxu0 0.0
  %2532 = vmatprep.subr.mxu0 0.0
  %2533 = vmatpush1.msra.mxu0 0.0
  %2534 = vmatprep.subr.mxu0 0.0
  %2535 = vmatpush1.msra.mxu0 0.0
  %2536 = vmatprep.subr.mxu0 0.0
  %2537 = vmatpush1.msra.mxu0 0.0
  %2538 = vmatprep.subr.mxu0 0.0
  %2539 = vmatpush1.msra.mxu0 0.0
  %2540 = vmatprep.subr.mxu0 0.0
  %2541 = vmatpush1.msra.mxu0 0.0
  %2542 = vmatprep.subr.mxu0 0.0
  %2543 = vmatpush1.msra.mxu0 0.0
  %2544 = vmatprep.subr.mxu0 0.0
  %2545 = vmatpush1.msra.mxu0 0.0
  %2546 = vmatprep.subr.mxu0 0.0
  %2547 = vmatpush1.msra.mxu0 0.0
  %2548 = vmatprep.subr.mxu0 0.0
  %2549 = vmatpush1.msra.mxu0 0.0
  %2550 = vmatprep.subr.mxu0 0.0
  %2551 = vmatpush1.msra.mxu0 0.0
  %2552 = vmatprep.subr.mxu0 0.0
  %2553 = vmatpush1.msra.mxu0 0.0
  %2554 = vmatprep.subr.mxu0 0.0
  %2555 = vmatpush1.msra.mxu0 0.0
  %2556 = vmatprep.subr.mxu0 0.0
  %2557 = vmatpush1.msra.mxu0 0.0
  %2558 = vmatprep.subr.mxu0 0.0
  %2559 = vmatpush1.msra.mxu0 0.0
  %2560 = vmatprep.subr.mxu0 0.0
  %2561 = vmatpush1.msra.mxu0 0.0
  %2562 = vmatprep.subr.mxu0 0.0
  %2563 = vmatpush1.msra.mxu0 0.0
  %2564 = vmatprep.subr.mxu0 0.0
  %2565 = vmatpush1.msra.mxu0 0.0
  %2566 = vmatprep.mubr.f32.mxu0 0.0
  %2567 = vmatmul.mubr.f32.gmra.mrb[0].mxu0 %v2500
  %v2568 = vpop.f32.mrb[0].mxu0
  %v2569 = vadd.f32 0.0, %v2568
  %v2570 = vpop.f32.mrb[0].mxu0
  %2571 = vdwg.mxu0
  %v2573 = vsel %vm1547, %v1692, 0
  %2575 = vmatprep.subr.mxu0 0.0
  %2576 = vmatpush1.msra.mxu0 %v1543
  %2577 = vmatprep.subr.mxu0 0.0
  %2578 = vmatpush1.msra.mxu0 0.0
  %2579 = vmatprep.subr.mxu0 0.0
  %2580 = vmatpush1.msra.mxu0 0.0
  %2581 = vmatprep.subr.mxu0 0.0
  %2582 = vmatpush1.msra.mxu0 0.0
  %2583 = vmatprep.subr.mxu0 0.0
  %2584 = vmatpush1.msra.mxu0 0.0
  %2585 = vmatprep.subr.mxu0 0.0
  %2586 = vmatpush1.msra.mxu0 0.0
  %2587 = vmatprep.subr.mxu0 0.0
  %2588 = vmatpush1.msra.mxu0 0.0
  %2589 = vmatprep.subr.mxu0 0.0
  %2590 = vmatpush1.msra.mxu0 0.0
  %2591 = vmatprep.subr.mxu0 0.0
  %2592 = vmatpush1.msra.mxu0 0.0
  %2593 = vmatprep.subr.mxu0 0.0
  %2594 = vmatpush1.msra.mxu0 0.0
  %2595 = vmatprep.subr.mxu0 0.0
  %2596 = vmatpush1.msra.mxu0 0.0
  %2597 = vmatprep.subr.mxu0 0.0
  %2598 = vmatpush1.msra.mxu0 0.0
  %2599 = vmatprep.subr.mxu0 0.0
  %2600 = vmatpush1.msra.mxu0 0.0
  %2601 = vmatprep.subr.mxu0 0.0
  %2602 = vmatpush1.msra.mxu0 0.0
  %2603 = vmatprep.subr.mxu0 0.0
  %2604 = vmatpush1.msra.mxu0 0.0
  %2605 = vmatprep.subr.mxu0 0.0
  %2606 = vmatpush1.msra.mxu0 0.0
  %2607 = vmatprep.subr.mxu0 0.0
  %2608 = vmatpush1.msra.mxu0 0.0
  %2609 = vmatprep.subr.mxu0 0.0
  %2610 = vmatpush1.msra.mxu0 0.0
  %2611 = vmatprep.subr.mxu0 0.0
  %2612 = vmatpush1.msra.mxu0 0.0
  %2613 = vmatprep.subr.mxu0 0.0
  %2614 = vmatpush1.msra.mxu0 0.0
  %2615 = vmatprep.subr.mxu0 0.0
  %2616 = vmatpush1.msra.mxu0 0.0
  %2617 = vmatprep.subr.mxu0 0.0
  %2618 = vmatpush1.msra.mxu0 0.0
  %2619 = vmatprep.subr.mxu0 0.0
  %2620 = vmatpush1.msra.mxu0 0.0
  %2621 = vmatprep.subr.mxu0 0.0
  %2622 = vmatpush1.msra.mxu0 0.0
  %2623 = vmatprep.subr.mxu0 0.0
  %2624 = vmatpush1.msra.mxu0 0.0
  %2625 = vmatprep.subr.mxu0 0.0
  %2626 = vmatpush1.msra.mxu0 0.0
  %2627 = vmatprep.subr.mxu0 0.0
  %2628 = vmatpush1.msra.mxu0 0.0
  %2629 = vmatprep.subr.mxu0 0.0
  %2630 = vmatpush1.msra.mxu0 0.0
  %2631 = vmatprep.subr.mxu0 0.0
  %2632 = vmatpush1.msra.mxu0 0.0
  %2633 = vmatprep.subr.mxu0 0.0
  %2634 = vmatpush1.msra.mxu0 0.0
  %2635 = vmatprep.subr.mxu0 0.0
  %2636 = vmatpush1.msra.mxu0 0.0
  %2637 = vmatprep.subr.mxu0 0.0
  %2638 = vmatpush1.msra.mxu0 0.0
  %2639 = vmatprep.mubr.f32.mxu0 0.0
  %2640 = vmatmul.mubr.f32.gmra.mrb[0].mxu0 %v2573
  %v2641 = vpop.f32.mrb[0].mxu0
  %v2642 = vadd.f32 0.0, %v2641
  %v2643 = vpop.f32.mrb[0].mxu0
  %2644 = vdwg.mxu0
  %v2646 = vsel %vm1547, %v1693, 0
  %2648 = vmatprep.subr.mxu0 0.0
  %2649 = vmatpush1.msra.mxu0 %v1544
  %2650 = vmatprep.subr.mxu0 0.0
  %2651 = vmatpush1.msra.mxu0 0.0
  %2652 = vmatprep.subr.mxu0 0.0
  %2653 = vmatpush1.msra.mxu0 0.0
  %2654 = vmatprep.subr.mxu0 0.0
  %2655 = vmatpush1.msra.mxu0 0.0
  %2656 = vmatprep.subr.mxu0 0.0
  %2657 = vmatpush1.msra.mxu0 0.0
  %2658 = vmatprep.subr.mxu0 0.0
  %2659 = vmatpush1.msra.mxu0 0.0
  %2660 = vmatprep.subr.mxu0 0.0
  %2661 = vmatpush1.msra.mxu0 0.0
  %2662 = vmatprep.subr.mxu0 0.0
  %2663 = vmatpush1.msra.mxu0 0.0
  %2664 = vmatprep.subr.mxu0 0.0
  %2665 = vmatpush1.msra.mxu0 0.0
  %2666 = vmatprep.subr.mxu0 0.0
  %2667 = vmatpush1.msra.mxu0 0.0
  %2668 = vmatprep.subr.mxu0 0.0
  %2669 = vmatpush1.msra.mxu0 0.0
  %2670 = vmatprep.subr.mxu0 0.0
  %2671 = vmatpush1.msra.mxu0 0.0
  %2672 = vmatprep.subr.mxu0 0.0
  %2673 = vmatpush1.msra.mxu0 0.0
  %2674 = vmatprep.subr.mxu0 0.0
  %2675 = vmatpush1.msra.mxu0 0.0
  %2676 = vmatprep.subr.mxu0 0.0
  %2677 = vmatpush1.msra.mxu0 0.0
  %2678 = vmatprep.subr.mxu0 0.0
  %2679 = vmatpush1.msra.mxu0 0.0
  %2680 = vmatprep.subr.mxu0 0.0
  %2681 = vmatpush1.msra.mxu0 0.0
  %2682 = vmatprep.subr.mxu0 0.0
  %2683 = vmatpush1.msra.mxu0 0.0
  %2684 = vmatprep.subr.mxu0 0.0
  %2685 = vmatpush1.msra.mxu0 0.0
  %2686 = vmatprep.subr.mxu0 0.0
  %2687 = vmatpush1.msra.mxu0 0.0
  %2688 = vmatprep.subr.mxu0 0.0
  %2689 = vmatpush1.msra.mxu0 0.0
  %2690 = vmatprep.subr.mxu0 0.0
  %2691 = vmatpush1.msra.mxu0 0.0
  %2692 = vmatprep.subr.mxu0 0.0
  %2693 = vmatpush1.msra.mxu0 0.0
  %2694 = vmatprep.subr.mxu0 0.0
  %2695 = vmatpush1.msra.mxu0 0.0
  %2696 = vmatprep.subr.mxu0 0.0
  %2697 = vmatpush1.msra.mxu0 0.0
  %2698 = vmatprep.subr.mxu0 0.0
  %2699 = vmatpush1.msra.mxu0 0.0
  %2700 = vmatprep.subr.mxu0 0.0
  %2701 = vmatpush1.msra.mxu0 0.0
  %2702 = vmatprep.subr.mxu0 0.0
  %2703 = vmatpush1.msra.mxu0 0.0
  %2704 = vmatprep.subr.mxu0 0.0
  %2705 = vmatpush1.msra.mxu0 0.0
  %2706 = vmatprep.subr.mxu0 0.0
  %2707 = vmatpush1.msra.mxu0 0.0
  %2708 = vmatprep.subr.mxu0 0.0
  %2709 = vmatpush1.msra.mxu0 0.0
  %2710 = vmatprep.subr.mxu0 0.0
  %2711 = vmatpush1.msra.mxu0 0.0
  %2712 = vmatprep.mubr.f32.mxu0 0.0
  %2713 = vmatmul.mubr.f32.gmra.mrb[0].mxu0 %v2646
  %v2714 = vpop.f32.mrb[0].mxu0
  %v2715 = vadd.f32 0.0, %v2714
  %v2716 = vpop.f32.mrb[0].mxu0
  %2717 = vdwg.mxu0
  %v2719 = vsel %vm1547, %v1694, 0
  %2721 = vmatprep.subr.mxu0 0.0
  %2722 = vmatpush1.msra.mxu0 %v1545
  %2723 = vmatprep.subr.mxu0 0.0
  %2724 = vmatpush1.msra.mxu0 0.0
  %2725 = vmatprep.subr.mxu0 0.0
  %2726 = vmatpush1.msra.mxu0 0.0
  %2727 = vmatprep.subr.mxu0 0.0
  %2728 = vmatpush1.msra.mxu0 0.0
  %2729 = vmatprep.subr.mxu0 0.0
  %2730 = vmatpush1.msra.mxu0 0.0
  %2731 = vmatprep.subr.mxu0 0.0
  %2732 = vmatpush1.msra.mxu0 0.0
  %2733 = vmatprep.subr.mxu0 0.0
  %2734 = vmatpush1.msra.mxu0 0.0
  %2735 = vmatprep.subr.mxu0 0.0
  %2736 = vmatpush1.msra.mxu0 0.0
  %2737 = vmatprep.subr.mxu0 0.0
  %2738 = vmatpush1.msra.mxu0 0.0
  %2739 = vmatprep.subr.mxu0 0.0
  %2740 = vmatpush1.msra.mxu0 0.0
  %2741 = vmatprep.subr.mxu0 0.0
  %2742 = vmatpush1.msra.mxu0 0.0
  %2743 = vmatprep.subr.mxu0 0.0
  %2744 = vmatpush1.msra.mxu0 0.0
  %2745 = vmatprep.subr.mxu0 0.0
  %2746 = vmatpush1.msra.mxu0 0.0
  %2747 = vmatprep.subr.mxu0 0.0
  %2748 = vmatpush1.msra.mxu0 0.0
  %2749 = vmatprep.subr.mxu0 0.0
  %2750 = vmatpush1.msra.mxu0 0.0
  %2751 = vmatprep.subr.mxu0 0.0
  %2752 = vmatpush1.msra.mxu0 0.0
  %2753 = vmatprep.subr.mxu0 0.0
  %2754 = vmatpush1.msra.mxu0 0.0
  %2755 = vmatprep.subr.mxu0 0.0
  %2756 = vmatpush1.msra.mxu0 0.0
  %2757 = vmatprep.subr.mxu0 0.0
  %2758 = vmatpush1.msra.mxu0 0.0
  %2759 = vmatprep.subr.mxu0 0.0
  %2760 = vmatpush1.msra.mxu0 0.0
  %2761 = vmatprep.subr.mxu0 0.0
  %2762 = vmatpush1.msra.mxu0 0.0
  %2763 = vmatprep.subr.mxu0 0.0
  %2764 = vmatpush1.msra.mxu0 0.0
  %2765 = vmatprep.subr.mxu0 0.0
  %2766 = vmatpush1.msra.mxu0 0.0
  %2767 = vmatprep.subr.mxu0 0.0
  %2768 = vmatpush1.msra.mxu0 0.0
  %2769 = vmatprep.subr.mxu0 0.0
  %2770 = vmatpush1.msra.mxu0 0.0
  %2771 = vmatprep.subr.mxu0 0.0
  %2772 = vmatpush1.msra.mxu0 0.0
  %2773 = vmatprep.subr.mxu0 0.0
  %2774 = vmatpush1.msra.mxu0 0.0
  %2775 = vmatprep.subr.mxu0 0.0
  %2776 = vmatpush1.msra.mxu0 0.0
  %2777 = vmatprep.subr.mxu0 0.0
  %2778 = vmatpush1.msra.mxu0 0.0
  %2779 = vmatprep.subr.mxu0 0.0
  %2780 = vmatpush1.msra.mxu0 0.0
  %2781 = vmatprep.subr.mxu0 0.0
  %2782 = vmatpush1.msra.mxu0 0.0
  %2783 = vmatprep.subr.mxu0 0.0
  %2784 = vmatpush1.msra.mxu0 0.0
  %2785 = vmatprep.mubr.f32.mxu0 0.0
  %2786 = vmatmul.mubr.f32.gmra.mrb[0].mxu0 %v2719
  %v2787 = vpop.f32.mrb[0].mxu0
  %v2788 = vadd.f32 0.0, %v2787
  %v2789 = vpop.f32.mrb[0].mxu0
  %2790 = vdwg.mxu0
  %v2792 = vsel %vm1547, %v1695, 0
  %2794 = vmatprep.subr.mxu0 0.0
  %2795 = vmatpush1.msra.mxu0 %v1546
  %2796 = vmatprep.subr.mxu0 0.0
  %2797 = vmatpush1.msra.mxu0 0.0
  %2798 = vmatprep.subr.mxu0 0.0
  %2799 = vmatpush1.msra.mxu0 0.0
  %2800 = vmatprep.subr.mxu0 0.0
  %2801 = vmatpush1.msra.mxu0 0.0
  %2802 = vmatprep.subr.mxu0 0.0
  %2803 = vmatpush1.msra.mxu0 0.0
  %2804 = vmatprep.subr.mxu0 0.0
  %2805 = vmatpush1.msra.mxu0 0.0
  %2806 = vmatprep.subr.mxu0 0.0
  %2807 = vmatpush1.msra.mxu0 0.0
  %2808 = vmatprep.subr.mxu0 0.0
  %2809 = vmatpush1.msra.mxu0 0.0
  %2810 = vmatprep.subr.mxu0 0.0
  %2811 = vmatpush1.msra.mxu0 0.0
  %2812 = vmatprep.subr.mxu0 0.0
  %2813 = vmatpush1.msra.mxu0 0.0
  %2814 = vmatprep.subr.mxu0 0.0
  %2815 = vmatpush1.msra.mxu0 0.0
  %2816 = vmatprep.subr.mxu0 0.0
  %2817 = vmatpush1.msra.mxu0 0.0
  %2818 = vmatprep.subr.mxu0 0.0
  %2819 = vmatpush1.msra.mxu0 0.0
  %2820 = vmatprep.subr.mxu0 0.0
  %2821 = vmatpush1.msra.mxu0 0.0
  %2822 = vmatprep.subr.mxu0 0.0
  %2823 = vmatpush1.msra.mxu0 0.0
  %2824 = vmatprep.subr.mxu0 0.0
  %2825 = vmatpush1.msra.mxu0 0.0
  %2826 = vmatprep.subr.mxu0 0.0
  %2827 = vmatpush1.msra.mxu0 0.0
  %2828 = vmatprep.subr.mxu0 0.0
  %2829 = vmatpush1.msra.mxu0 0.0
  %2830 = vmatprep.subr.mxu0 0.0
  %2831 = vmatpush1.msra.mxu0 0.0
  %2832 = vmatprep.subr.mxu0 0.0
  %2833 = vmatpush1.msra.mxu0 0.0
  %2834 = vmatprep.subr.mxu0 0.0
  %2835 = vmatpush1.msra.mxu0 0.0
  %2836 = vmatprep.subr.mxu0 0.0
  %2837 = vmatpush1.msra.mxu0 0.0
  %2838 = vmatprep.subr.mxu0 0.0
  %2839 = vmatpush1.msra.mxu0 0.0
  %2840 = vmatprep.subr.mxu0 0.0
  %2841 = vmatpush1.msra.mxu0 0.0
  %2842 = vmatprep.subr.mxu0 0.0
  %2843 = vmatpush1.msra.mxu0 0.0
  %2844 = vmatprep.subr.mxu0 0.0
  %2845 = vmatpush1.msra.mxu0 0.0
  %2846 = vmatprep.subr.mxu0 0.0
  %2847 = vmatpush1.msra.mxu0 0.0
  %2848 = vmatprep.subr.mxu0 0.0
  %2849 = vmatpush1.msra.mxu0 0.0
  %2850 = vmatprep.subr.mxu0 0.0
  %2851 = vmatpush1.msra.mxu0 0.0
  %2852 = vmatprep.subr.mxu0 0.0
  %2853 = vmatpush1.msra.mxu0 0.0
  %2854 = vmatprep.subr.mxu0 0.0
  %2855 = vmatpush1.msra.mxu0 0.0
  %2856 = vmatprep.subr.mxu0 0.0
  %2857 = vmatpush1.msra.mxu0 0.0
  %2858 = vmatprep.mubr.f32.mxu0 0.0
  %2859 = vmatmul.mubr.f32.gmra.mrb[0].mxu0 %v2792
  %v2860 = vpop.f32.mrb[0].mxu0
  %v2861 = vadd.f32 0.0, %v2860
  %v2862 = vpop.f32.mrb[0].mxu0
  %2863 = vdwg.mxu0
  %v2864 = vld [vmem:[%s3] sm:$0xf]
  %v2865 = vld [vmem:[%s3 + $0x4] sm:$0xf]
  %v2866 = vpack.c.bf16 %v1766, %v1766
  %v2867 = vpack.c.bf16 %v1839, %v1839
  %v2868 = vpack.c.bf16 %v1912, %v1912
  %v2869 = vpack.c.bf16 %v1985, %v1985
  %v2870 = vpack.c.bf16 %v2058, %v2058
  %v2871 = vpack.c.bf16 %v2131, %v2131
  %v2872 = vpack.c.bf16 %v2204, %v2204
  %v2873 = vpack.c.bf16 %v2277, %v2277
  %v2874 = vpack.c.bf16 %v2350, %v2350
  %v2875 = vpack.c.bf16 %v2423, %v2423
  %v2876 = vpack.c.bf16 %v2496, %v2496
  %v2877 = vpack.c.bf16 %v2569, %v2569
  %v2878 = vpack.c.bf16 %v2642, %v2642
  %v2879 = vpack.c.bf16 %v2715, %v2715
  %v2880 = vpack.c.bf16 %v2788, %v2788
  %v2881 = vpack.c.bf16 %v2861, %v2861
  %v2898 = vunpack.c.l.b16 %v2866
  %v2899 = vunpack.c.l.b16 %v2867
  %v2900 = vunpack.c.l.b16 %v2868
  %v2901 = vunpack.c.l.b16 %v2869
  %v2902 = vunpack.c.l.b16 %v2870
  %v2903 = vunpack.c.l.b16 %v2871
  %v2904 = vunpack.c.l.b16 %v2872
  %v2905 = vunpack.c.l.b16 %v2873
  %v2906 = vunpack.c.l.b16 %v2874
  %v2907 = vunpack.c.l.b16 %v2875
  %v2908 = vunpack.c.l.b16 %v2876
  %v2909 = vunpack.c.l.b16 %v2877
  %v2910 = vunpack.c.l.b16 %v2878
  %v2911 = vunpack.c.l.b16 %v2879
  %v2912 = vunpack.c.l.b16 %v2880
  %v2913 = vunpack.c.l.b16 %v2881
  %v2914 = vrot.slane %v2899, 7
  %vm2915 = vcmask 1041409
  %v2916 = vsel %vm2915, %v2914, %v2898
  %v2917 = vrot.slane %v2900, 6
  %vm2918 = vcmask 1042434
  %v2919 = vsel %vm2918, %v2917, %v2916
  %v2920 = vrot.slane %v2901, 5
  %vm2921 = vcmask 1043459
  %v2922 = vsel %vm2921, %v2920, %v2919
  %v2923 = vrot.slane %v2902, 4
  %vm2924 = vcmask 1044484
  %v2925 = vsel %vm2924, %v2923, %v2922
  %v2926 = vrot.slane %v2903, 3
  %vm2927 = vcmask 1045509
  %v2928 = vsel %vm2927, %v2926, %v2925
  %v2929 = vrot.slane %v2904, 2
  %vm2930 = vcmask 1046534
  %v2931 = vsel %vm2930, %v2929, %v2928
  %v2932 = vrot.slane %v2905, 1
  %vm2933 = vcmask 1047559
  %v2934 = vsel %vm2933, %v2932, %v2931
  %v2935 = vrot.slane %v2907, 7
  %v2936 = vsel %vm2915, %v2935, %v2906
  %v2937 = vrot.slane %v2908, 6
  %v2938 = vsel %vm2918, %v2937, %v2936
  %v2939 = vrot.slane %v2909, 5
  %v2940 = vsel %vm2921, %v2939, %v2938
  %v2941 = vrot.slane %v2910, 4
  %v2942 = vsel %vm2924, %v2941, %v2940
  %v2943 = vrot.slane %v2911, 3
  %v2944 = vsel %vm2927, %v2943, %v2942
  %v2945 = vrot.slane %v2912, 2
  %v2946 = vsel %vm2930, %v2945, %v2944
  %v2947 = vrot.slane %v2913, 1
  %v2948 = vsel %vm2933, %v2947, %v2946
  %v2949 = vpack.c.b16 %v2948, %v2934
  %v2952 = vunpack.c.l.b16 %v2864
  %v2953 = vunpack.c.l.b16 %v2865
  %v2954 = vpack.c.b16 %v2953, %v2952
  %vm2955 = vcmask 261120
  %v2957 = vsel %vm2955, %v2949, 0
  %v2960 = vsel %vm2955, %v2954, 0
  %2962 = vmatprep.subr.bf16.mxu0 0
  %2963 = vmatpush1.bf16.xpose.msra.mxu0 %v2960
  %2964 = vmatprep.subr.bf16.mxu0 0
  %2965 = vmatpush1.bf16.xpose.msra.mxu0 0
  %2966 = vmatprep.subr.bf16.mxu0 0
  %2967 = vmatpush1.bf16.xpose.msra.mxu0 0
  %2968 = vmatprep.subr.bf16.mxu0 0
  %2969 = vmatpush1.bf16.xpose.msra.mxu0 0
  %2970 = vmatprep.subr.bf16.mxu0 0
  %2971 = vmatpush1.bf16.xpose.msra.mxu0 0
  %2972 = vmatprep.subr.bf16.mxu0 0
  %2973 = vmatpush1.bf16.xpose.msra.mxu0 0
  %2974 = vmatprep.subr.bf16.mxu0 0
  %2975 = vmatpush1.bf16.xpose.msra.mxu0 0
  %2976 = vmatprep.subr.bf16.mxu0 0
  %2977 = vmatpush1.bf16.xpose.msra.mxu0 0
  %2978 = vmatprep.subr.bf16.mxu0 0
  %2979 = vmatpush1.bf16.xpose.msra.mxu0 0
  %2980 = vmatprep.subr.bf16.mxu0 0
  %2981 = vmatpush1.bf16.xpose.msra.mxu0 0
  %2982 = vmatprep.subr.bf16.mxu0 0
  %2983 = vmatpush1.bf16.xpose.msra.mxu0 0
  %2984 = vmatprep.subr.bf16.mxu0 0
  %2985 = vmatpush1.bf16.xpose.msra.mxu0 0
  %2986 = vmatprep.subr.bf16.mxu0 0
  %2987 = vmatpush1.bf16.xpose.msra.mxu0 0
  %2988 = vmatprep.subr.bf16.mxu0 0
  %2989 = vmatpush1.bf16.xpose.msra.mxu0 0
  %2990 = vmatprep.subr.bf16.mxu0 0
  %2991 = vmatpush1.bf16.xpose.msra.mxu0 0
  %2992 = vmatprep.subr.bf16.mxu0 0
  %2993 = vmatpush1.bf16.xpose.msra.mxu0 0
  %2994 = vmatprep.mubr.bf16.mxu0 0
  %2995 = vmatmul.mubr.bf16.gmra.mrb[0].mxu0 %v2957
  %v2996 = vpop.f32.mrb[0].mxu0
  %v2997 = vadd.f32 0.0, %v2996
  %v2998 = vpop.f32.mrb[0].mxu0
  %v2999 = vpop.f32.mrb[0].mxu0
  %v3000 = vadd.f32 0.0, %v2999
  %v3001 = vpop.f32.mrb[0].mxu0
  %3002 = vdwg.mxu0
  %v3003 = vsel %vm113, %v2997, -inf
  %3004 = vmax.xlane.f32.xlu0 %v3003
  %v3005 = vpop.xlane.xlu0 %3004
  %v3006 = vsel %vm113, %v3000, -inf
  %3007 = vmax.xlane.f32.xlu0 %v3006
  %v3008 = vpop.xlane.xlu0 %3007
  %v3009 = vsub.f32 %v2997, %v3005
  %v3010 = vsub.f32 %v3000, %v3008
  %v3011 = vmul.f32 %v3009, 1.442695
  %v3012 = vpow.pop %v3011
  %v3013 = vmul.f32 %v3010, 1.442695
  %v3014 = vpow.pop %v3013
  %v3015 = vsel %vm113, %v3012, 0.0
  %3016 = vadd.xlane.f32.xlu0 %v3015
  %v3017 = vpop.xlane.xlu0 %3016
  %v3018 = vsel %vm113, %v3014, 0.0
  %3019 = vadd.xlane.f32.xlu0 %v3018
  %v3020 = vpop.xlane.xlu0 %3019
  %v3021 = vrcp.pop %v3017
  %v3022 = vrcp.pop %v3020
  %v3023 = vmul.f32 %v3012, %v3021
  %v3024 = vmul.f32 %v3014, %v3022
  %v3025 = vpack.c.bf16 %v3024, %v3023
  %v3028 = vsel %vm113, %v3025, 0
  %3030 = vmatprep.subr.bf16.mxu0 0
  %3031 = vmatpush1.bf16.msra.mxu0 %v2954
  %3032 = vmatprep.subr.bf16.mxu0 0
  %3033 = vmatpush1.bf16.msra.mxu0 0
  %3034 = vmatprep.subr.bf16.mxu0 0
  %3035 = vmatpush1.bf16.msra.mxu0 0
  %3036 = vmatprep.subr.bf16.mxu0 0
  %3037 = vmatpush1.bf16.msra.mxu0 0
  %3038 = vmatprep.subr.bf16.mxu0 0
  %3039 = vmatpush1.bf16.msra.mxu0 0
  %3040 = vmatprep.subr.bf16.mxu0 0
  %3041 = vmatpush1.bf16.msra.mxu0 0
  %3042 = vmatprep.subr.bf16.mxu0 0
  %3043 = vmatpush1.bf16.msra.mxu0 0
  %3044 = vmatprep.subr.bf16.mxu0 0
  %3045 = vmatpush1.bf16.msra.mxu0 0
  %3046 = vmatprep.subr.bf16.mxu0 0
  %3047 = vmatpush1.bf16.msra.mxu0 0
  %3048 = vmatprep.subr.bf16.mxu0 0
  %3049 = vmatpush1.bf16.msra.mxu0 0
  %3050 = vmatprep.subr.bf16.mxu0 0
  %3051 = vmatpush1.bf16.msra.mxu0 0
  %3052 = vmatprep.subr.bf16.mxu0 0
  %3053 = vmatpush1.bf16.msra.mxu0 0
  %3054 = vmatprep.subr.bf16.mxu0 0
  %3055 = vmatpush1.bf16.msra.mxu0 0
  %3056 = vmatprep.subr.bf16.mxu0 0
  %3057 = vmatpush1.bf16.msra.mxu0 0
  %3058 = vmatprep.subr.bf16.mxu0 0
  %3059 = vmatpush1.bf16.msra.mxu0 0
  %3060 = vmatprep.subr.bf16.mxu0 0
  %3061 = vmatpush1.bf16.msra.mxu0 0
  %3062 = vmatprep.mubr.bf16.mxu0 0
  %3063 = vmatmul.mubr.bf16.gmra.mrb[0].mxu0 %v3028
  %v3064 = vpop.f32.mrb[0].mxu0
  %v3065 = vadd.f32 0.0, %v3064
  %v3066 = vpop.f32.mrb[0].mxu0
  %v3067 = vpop.f32.mrb[0].mxu0
  %v3068 = vadd.f32 0.0, %v3067
  %v3069 = vpop.f32.mrb[0].mxu0
  %3070 = vdwg.mxu0
  %v3071 = vmul.f32 %v1766, 0.7
  %v3072 = vmul.f32 %v1839, 0.7
  %v3073 = vmul.f32 %v1912, 0.7
  %v3074 = vmul.f32 %v1985, 0.7
  %v3075 = vmul.f32 %v2058, 0.7
  %v3076 = vmul.f32 %v2131, 0.7
  %v3077 = vmul.f32 %v2204, 0.7
  %v3078 = vmul.f32 %v2277, 0.7
  %v3079 = vmul.f32 %v2350, 0.7
  %v3080 = vmul.f32 %v2423, 0.7
  %v3081 = vmul.f32 %v2496, 0.7
  %v3082 = vmul.f32 %v2569, 0.7
  %v3083 = vmul.f32 %v2642, 0.7
  %v3084 = vmul.f32 %v2715, 0.7
  %v3085 = vmul.f32 %v2788, 0.7
  %v3086 = vmul.f32 %v2861, 0.7
  %v3087 = vmul.f32 %v3065, 0.3
  %v3088 = vmul.f32 %v3068, 0.3
  %v3091 = vrot.slane %v3087, 7
  %v3092 = vrot.slane %v3087, 1
  %v3093 = vrot.slane %v3087, 2
  %v3094 = vrot.slane %v3087, 3
  %v3095 = vrot.slane %v3087, 4
  %v3096 = vrot.slane %v3087, 5
  %v3097 = vrot.slane %v3087, 6
  %v3098 = vrot.slane %v3088, 7
  %v3099 = vrot.slane %v3088, 1
  %v3100 = vrot.slane %v3088, 2
  %v3101 = vrot.slane %v3088, 3
  %v3102 = vrot.slane %v3088, 4
  %v3103 = vrot.slane %v3088, 5
  %v3104 = vrot.slane %v3088, 6
  %v3121 = vadd.f32 %v3071, %v3091
  %v3122 = vadd.f32 %v3072, %v3087
  %v3123 = vadd.f32 %v3073, %v3092
  %v3124 = vadd.f32 %v3074, %v3093
  %v3125 = vadd.f32 %v3075, %v3094
  %v3126 = vadd.f32 %v3076, %v3095
  %v3127 = vadd.f32 %v3077, %v3096
  %v3128 = vadd.f32 %v3078, %v3097
  %v3129 = vadd.f32 %v3079, %v3098
  %v3130 = vadd.f32 %v3080, %v3088
  %v3131 = vadd.f32 %v3081, %v3099
  %v3132 = vadd.f32 %v3082, %v3100
  %v3133 = vadd.f32 %v3083, %v3101
  %v3134 = vadd.f32 %v3084, %v3102
  %v3135 = vadd.f32 %v3085, %v3103
  %v3136 = vadd.f32 %v3086, %v3104
  %v3137 = vld [vmem:[%s5] sm:$0xf]
  %v3138 = vld [vmem:[%s5 + $0x4] sm:$0xf]
  %v3139 = vld [vmem:[%s5 + $0x8] sm:$0xf]
  %v3140 = vld [vmem:[%s5 + $0xc] sm:$0xf]
  %v3141 = vld [vmem:[%s7] sm:$0xf]
  %v3142 = vld [vmem:[%s7 + $0x4] sm:$0xf]
  %v3143 = vld [vmem:[%s7 + $0x8] sm:$0xf]
  %v3144 = vld [vmem:[%s7 + $0xc] sm:$0xf]
  %v3145 = vld [vmem:[%s6] sm:$0x1]
  %v3146 = vld [vmem:[%s8] sm:$0x1]
  %v3147 = vpack.c.bf16 %v3121, %v3121
  %v3148 = vpack.c.bf16 %v3122, %v3122
  %v3149 = vpack.c.bf16 %v3123, %v3123
  %v3150 = vpack.c.bf16 %v3124, %v3124
  %v3151 = vpack.c.bf16 %v3125, %v3125
  %v3152 = vpack.c.bf16 %v3126, %v3126
  %v3153 = vpack.c.bf16 %v3127, %v3127
  %v3154 = vpack.c.bf16 %v3128, %v3128
  %v3155 = vpack.c.bf16 %v3129, %v3129
  %v3156 = vpack.c.bf16 %v3130, %v3130
  %v3157 = vpack.c.bf16 %v3131, %v3131
  %v3158 = vpack.c.bf16 %v3132, %v3132
  %v3159 = vpack.c.bf16 %v3133, %v3133
  %v3160 = vpack.c.bf16 %v3134, %v3134
  %v3161 = vpack.c.bf16 %v3135, %v3135
  %v3162 = vpack.c.bf16 %v3136, %v3136
  %v3164 = vlaneseq
  %v3165 = vshrl.u32 %v3164, 7
  %v3166 = vsub.s32 0, %v3165
  %v3167 = vrot.slane %v3145, %v3166
  %v3185 = vunpack.c.l.b16 %v3147
  %v3186 = vunpack.c.l.b16 %v3148
  %v3187 = vunpack.c.l.b16 %v3149
  %v3188 = vunpack.c.l.b16 %v3150
  %v3189 = vunpack.c.l.b16 %v3151
  %v3190 = vunpack.c.l.b16 %v3152
  %v3191 = vunpack.c.l.b16 %v3153
  %v3192 = vunpack.c.l.b16 %v3154
  %v3193 = vunpack.c.l.b16 %v3155
  %v3194 = vunpack.c.l.b16 %v3156
  %v3195 = vunpack.c.l.b16 %v3157
  %v3196 = vunpack.c.l.b16 %v3158
  %v3197 = vunpack.c.l.b16 %v3159
  %v3198 = vunpack.c.l.b16 %v3160
  %v3199 = vunpack.c.l.b16 %v3161
  %v3200 = vunpack.c.l.b16 %v3162
  %v3201 = vrot.slane %v3185, 1
  %v3202 = vsel %vm2915, %v3186, %v3201
  %v3203 = vrot.slane %v3187, 7
  %v3204 = vsel %vm2918, %v3203, %v3202
  %v3205 = vrot.slane %v3188, 6
  %v3206 = vsel %vm2921, %v3205, %v3204
  %v3207 = vrot.slane %v3189, 5
  %v3208 = vsel %vm2924, %v3207, %v3206
  %v3209 = vrot.slane %v3190, 4
  %v3210 = vsel %vm2927, %v3209, %v3208
  %v3211 = vrot.slane %v3191, 3
  %v3212 = vsel %vm2930, %v3211, %v3210
  %v3213 = vrot.slane %v3192, 2
  %v3214 = vsel %vm2933, %v3213, %v3212
  %v3215 = vrot.slane %v3193, 1
  %v3216 = vsel %vm2915, %v3194, %v3215
  %v3217 = vrot.slane %v3195, 7
  %v3218 = vsel %vm2918, %v3217, %v3216
  %v3219 = vrot.slane %v3196, 6
  %v3220 = vsel %vm2921, %v3219, %v3218
  %v3221 = vrot.slane %v3197, 5
  %v3222 = vsel %vm2924, %v3221, %v3220
  %v3223 = vrot.slane %v3198, 4
  %v3224 = vsel %vm2927, %v3223, %v3222
  %v3225 = vrot.slane %v3199, 3
  %v3226 = vsel %vm2930, %v3225, %v3224
  %v3227 = vrot.slane %v3200, 2
  %v3228 = vsel %vm2933, %v3227, %v3226
  %v3229 = vpack.c.b16 %v3228, %v3214
  %v3234 = vunpack.c.l.b16 %v3137
  %v3235 = vunpack.c.l.b16 %v3138
  %v3236 = vunpack.c.l.b16 %v3139
  %v3237 = vunpack.c.l.b16 %v3140
  %v3238 = vpack.c.b16 %v3235, %v3234
  %v3239 = vpack.c.b16 %v3237, %v3236
  %v3243 = vsel %vm2955, %v3229, 0
  %3245 = vmatprep.subr.bf16.mxu0 0
  %3246 = vmatpush1.bf16.msra.mxu0 %v3238
  %3247 = vmatprep.subr.bf16.mxu0 0
  %3248 = vmatpush1.bf16.msra.mxu0 %v3239
  %3249 = vmatprep.subr.bf16.mxu0 0
  %3250 = vmatpush1.bf16.msra.mxu0 0
  %3251 = vmatprep.subr.bf16.mxu0 0
  %3252 = vmatpush1.bf16.msra.mxu0 0
  %3253 = vmatprep.subr.bf16.mxu0 0
  %3254 = vmatpush1.bf16.msra.mxu0 0
  %3255 = vmatprep.subr.bf16.mxu0 0
  %3256 = vmatpush1.bf16.msra.mxu0 0
  %3257 = vmatprep.subr.bf16.mxu0 0
  %3258 = vmatpush1.bf16.msra.mxu0 0
  %3259 = vmatprep.subr.bf16.mxu0 0
  %3260 = vmatpush1.bf16.msra.mxu0 0
  %3261 = vmatprep.subr.bf16.mxu0 0
  %3262 = vmatpush1.bf16.msra.mxu0 0
  %3263 = vmatprep.subr.bf16.mxu0 0
  %3264 = vmatpush1.bf16.msra.mxu0 0
  %3265 = vmatprep.subr.bf16.mxu0 0
  %3266 = vmatpush1.bf16.msra.mxu0 0
  %3267 = vmatprep.subr.bf16.mxu0 0
  %3268 = vmatpush1.bf16.msra.mxu0 0
  %3269 = vmatprep.subr.bf16.mxu0 0
  %3270 = vmatpush1.bf16.msra.mxu0 0
  %3271 = vmatprep.subr.bf16.mxu0 0
  %3272 = vmatpush1.bf16.msra.mxu0 0
  %3273 = vmatprep.subr.bf16.mxu0 0
  %3274 = vmatpush1.bf16.msra.mxu0 0
  %3275 = vmatprep.subr.bf16.mxu0 0
  %3276 = vmatpush1.bf16.msra.mxu0 0
  %3277 = vmatprep.mubr.bf16.mxu0 0
  %3278 = vmatmul.mubr.bf16.gmra.mrb[0].mxu0 %v3243
  %v3279 = vpop.f32.mrb[0].mxu0
  %v3280 = vadd.f32 %v3167, %v3279
  %v3281 = vpop.f32.mrb[0].mxu0
  %v3282 = vpop.f32.mrb[0].mxu0
  %v3283 = vadd.f32 %v3167, %v3282
  %v3284 = vpop.f32.mrb[0].mxu0
  %3285 = vdwg.mxu0
  %v3286 = vmax.f32 %v3280, 0.0
  %v3287 = vmax.f32 %v3283, 0.0
  %v3288 = vpack.c.bf16 %v3287, %v3286
  %v3290 = vlaneseq
  %v3291 = vshrl.u32 %v3290, 7
  %v3292 = vsub.s32 0, %v3291
  %v3293 = vrot.slane %v3146, %v3292
  %v3299 = vunpack.c.l.b16 %v3141
  %v3300 = vunpack.c.l.b16 %v3142
  %v3301 = vunpack.c.l.b16 %v3143
  %v3302 = vunpack.c.l.b16 %v3144
  %v3303 = vpack.c.b16 %v3300, %v3299
  %v3304 = vpack.c.b16 %v3302, %v3301
  %v3308 = vsel %vm2955, %v3288, 0
  %3310 = vmatprep.subr.bf16.mxu0 0
  %3311 = vmatpush1.bf16.msra.mxu0 %v3303
  %3312 = vmatprep.subr.bf16.mxu0 0
  %3313 = vmatpush1.bf16.msra.mxu0 %v3304
  %3314 = vmatprep.subr.bf16.mxu0 0
  %3315 = vmatpush1.bf16.msra.mxu0 0
  %3316 = vmatprep.subr.bf16.mxu0 0
  %3317 = vmatpush1.bf16.msra.mxu0 0
  %3318 = vmatprep.subr.bf16.mxu0 0
  %3319 = vmatpush1.bf16.msra.mxu0 0
  %3320 = vmatprep.subr.bf16.mxu0 0
  %3321 = vmatpush1.bf16.msra.mxu0 0
  %3322 = vmatprep.subr.bf16.mxu0 0
  %3323 = vmatpush1.bf16.msra.mxu0 0
  %3324 = vmatprep.subr.bf16.mxu0 0
  %3325 = vmatpush1.bf16.msra.mxu0 0
  %3326 = vmatprep.subr.bf16.mxu0 0
  %3327 = vmatpush1.bf16.msra.mxu0 0
  %3328 = vmatprep.subr.bf16.mxu0 0
  %3329 = vmatpush1.bf16.msra.mxu0 0
  %3330 = vmatprep.subr.bf16.mxu0 0
  %3331 = vmatpush1.bf16.msra.mxu0 0
  %3332 = vmatprep.subr.bf16.mxu0 0
  %3333 = vmatpush1.bf16.msra.mxu0 0
  %3334 = vmatprep.subr.bf16.mxu0 0
  %3335 = vmatpush1.bf16.msra.mxu0 0
  %3336 = vmatprep.subr.bf16.mxu0 0
  %3337 = vmatpush1.bf16.msra.mxu0 0
  %3338 = vmatprep.subr.bf16.mxu0 0
  %3339 = vmatpush1.bf16.msra.mxu0 0
  %3340 = vmatprep.subr.bf16.mxu0 0
  %3341 = vmatpush1.bf16.msra.mxu0 0
  %3342 = vmatprep.mubr.bf16.mxu0 0
  %3343 = vmatmul.mubr.bf16.gmra.mrb[0].mxu0 %v3308
  %v3344 = vpop.f32.mrb[0].mxu0
  %v3345 = vadd.f32 %v3293, %v3344
  %v3346 = vpop.f32.mrb[0].mxu0
  %v3347 = vpop.f32.mrb[0].mxu0
  %v3348 = vadd.f32 %v3293, %v3347
  %v3349 = vpop.f32.mrb[0].mxu0
  %3350 = vdwg.mxu0
  %v3351 = vsel %vm1547, %v3345, -inf
  %3352 = vmax.xlane.f32.xlu0 %v3351
  %v3353 = vpop.xlane.xlu0 %3352
  %v3354 = vsel %vm1547, %v3348, -inf
  %3355 = vmax.xlane.f32.xlu0 %v3354
  %v3356 = vpop.xlane.xlu0 %3355
  %v3357 = vsub.f32 %v3345, %v3353
  %v3358 = vsub.f32 %v3348, %v3356
  %v3359 = vmul.f32 %v3357, 1.442695
  %v3360 = vpow.pop %v3359
  %v3361 = vmul.f32 %v3358, 1.442695
  %v3362 = vpow.pop %v3361
  %v3363 = vsel %vm1547, %v3360, 0.0
  %3364 = vadd.xlane.f32.xlu0 %v3363
  %v3365 = vpop.xlane.xlu0 %3364
  %v3366 = vsel %vm1547, %v3362, 0.0
  %3367 = vadd.xlane.f32.xlu0 %v3366
  %v3368 = vpop.xlane.xlu0 %3367
  %v3369 = vrcp.pop %v3365
  %v3370 = vrcp.pop %v3368
  %v3371 = vmul.f32 %v3360, %v3369
  %v3372 = vmul.f32 %v3362, %v3370
  %v3373 = vld [vmem:[%s4] sm:$0x1]
  %v3374 = vmul.f32 %v3371, 0.7
  %v3375 = vmul.f32 %v3372, 0.7
  %v3376 = vmul.f32 %v3373, 0.3
  %v3378 = vlaneseq
  %v3379 = vshrl.u32 %v3378, 7
  %v3380 = vsub.s32 0, %v3379
  %v3381 = vrot.slane %v3376, %v3380
  %v3383 = vadd.f32 %v3374, %v3381
  %v3384 = vadd.f32 %v3375, %v3381
  %3385 = vst.msk [vmem:[%s9] sm:$0xff] %vm1547, %v3383
  %3386 = vst.msk [vmem:[%s9 + $0x8] sm:$0xff] %vm1547, %v3384
  // Predicated region
  $region38: #{tpu_custom_call.1} parent=0 // pred_check
    _
  $region39: #{tpu_custom_call.1} parent=0 // pred_check_branch
    %3388 = sbr.rel (0) target = $region41
  $region40: #{tpu_custom_call.1} parent=0 // pred_region
    _
  $region41: #{tpu_custom_call.1} parent=0 // pred_fallthru
    _
  // Predicated region
  $region42: #{tpu_custom_call.1} parent=0 // pred_check
    _
  $region43: #{tpu_custom_call.1} parent=0 // pred_check_branch
    %3390 = sbr.rel (0) target = $region45
  $region44: #{tpu_custom_call.1} parent=0 // pred_region
    _
  $region45: #{tpu_custom_call.1} parent=0 // pred_fallthru
    _

</llo_original>
